<compile_context>
chip_gen: v6e
topology: v6e:2x2x1
jax: 0.10.0
libtpu: 0.0.40
codegen_flags: <defaults>
</compile_context>

<pallas_src>
import jax
import jax.numpy as jnp
from jax.experimental import pallas as pl
from jax.experimental.pallas import tpu as pltpu


# ----------------------------------------------------------------------------
# small in-kernel helpers
# ----------------------------------------------------------------------------
def _softmax_last(s):
    s = s - jnp.max(s, axis=-1, keepdims=True)
    e = jnp.exp(s)
    return e * pl.reciprocal(jnp.sum(e, axis=-1, keepdims=True), approx=True)


def _dot(a, b):
    return jnp.dot(a, b, preferred_element_type=jnp.float32)


def _dot_t(a, b):  # a @ b.T without materializing the transpose
    return jax.lax.dot_general(a, b, (((1,), (1,)), ((), ())),
                               preferred_element_type=jnp.float32)


def _cp(n_axes):
    return pltpu.CompilerParams(dimension_semantics=("parallel",) * n_axes)


def _b3(shape):   # batch-blocked 3-D operand (grid axis 0 = batch)
    return pl.BlockSpec(shape, lambda i: (i, 0, 0))


def _w2(shape):   # broadcast 2-D weight / bias (same block every grid step)
    return pl.BlockSpec(shape, lambda i: (0, 0))


# ----------------------------------------------------------------------------
# fused kernel A: encode + gc1/gc2 branch + shared-kv attention pooling head
# ----------------------------------------------------------------------------
def _make_encode_branch_kernel(eps, att_scale, attdim):
    def kernel(dist_ref, rels_ref, logit_ref, seq_ref, asp_ref, tlen_ref,
               ln_a_ref, ln_b_ref, pool_w_ref, pool_b_ref,
               lin_w_ref, lin_b_ref, asp_w_ref, asp_b_ref,
               gc1_w_ref, gc1_b_ref, gc2_w_ref, gc2_b_ref,
               edge_w_ref, edge_b_ref, lstm_w_ref, lstm_b_ref,
               dense_w_ref, dense_b_ref,
               seqout_ref, pooled_ref, ad_ref):
        # adj = bmm(distance_adj, relation_adj.sum(dim=1))
        adj = _dot(dist_ref[0], rels_ref[0])                                # (L, L)

        # self.linear(prompt logits)
        linear_out = _dot(logit_ref[0], lin_w_ref[...]) + lin_b_ref[...]    # (L, H)

        # custom LayerNorm (unbiased std, eps added to std) of the sequence
        x = seq_ref[0]                                                      # (L, D)
        mean = jnp.mean(x, axis=-1, keepdims=True)
        var = jnp.sum((x - mean) ** 2, axis=-1, keepdims=True) / (x.shape[-1] - 1)
        inv_std = pl.reciprocal(jnp.sqrt(var) + eps, approx=True)
        seqout_ref[...] = (ln_a_ref[...] * (x - mean) * inv_std + ln_b_ref[...])[None]

        # TODO(synk): RobertaModel pooler_output not reproducible; tanh(W @ CLS) stand-in.
        cls = x[0:1, :]
        pooled_ref[...] = jnp.tanh(_dot(cls, pool_w_ref[...]) + pool_b_ref[...])[None]

        # aspect projection to attdim
        aspect = _dot(asp_ref[0], asp_w_ref[...]) + asp_b_ref[...]          # (La, A)

        # gc1 / gc2 graph-convolution branch over `adj`
        gc1 = jnp.maximum(_dot(_dot(adj, linear_out), gc1_w_ref[...]) + gc1_b_ref[...], 0.0)
        gc2 = jnp.maximum(_dot(_dot(adj, gc1), gc2_w_ref[...]) + gc2_b_ref[...], 0.0)

        # TODO(synk): cnn_gat / DynamicLSTM / Attention unavailable; attdim proxies
        # + scaled-dot-product attention against `aspect` preserve the branch shapes.
        c_proxy = _dot(gc2, edge_w_ref[...]) + edge_b_ref[...]              # (L, A)
        lstm_proxy = _dot(linear_out, lstm_w_ref[...]) + lstm_b_ref[...]    # (L, A)

        def attend(q):  # shared k/v == aspect, both SDPA calls fused in one kernel
            p = _softmax_last(_dot_t(q, aspect) * att_scale)
            return _dot(p, aspect)

        sum_c = jnp.sum(attend(c_proxy), axis=0, keepdims=True)             # (1, A)
        sum_l = jnp.sum(attend(lstm_proxy), axis=0, keepdims=True)          # (1, A)
        inv_len = pl.reciprocal(tlen_ref[0], approx=True)                   # (1, 1)
        dw = dense_w_ref[...]                                               # (2A, H)
        # dense(concat(mean_c, mean_l)) == (sum_c @ W_top + sum_l @ W_bot)/len + b
        ad = (_dot(sum_c, dw[:attdim, :]) + _dot(sum_l, dw[attdim:, :])) * inv_len \
             + dense_b_ref[...]
        ad_ref[...] = ad[None]

    return kernel


# ----------------------------------------------------------------------------
# fused kernel B: multi-head adjacencies + KL + dual-GCN layers + masked pooling
# ----------------------------------------------------------------------------
def _make_attn_dualgcn_kernel(heads, dk, num_layers, alpha, beta):
    scale = 1.0 / float(dk) ** 0.5
    inv_heads = 1.0 / float(heads)

    def kernel(*refs):
        (x_ref, amask_ref, smrow_ref, smcol_ref, adjm_ref, wn_ref,
         wq_ref, wk_ref, aff3_ref, aff4_ref) = refs[:10]
        layer_refs = refs[10:10 + 4 * num_layers]
        out23_ref, kl_ref = refs[10 + 4 * num_layers:]

        x = x_ref[0]                                   # (L, D) = gcn_inputs
        L = x.shape[0]
        amask = amask_ref[0]                           # (L, 1) aspect mask
        smrow = smrow_ref[0]                           # (1, L) src mask (keys)
        smcol = smcol_ref[0]                           # (L, 1) src mask (rows)

        # TODO(synk): MultiHeadAttention body unavailable; masked scaled-dot scores.
        aspect_outs = x * amask
        wq = wq_ref[...]                               # (D, heads*dk) stacked
        wk = wk_ref[...]
        q_all = _dot(x, wq)                            # all heads in one matmul
        k_all = _dot(x, wk)
        qa_all = _dot(aspect_outs, wq)

        neg = jnp.float32(-1e9)
        s_sum = jnp.zeros((L, L), jnp.float32)
        a_sum = jnp.zeros((L, L), jnp.float32)
        for h in range(heads):                         # static unroll, head-average fused
            lo, hi = h * dk, (h + 1) * dk
            qh, kh, qah = q_all[:, lo:hi], k_all[:, lo:hi], qa_all[:, lo:hi]
            s = jnp.where(smrow > 0, _dot_t(qh, kh) * scale, neg)
            sa = jnp.where(smrow > 0, _dot_t(qah, kh) * scale, neg)
            s_sum = s_sum + _softmax_last(s)
            a_sum = a_sum + _softmax_last(sa)
        adj_s = s_sum * inv_heads
        aspect_score_avg = a_sum * inv_heads

        # zero diagonal + identity, then query-row mask (ad_mask is all-ones)
        row = jax.lax.broadcasted_iota(jnp.int32, (L, L), 0)
        col = jax.lax.broadcasted_iota(jnp.int32, (L, L), 1)
        eye = (row == col).astype(jnp.float32)
        adj_s = adj_s * (1.0 - eye) + eye
        adj_s = smcol * adj_s

        # syn/sem gated adjacency (adj.mul(zeros).sum() == 0 in the original)
        syn_m = jnp.exp(-alpha * adjm_ref[0])
        syn_m = jnp.where(aspect_score_avg > beta, 1.0, syn_m)
        adj_ag = syn_m * aspect_score_avg

        # KL(adj_s.softmax || adj_ag.softmax), summed
        z = adj_ag - jnp.max(adj_ag, axis=-1, keepdims=True)
        log_p_ag = z - jnp.log(jnp.sum(jnp.exp(z), axis=-1, keepdims=True))
        p_s = _softmax_last(adj_s)
        kl = jnp.sum(p_s * (jnp.log(p_s) - log_p_ag), axis=(0, 1), keepdims=True)
        kl_ref[...] = kl[None]

        inv_den_s = pl.reciprocal(jnp.sum(adj_s, axis=-1, keepdims=True) + 1.0,
                                  approx=True)
        inv_den_ag = pl.reciprocal(jnp.sum(adj_ag, axis=-1, keepdims=True) + 1.0,
                                   approx=True)

        # dual GCN layers, statically unrolled, activations never leave VMEM
        aff3, aff4 = aff3_ref[...], aff4_ref[...]
        out_ag, out_s = x, x
        for l in range(num_layers):
            wa_w = layer_refs[4 * l + 0][...]
            wa_b = layer_refs[4 * l + 1][...]
            ws_w = layer_refs[4 * l + 2][...]
            ws_b = layer_refs[4 * l + 3][...]
            g_ag = jnp.maximum((_dot(_dot(adj_ag, out_ag), wa_w) + wa_b) * inv_den_ag, 0.0)
            g_s = jnp.maximum((_dot(_dot(adj_s, out_s), ws_w) + ws_b) * inv_den_s, 0.0)
            a3 = _softmax_last(_dot_t(_dot(g_ag, aff3), g_s))
            a4 = _softmax_last(_dot_t(_dot(g_s, aff4), g_ag))
            out_ag = _dot(a3, g_s)
            out_s = _dot(a4, g_ag)

        # aspect-masked mean pooling of both branches, emitted as one 2M-wide slab
        inv_wn = pl.reciprocal(wn_ref[0], approx=True)              # (1, 1)
        pooled_ag = jnp.sum(out_ag * amask, axis=0, keepdims=True) * inv_wn
        pooled_s = jnp.sum(out_s * amask, axis=0, keepdims=True) * inv_wn
        out23_ref[...] = jnp.concatenate([pooled_ag, pooled_s], axis=-1)[None]

    return kernel


# ----------------------------------------------------------------------------
# parameters
# ----------------------------------------------------------------------------
def init_params(key, cfg):
    keys = iter(jax.random.split(key, 64))
    scale = 0.05

    def lin(din, dout):
        return (jax.random.normal(next(keys), (din, dout), jnp.float32) * scale,
                jnp.zeros((dout,), jnp.float32))

    D, M, H, A = cfg["bert_dim"], cfg["mem_dim"], cfg["hidden_dim"], cfg["attdim"]
    R, heads = cfg["roberta_dim"], cfg["heads"]
    dk = D // heads

    p = {}
    p["layernorm_a"] = jnp.ones((D,), jnp.float32)
    p["layernorm_b"] = jnp.zeros((D,), jnp.float32)
    p["linear"] = lin(R, H)                 # self.linear
    p["aspect_linear"] = lin(D, A)          # self.aspect_linear
    p["lstm_linear"] = lin(2 * H, A)        # self.lstm_linear
    p["edge_linear"] = lin(H, A)            # self.edge_linear
    p["dense"] = lin(2 * A, H)              # self.dense
    p["gc1"] = lin(H, H)
    p["gc2"] = lin(H, H)
    # multi-head projections stored head-stacked: (D, heads*dk)
    p["attn_wq"] = jax.random.normal(next(keys), (D, heads * dk), jnp.float32) * scale
    p["attn_wk"] = jax.random.normal(next(keys), (D, heads * dk), jnp.float32) * scale
    p["wa"], p["ws"] = [], []
    for l in range(cfg["num_layers"]):
        din = D if l == 0 else M
        p["wa"].append(lin(din, M))
        p["ws"].append(lin(din, M))
    p["affine3"] = jax.random.normal(next(keys), (M, M), jnp.float32) * scale
    p["affine4"] = jax.random.normal(next(keys), (M, M), jnp.float32) * scale
    p["pooler"] = lin(D, D)
    # TODO(synk): deterministic stand-ins for the pretrained RoBERTa/BERT encoders.
    p["tok_emb"] = jax.random.normal(next(keys), (cfg["vocab"], D), jnp.float32) * scale
    p["prompt_emb"] = jax.random.normal(next(keys), (cfg["vocab"], R), jnp.float32) * scale
    return p


# ----------------------------------------------------------------------------
# forward pass (two fused Pallas kernels + tiny XLA glue)
# ----------------------------------------------------------------------------
def gcn_absa_forward(params, inputs, cfg):
    (text_ids, prompt_ids, aspect_ids, adj_matrix, edge_adj,
     distance_adj, relation_adj, src_mask, aspect_mask) = inputs
    del edge_adj  # TODO(synk): edge_emb branch uses fresh random Linears per call; dropped.

    B, L = text_ids.shape
    D, M, H = cfg["bert_dim"], cfg["mem_dim"], cfg["hidden_dim"]
    Rdim, A, heads = cfg["roberta_dim"], cfg["attdim"], cfg["heads"]
    num_layers = cfg["num_layers"]
    alpha, beta, gama = cfg["alpha"], cfg["beta"], cfg["gama"]
    dk = D // heads
    La = aspect_ids.shape[1]
    assert A == L  # required by the ad_mask broadcast in the original

    # XLA glue: embedding gathers (backbone stand-ins), relation sum, lengths.
    rel_sum = jnp.sum(relation_adj, axis=1)                      # (B, L, L)
    logit = params["prompt_emb"][prompt_ids]                     # (B, L, Rdim)
    seq_raw = params["tok_emb"][text_ids]                        # (B, L, D)
    asp_emb = params["tok_emb"][aspect_ids]                      # (B, La, D)
    text_len = jnp.sum(text_ids != 0, axis=-1).astype(jnp.float32).reshape(B, 1, 1)

    lin_w, lin_b = params["linear"]
    asp_w, asp_b = params["aspect_linear"]
    lstm_w, lstm_b = params["lstm_linear"]
    lstm_w_sum = lstm_w[:H] + lstm_w[H:]   # cat([x, x], -1) @ W == x @ (W_top + W_bot)
    edge_w, edge_b = params["edge_linear"]
    dense_w, dense_b = params["dense"]
    gc1_w, gc1_b = params["gc1"]
    gc2_w, gc2_b = params["gc2"]
    pool_w, pool_b = params["pooler"]

    # ---------------- fused kernel A ----------------
    kernel_a = _make_encode_branch_kernel(eps=1e-6,
                                          att_scale=1.0 / float(A) ** 0.5,
                                          attdim=A)
    seqout, pooled, outputs_ad = pl.pallas_call(
        kernel_a,
        out_shape=(jax.ShapeDtypeStruct((B, L, D), jnp.float32),
                   jax.ShapeDtypeStruct((B, 1, D), jnp.float32),
                   jax.ShapeDtypeStruct((B, 1, H), jnp.float32)),
        grid=(B,),
        in_specs=[_b3((1, L, L)), _b3((1, L, L)), _b3((1, L, Rdim)),
                  _b3((1, L, D)), _b3((1, La, D)), _b3((1, 1, 1)),
                  _w2((1, D)), _w2((1, D)),
                  _w2((D, D)), _w2((1, D)),
                  _w2((Rdim, H)), _w2((1, H)),
                  _w2((D, A)), _w2((1, A)),
                  _w2((H, H)), _w2((1, H)),
                  _w2((H, H)), _w2((1, H)),
                  _w2((H, A)), _w2((1, A)),
                  _w2((H, A)), _w2((1, A)),
                  _w2((2 * A, H)), _w2((1, H))],
        out_specs=[_b3((1, L, D)), _b3((1, 1, D)), _b3((1, 1, H))],
        compiler_params=_cp(1),
    )(distance_adj, rel_sum, logit, seq_raw, asp_emb, text_len,
      params["layernorm_a"].reshape(1, D), params["layernorm_b"].reshape(1, D),
      pool_w, pool_b.reshape(1, D),
      lin_w, lin_b.reshape(1, H),
      asp_w, asp_b.reshape(1, A),
      gc1_w, gc1_b.reshape(1, H),
      gc2_w, gc2_b.reshape(1, H),
      edge_w, edge_b.reshape(1, A),
      lstm_w_sum, lstm_b.reshape(1, A),
      dense_w, dense_b.reshape(1, H))

    pooled_output = pooled[:, 0]            # (B, D)
    outputs_ad = outputs_ad[:, 0]           # (B, H)

    # ---------------- fused kernel B ----------------
    aspect_mask3 = aspect_mask[:, :, None]                       # (B, L, 1)
    src_row = src_mask[:, None, :]                               # (B, 1, L)
    src_col = src_mask[:, :, None]                               # (B, L, 1)
    asp_wn = jnp.sum(aspect_mask, axis=1).reshape(B, 1, 1)

    layer_args, layer_specs = [], []
    for l in range(num_layers):
        din = D if l == 0 else M
        wa_w, wa_b = params["wa"][l]
        ws_w, ws_b = params["ws"][l]
        layer_args += [wa_w, wa_b.reshape(1, M), ws_w, ws_b.reshape(1, M)]
        layer_specs += [_w2((din, M)), _w2((1, M)), _w2((din, M)), _w2((1, M))]

    kernel_b = _make_attn_dualgcn_kernel(heads, dk, num_layers, alpha, beta)
    out23, kl_b = pl.pallas_call(
        kernel_b,
        out_shape=(jax.ShapeDtypeStruct((B, 1, 2 * M), jnp.float32),
                   jax.ShapeDtypeStruct((B, 1, 1), jnp.float32)),
        grid=(B,),
        in_specs=[_b3((1, L, D)), _b3((1, L, 1)), _b3((1, 1, L)), _b3((1, L, 1)),
                  _b3((1, L, L)), _b3((1, 1, 1)),
                  _w2((D, heads * dk)), _w2((D, heads * dk)),
                  _w2((M, M)), _w2((M, M))] + layer_specs,
        out_specs=[_b3((1, 1, 2 * M)), _b3((1, 1, 1))],
        compiler_params=_cp(1),
    )(seqout, aspect_mask3, src_row, src_col, adj_matrix, asp_wn,
      params["attn_wq"], params["attn_wk"], params["affine3"], params["affine4"],
      *layer_args)

    outputs2 = out23[:, 0, :M]
    outputs3 = out23[:, 0, M:]
    kl_loss = jnp.exp(-jnp.sum(kl_b) * gama)
    return outputs_ad, outputs2, outputs3, kl_loss, pooled_output


# ----------------------------------------------------------------------------
# driver
# ----------------------------------------------------------------------------
if __name__ == "__main__":
    cfg = dict(bert_dim=64, mem_dim=32, hidden_dim=32, roberta_dim=64,
               attdim=32, heads=2, num_layers=2, vocab=100,
               alpha=0.8, beta=0.04, gama=0.1)

    B, L, La, NREL = 2, 32, 8, 5
    key = jax.random.PRNGKey(0)
    kp, k1, k2, k3, k4, k5, k6 = jax.random.split(key, 7)

    params = init_params(kp, cfg)

    lengths = jnp.array([28, 24])
    pos = jnp.arange(L)[None, :]
    len_mask = pos < lengths[:, None]
    tok = jax.random.randint(k1, (B, L), 1, cfg["vocab"])
    text_bert_indices = jnp.where(len_mask, tok, 0)
    text_prompt_indices = jnp.where(len_mask,
                                    jax.random.randint(k2, (B, L), 1, cfg["vocab"]), 0)
    aspect_bert_indices = jax.random.randint(k3, (B, La), 1, cfg["vocab"])
    adj_matrix = jax.random.uniform(k4, (B, L, L), jnp.float32, 0.0, 3.0)
    edge_adj = jax.random.randint(k5, (B, L, L), 0, 50)          # unused (see TODO)
    distance_adj = jax.random.uniform(k6, (B, L, L), jnp.float32, 0.0, 1.0)
    relation_adj = jax.random.uniform(jax.random.PRNGKey(7), (B, NREL, L, L),
                                      jnp.float32, 0.0, 0.2)
    src_mask = len_mask.astype(jnp.float32)
    aspect_mask = ((pos >= jnp.array([3, 2])[:, None]) &
                   (pos < jnp.array([6, 4])[:, None])).astype(jnp.float32)

    inputs = (text_bert_indices, text_prompt_indices, aspect_bert_indices,
              adj_matrix, edge_adj, distance_adj, relation_adj, src_mask, aspect_mask)

    outs = gcn_absa_forward(params, inputs, cfg)
    outs = jax.block_until_ready(outs)

    o1, o2, o3, kl, pooled = outs
    assert o1.shape == (B, cfg["hidden_dim"])
    assert o2.shape == (B, cfg["mem_dim"])
    assert o3.shape == (B, cfg["mem_dim"])
    assert pooled.shape == (B, cfg["bert_dim"])
    assert kl.shape == ()
    for t in (o1, o2, o3, pooled):
        assert bool(jnp.all(jnp.isfinite(t)))
    print("KERNEL_OK")
</pallas_src>

<mosaic_0001>
module attributes {stable_mosaic.version = 11 : i64} {
  func.func @kernel(%arg0: i32, %arg1: memref<1x32x32xf32, #tpu.memory_space<vmem>>, %arg2: memref<1x32x32xf32, #tpu.memory_space<vmem>>, %arg3: memref<1x32x64xf32, #tpu.memory_space<vmem>>, %arg4: memref<1x32x64xf32, #tpu.memory_space<vmem>>, %arg5: memref<1x8x64xf32, #tpu.memory_space<vmem>>, %arg6: memref<1x1x1xf32, #tpu.memory_space<vmem>>, %arg7: memref<1x64xf32, #tpu.memory_space<vmem>>, %arg8: memref<1x64xf32, #tpu.memory_space<vmem>>, %arg9: memref<64x64xf32, #tpu.memory_space<vmem>>, %arg10: memref<1x64xf32, #tpu.memory_space<vmem>>, %arg11: memref<64x32xf32, #tpu.memory_space<vmem>>, %arg12: memref<1x32xf32, #tpu.memory_space<vmem>>, %arg13: memref<64x32xf32, #tpu.memory_space<vmem>>, %arg14: memref<1x32xf32, #tpu.memory_space<vmem>>, %arg15: memref<32x32xf32, #tpu.memory_space<vmem>>, %arg16: memref<1x32xf32, #tpu.memory_space<vmem>>, %arg17: memref<32x32xf32, #tpu.memory_space<vmem>>, %arg18: memref<1x32xf32, #tpu.memory_space<vmem>>, %arg19: memref<32x32xf32, #tpu.memory_space<vmem>>, %arg20: memref<1x32xf32, #tpu.memory_space<vmem>>, %arg21: memref<32x32xf32, #tpu.memory_space<vmem>>, %arg22: memref<1x32xf32, #tpu.memory_space<vmem>>, %arg23: memref<64x32xf32, #tpu.memory_space<vmem>>, %arg24: memref<1x32xf32, #tpu.memory_space<vmem>>, %arg25: memref<1x32x64xf32, #tpu.memory_space<vmem>>, %arg26: memref<1x1x64xf32, #tpu.memory_space<vmem>>, %arg27: memref<1x1x32xf32, #tpu.memory_space<vmem>>) attributes {dimension_semantics = [#tpu.dimension_semantics<parallel>], iteration_bounds = array<i64: 2>, scalar_prefetch = 0 : i64, scratch_operands = 0 : i64, tpu.core_type = #tpu.core_type<tc>, window_params = [{transform_indices = @transform_0, window_bounds = array<i64: 1, 32, 32>}, {transform_indices = @transform_1, window_bounds = array<i64: 1, 32, 32>}, {transform_indices = @transform_2, window_bounds = array<i64: 1, 32, 64>}, {transform_indices = @transform_3, window_bounds = array<i64: 1, 32, 64>}, {transform_indices = @transform_4, window_bounds = array<i64: 1, 8, 64>}, {transform_indices = @transform_5, window_bounds = array<i64: 1, 1, 1>}, {pipeline_mode = #tpu.pipeline_mode<synchronous>, transform_indices = @transform_6, window_bounds = array<i64: 1, 64>}, {pipeline_mode = #tpu.pipeline_mode<synchronous>, transform_indices = @transform_7, window_bounds = array<i64: 1, 64>}, {pipeline_mode = #tpu.pipeline_mode<synchronous>, transform_indices = @transform_8, window_bounds = array<i64: 64, 64>}, {pipeline_mode = #tpu.pipeline_mode<synchronous>, transform_indices = @transform_9, window_bounds = array<i64: 1, 64>}, {pipeline_mode = #tpu.pipeline_mode<synchronous>, transform_indices = @transform_10, window_bounds = array<i64: 64, 32>}, {pipeline_mode = #tpu.pipeline_mode<synchronous>, transform_indices = @transform_11, window_bounds = array<i64: 1, 32>}, {pipeline_mode = #tpu.pipeline_mode<synchronous>, transform_indices = @transform_12, window_bounds = array<i64: 64, 32>}, {pipeline_mode = #tpu.pipeline_mode<synchronous>, transform_indices = @transform_13, window_bounds = array<i64: 1, 32>}, {pipeline_mode = #tpu.pipeline_mode<synchronous>, transform_indices = @transform_14, window_bounds = array<i64: 32, 32>}, {pipeline_mode = #tpu.pipeline_mode<synchronous>, transform_indices = @transform_15, window_bounds = array<i64: 1, 32>}, {pipeline_mode = #tpu.pipeline_mode<synchronous>, transform_indices = @transform_16, window_bounds = array<i64: 32, 32>}, {pipeline_mode = #tpu.pipeline_mode<synchronous>, transform_indices = @transform_17, window_bounds = array<i64: 1, 32>}, {pipeline_mode = #tpu.pipeline_mode<synchronous>, transform_indices = @transform_18, window_bounds = array<i64: 32, 32>}, {pipeline_mode = #tpu.pipeline_mode<synchronous>, transform_indices = @transform_19, window_bounds = array<i64: 1, 32>}, {pipeline_mode = #tpu.pipeline_mode<synchronous>, transform_indices = @transform_20, window_bounds = array<i64: 32, 32>}, {pipeline_mode = #tpu.pipeline_mode<synchronous>, transform_indices = @transform_21, window_bounds = array<i64: 1, 32>}, {pipeline_mode = #tpu.pipeline_mode<synchronous>, transform_indices = @transform_22, window_bounds = array<i64: 64, 32>}, {pipeline_mode = #tpu.pipeline_mode<synchronous>, transform_indices = @transform_23, window_bounds = array<i64: 1, 32>}, {transform_indices = @transform_24, window_bounds = array<i64: 1, 32, 64>}, {transform_indices = @transform_25, window_bounds = array<i64: 1, 1, 64>}, {transform_indices = @transform_26, window_bounds = array<i64: 1, 1, 32>}]} {
    %c0 = arith.constant 0 : index
    %c0_0 = arith.constant 0 : index
    %c0_1 = arith.constant 0 : index
    %0 = vector.load %arg1[%c0, %c0_0, %c0_1] : memref<1x32x32xf32, #tpu.memory_space<vmem>>, vector<1x32x32xf32>
    %1 = vector.shape_cast %0 : vector<1x32x32xf32> to vector<32x32xf32>
    %c0_2 = arith.constant 0 : index
    %c0_3 = arith.constant 0 : index
    %c0_4 = arith.constant 0 : index
    %2 = vector.load %arg2[%c0_2, %c0_3, %c0_4] : memref<1x32x32xf32, #tpu.memory_space<vmem>>, vector<1x32x32xf32>
    %3 = vector.shape_cast %2 : vector<1x32x32xf32> to vector<32x32xf32>
    %cst = arith.constant dense<0.000000e+00> : vector<32x32xf32>
    %4 = tpu.matmul %1, %3, %cst {dimension_numbers = #tpu.dot_dimension_numbers<[1], [0], [0], [1], [0, 0, 1, 1], [], []>} : vector<32x32xf32>, vector<32x32xf32>, vector<32x32xf32> -> vector<32x32xf32>
    %c0_5 = arith.constant 0 : index
    %c0_6 = arith.constant 0 : index
    %c0_7 = arith.constant 0 : index
    %5 = vector.load %arg3[%c0_5, %c0_6, %c0_7] : memref<1x32x64xf32, #tpu.memory_space<vmem>>, vector<1x32x64xf32>
    %6 = vector.shape_cast %5 : vector<1x32x64xf32> to vector<32x64xf32>
    %c0_8 = arith.constant 0 : index
    %c0_9 = arith.constant 0 : index
    %7 = vector.load %arg11[%c0_8, %c0_9] : memref<64x32xf32, #tpu.memory_space<vmem>>, vector<64x32xf32>
    %cst_10 = arith.constant dense<0.000000e+00> : vector<32x32xf32>
    %8 = tpu.matmul %6, %7, %cst_10 {dimension_numbers = #tpu.dot_dimension_numbers<[1], [0], [0], [1], [0, 0, 1, 1], [], []>} : vector<32x64xf32>, vector<64x32xf32>, vector<32x32xf32> -> vector<32x32xf32>
    %c0_11 = arith.constant 0 : index
    %c0_12 = arith.constant 0 : index
    %9 = vector.load %arg12[%c0_11, %c0_12] : memref<1x32xf32, #tpu.memory_space<vmem>>, vector<1x32xf32>
    %10 = vector.broadcast %9 : vector<1x32xf32> to vector<32x32xf32>
    %11 = arith.addf %8, %10 : vector<32x32xf32>
    %c0_13 = arith.constant 0 : index
    %c0_14 = arith.constant 0 : index
    %c0_15 = arith.constant 0 : index
    %12 = vector.load %arg4[%c0_13, %c0_14, %c0_15] : memref<1x32x64xf32, #tpu.memory_space<vmem>>, vector<1x32x64xf32>
    %13 = vector.shape_cast %12 : vector<1x32x64xf32> to vector<32x64xf32>
    %cst_16 = arith.constant dense<0.000000e+00> : vector<32xf32>
    %14 = vector.multi_reduction <add>, %13, %cst_16 [1] : vector<32x64xf32> to vector<32xf32>
    %15 = vector.shape_cast %14 : vector<32xf32> to vector<32x1xf32>
    %cst_17 = arith.constant 6.400000e+01 : f32
    %16 = vector.broadcast %cst_17 : f32 to vector<32x1xf32>
    %17 = arith.divf %15, %16 : vector<32x1xf32>
    %18 = vector.broadcast %17 : vector<32x1xf32> to vector<32x64xf32>
    %19 = arith.subf %13, %18 : vector<32x64xf32>
    %20 = arith.mulf %19, %19 : vector<32x64xf32>
    %cst_18 = arith.constant dense<0.000000e+00> : vector<32xf32>
    %21 = vector.multi_reduction <add>, %20, %cst_18 [1] : vector<32x64xf32> to vector<32xf32>
    %22 = vector.shape_cast %21 : vector<32xf32> to vector<32x1xf32>
    %cst_19 = arith.constant 6.300000e+01 : f32
    %23 = vector.broadcast %cst_19 : f32 to vector<32x1xf32>
    %24 = arith.divf %22, %23 : vector<32x1xf32>
    %25 = math.sqrt %24 : vector<32x1xf32>
    %cst_20 = arith.constant 9.99999997E-7 : f32
    %26 = vector.broadcast %cst_20 : f32 to vector<32x1xf32>
    %27 = arith.addf %25, %26 : vector<32x1xf32>
    %28 = tpu.reciprocal %27 {approx = true} : vector<32x1xf32> -> vector<32x1xf32>
    %c0_21 = arith.constant 0 : index
    %c0_22 = arith.constant 0 : index
    %29 = vector.load %arg7[%c0_21, %c0_22] : memref<1x64xf32, #tpu.memory_space<vmem>>, vector<1x64xf32>
    %30 = vector.broadcast %17 : vector<32x1xf32> to vector<32x64xf32>
    %31 = arith.subf %13, %30 : vector<32x64xf32>
    %32 = vector.broadcast %29 : vector<1x64xf32> to vector<32x64xf32>
    %33 = arith.mulf %32, %31 : vector<32x64xf32>
    %34 = vector.broadcast %28 : vector<32x1xf32> to vector<32x64xf32>
    %35 = arith.mulf %33, %34 : vector<32x64xf32>
    %c0_23 = arith.constant 0 : index
    %c0_24 = arith.constant 0 : index
    %36 = vector.load %arg8[%c0_23, %c0_24] : memref<1x64xf32, #tpu.memory_space<vmem>>, vector<1x64xf32>
    %37 = vector.broadcast %36 : vector<1x64xf32> to vector<32x64xf32>
    %38 = arith.addf %35, %37 : vector<32x64xf32>
    %39 = vector.shape_cast %38 : vector<32x64xf32> to vector<1x32x64xf32>
    %c0_25 = arith.constant 0 : index
    %c0_26 = arith.constant 0 : index
    %c0_27 = arith.constant 0 : index
    %40 = vector.load %arg25[%c0_25, %c0_26, %c0_27] : memref<1x32x64xf32, #tpu.memory_space<vmem>>, vector<1x32x64xf32>
    tpu.vector_store %arg25[%c0_25, %c0_26, %c0_27], %39 {strides = array<i32>} : memref<1x32x64xf32, #tpu.memory_space<vmem>>, vector<1x32x64xf32>,
    %41 = vector.extract_strided_slice %13 {offsets = [0, 0], sizes = [1, 64], strides = [1, 1]} : vector<32x64xf32> to vector<1x64xf32>
    %c0_28 = arith.constant 0 : index
    %c0_29 = arith.constant 0 : index
    %42 = vector.load %arg9[%c0_28, %c0_29] : memref<64x64xf32, #tpu.memory_space<vmem>>, vector<64x64xf32>
    %cst_30 = arith.constant dense<0.000000e+00> : vector<1x64xf32>
    %43 = tpu.matmul %41, %42, %cst_30 {dimension_numbers = #tpu.dot_dimension_numbers<[1], [0], [0], [1], [0, 0, 1, 1], [], []>} : vector<1x64xf32>, vector<64x64xf32>, vector<1x64xf32> -> vector<1x64xf32>
    %c0_31 = arith.constant 0 : index
    %c0_32 = arith.constant 0 : index
    %44 = vector.load %arg10[%c0_31, %c0_32] : memref<1x64xf32, #tpu.memory_space<vmem>>, vector<1x64xf32>
    %45 = arith.addf %43, %44 : vector<1x64xf32>
    %46 = math.tanh %45 : vector<1x64xf32>
    %47 = vector.shape_cast %46 : vector<1x64xf32> to vector<1x1x64xf32>
    %c0_33 = arith.constant 0 : index
    %c0_34 = arith.constant 0 : index
    %c0_35 = arith.constant 0 : index
    %48 = vector.load %arg26[%c0_33, %c0_34, %c0_35] : memref<1x1x64xf32, #tpu.memory_space<vmem>>, vector<1x1x64xf32>
    tpu.vector_store %arg26[%c0_33, %c0_34, %c0_35], %47 {strides = array<i32>} : memref<1x1x64xf32, #tpu.memory_space<vmem>>, vector<1x1x64xf32>,
    %c0_36 = arith.constant 0 : index
    %c0_37 = arith.constant 0 : index
    %c0_38 = arith.constant 0 : index
    %49 = vector.load %arg5[%c0_36, %c0_37, %c0_38] : memref<1x8x64xf32, #tpu.memory_space<vmem>>, vector<1x8x64xf32>
    %50 = vector.shape_cast %49 : vector<1x8x64xf32> to vector<8x64xf32>
    %c0_39 = arith.constant 0 : index
    %c0_40 = arith.constant 0 : index
    %51 = vector.load %arg13[%c0_39, %c0_40] : memref<64x32xf32, #tpu.memory_space<vmem>>, vector<64x32xf32>
    %cst_41 = arith.constant dense<0.000000e+00> : vector<8x32xf32>
    %52 = tpu.matmul %50, %51, %cst_41 {dimension_numbers = #tpu.dot_dimension_numbers<[1], [0], [0], [1], [0, 0, 1, 1], [], []>} : vector<8x64xf32>, vector<64x32xf32>, vector<8x32xf32> -> vector<8x32xf32>
    %c0_42 = arith.constant 0 : index
    %c0_43 = arith.constant 0 : index
    %53 = vector.load %arg14[%c0_42, %c0_43] : memref<1x32xf32, #tpu.memory_space<vmem>>, vector<1x32xf32>
    %54 = vector.broadcast %53 : vector<1x32xf32> to vector<8x32xf32>
    %55 = arith.addf %52, %54 : vector<8x32xf32>
    %cst_44 = arith.constant dense<0.000000e+00> : vector<32x32xf32>
    %56 = tpu.matmul %4, %11, %cst_44 {dimension_numbers = #tpu.dot_dimension_numbers<[1], [0], [0], [1], [0, 0, 1, 1], [], []>} : vector<32x32xf32>, vector<32x32xf32>, vector<32x32xf32> -> vector<32x32xf32>
    %c0_45 = arith.constant 0 : index
    %c0_46 = arith.constant 0 : index
    %57 = vector.load %arg15[%c0_45, %c0_46] : memref<32x32xf32, #tpu.memory_space<vmem>>, vector<32x32xf32>
    %cst_47 = arith.constant dense<0.000000e+00> : vector<32x32xf32>
    %58 = tpu.matmul %56, %57, %cst_47 {dimension_numbers = #tpu.dot_dimension_numbers<[1], [0], [0], [1], [0, 0, 1, 1], [], []>} : vector<32x32xf32>, vector<32x32xf32>, vector<32x32xf32> -> vector<32x32xf32>
    %c0_48 = arith.constant 0 : index
    %c0_49 = arith.constant 0 : index
    %59 = vector.load %arg16[%c0_48, %c0_49] : memref<1x32xf32, #tpu.memory_space<vmem>>, vector<1x32xf32>
    %60 = vector.broadcast %59 : vector<1x32xf32> to vector<32x32xf32>
    %61 = arith.addf %58, %60 : vector<32x32xf32>
    %cst_50 = arith.constant 0.000000e+00 : f32
    %62 = vector.broadcast %cst_50 : f32 to vector<32x32xf32>
    %63 = arith.maximumf %61, %62 : vector<32x32xf32>
    %cst_51 = arith.constant dense<0.000000e+00> : vector<32x32xf32>
    %64 = tpu.matmul %4, %63, %cst_51 {dimension_numbers = #tpu.dot_dimension_numbers<[1], [0], [0], [1], [0, 0, 1, 1], [], []>} : vector<32x32xf32>, vector<32x32xf32>, vector<32x32xf32> -> vector<32x32xf32>
    %c0_52 = arith.constant 0 : index
    %c0_53 = arith.constant 0 : index
    %65 = vector.load %arg17[%c0_52, %c0_53] : memref<32x32xf32, #tpu.memory_space<vmem>>, vector<32x32xf32>
    %cst_54 = arith.constant dense<0.000000e+00> : vector<32x32xf32>
    %66 = tpu.matmul %64, %65, %cst_54 {dimension_numbers = #tpu.dot_dimension_numbers<[1], [0], [0], [1], [0, 0, 1, 1], [], []>} : vector<32x32xf32>, vector<32x32xf32>, vector<32x32xf32> -> vector<32x32xf32>
    %c0_55 = arith.constant 0 : index
    %c0_56 = arith.constant 0 : index
    %67 = vector.load %arg18[%c0_55, %c0_56] : memref<1x32xf32, #tpu.memory_space<vmem>>, vector<1x32xf32>
    %68 = vector.broadcast %67 : vector<1x32xf32> to vector<32x32xf32>
    %69 = arith.addf %66, %68 : vector<32x32xf32>
    %cst_57 = arith.constant 0.000000e+00 : f32
    %70 = vector.broadcast %cst_57 : f32 to vector<32x32xf32>
    %71 = arith.maximumf %69, %70 : vector<32x32xf32>
    %c0_58 = arith.constant 0 : index
    %c0_59 = arith.constant 0 : index
    %72 = vector.load %arg19[%c0_58, %c0_59] : memref<32x32xf32, #tpu.memory_space<vmem>>, vector<32x32xf32>
    %cst_60 = arith.constant dense<0.000000e+00> : vector<32x32xf32>
    %73 = tpu.matmul %71, %72, %cst_60 {dimension_numbers = #tpu.dot_dimension_numbers<[1], [0], [0], [1], [0, 0, 1, 1], [], []>} : vector<32x32xf32>, vector<32x32xf32>, vector<32x32xf32> -> vector<32x32xf32>
    %c0_61 = arith.constant 0 : index
    %c0_62 = arith.constant 0 : index
    %74 = vector.load %arg20[%c0_61, %c0_62] : memref<1x32xf32, #tpu.memory_space<vmem>>, vector<1x32xf32>
    %75 = vector.broadcast %74 : vector<1x32xf32> to vector<32x32xf32>
    %76 = arith.addf %73, %75 : vector<32x32xf32>
    %c0_63 = arith.constant 0 : index
    %c0_64 = arith.constant 0 : index
    %77 = vector.load %arg21[%c0_63, %c0_64] : memref<32x32xf32, #tpu.memory_space<vmem>>, vector<32x32xf32>
    %cst_65 = arith.constant dense<0.000000e+00> : vector<32x32xf32>
    %78 = tpu.matmul %11, %77, %cst_65 {dimension_numbers = #tpu.dot_dimension_numbers<[1], [0], [0], [1], [0, 0, 1, 1], [], []>} : vector<32x32xf32>, vector<32x32xf32>, vector<32x32xf32> -> vector<32x32xf32>
    %c0_66 = arith.constant 0 : index
    %c0_67 = arith.constant 0 : index
    %79 = vector.load %arg22[%c0_66, %c0_67] : memref<1x32xf32, #tpu.memory_space<vmem>>, vector<1x32xf32>
    %80 = vector.broadcast %79 : vector<1x32xf32> to vector<32x32xf32>
    %81 = arith.addf %78, %80 : vector<32x32xf32>
    %cst_68 = arith.constant dense<0.000000e+00> : vector<32x8xf32>
    %82 = tpu.matmul %76, %55, %cst_68 {dimension_numbers = #tpu.dot_dimension_numbers<[1], [1], [0], [0], [0, 0, 1, 0], [], []>} : vector<32x32xf32>, vector<8x32xf32>, vector<32x8xf32> -> vector<32x8xf32>
    %cst_69 = arith.constant 0.176776692 : f32
    %83 = vector.broadcast %cst_69 : f32 to vector<32x8xf32>
    %84 = arith.mulf %82, %83 : vector<32x8xf32>
    %cst_70 = arith.constant dense<0xFF800000> : vector<32xf32>
    %85 = vector.multi_reduction <maximumf>, %84, %cst_70 [1] : vector<32x8xf32> to vector<32xf32>
    %86 = vector.shape_cast %85 : vector<32xf32> to vector<32x1xf32>
    %87 = vector.broadcast %86 : vector<32x1xf32> to vector<32x8xf32>
    %88 = arith.subf %84, %87 : vector<32x8xf32>
    %89 = math.exp %88 : vector<32x8xf32>
    %cst_71 = arith.constant dense<0.000000e+00> : vector<32xf32>
    %90 = vector.multi_reduction <add>, %89, %cst_71 [1] : vector<32x8xf32> to vector<32xf32>
    %91 = vector.shape_cast %90 : vector<32xf32> to vector<32x1xf32>
    %92 = tpu.reciprocal %91 {approx = true} : vector<32x1xf32> -> vector<32x1xf32>
    %93 = vector.broadcast %92 : vector<32x1xf32> to vector<32x8xf32>
    %94 = arith.mulf %89, %93 : vector<32x8xf32>
    %cst_72 = arith.constant dense<0.000000e+00> : vector<32x32xf32>
    %95 = tpu.matmul %94, %55, %cst_72 {dimension_numbers = #tpu.dot_dimension_numbers<[1], [0], [0], [1], [0, 0, 1, 1], [], []>} : vector<32x8xf32>, vector<8x32xf32>, vector<32x32xf32> -> vector<32x32xf32>
    %cst_73 = arith.constant dense<0.000000e+00> : vector<32xf32>
    %96 = vector.multi_reduction <add>, %95, %cst_73 [0] : vector<32x32xf32> to vector<32xf32>
    %97 = vector.shape_cast %96 : vector<32xf32> to vector<1x32xf32>
    %cst_74 = arith.constant dense<0.000000e+00> : vector<32x8xf32>
    %98 = tpu.matmul %81, %55, %cst_74 {dimension_numbers = #tpu.dot_dimension_numbers<[1], [1], [0], [0], [0, 0, 1, 0], [], []>} : vector<32x32xf32>, vector<8x32xf32>, vector<32x8xf32> -> vector<32x8xf32>
    %cst_75 = arith.constant 0.176776692 : f32
    %99 = vector.broadcast %cst_75 : f32 to vector<32x8xf32>
    %100 = arith.mulf %98, %99 : vector<32x8xf32>
    %cst_76 = arith.constant dense<0xFF800000> : vector<32xf32>
    %101 = vector.multi_reduction <maximumf>, %100, %cst_76 [1] : vector<32x8xf32> to vector<32xf32>
    %102 = vector.shape_cast %101 : vector<32xf32> to vector<32x1xf32>
    %103 = vector.broadcast %102 : vector<32x1xf32> to vector<32x8xf32>
    %104 = arith.subf %100, %103 : vector<32x8xf32>
    %105 = math.exp %104 : vector<32x8xf32>
    %cst_77 = arith.constant dense<0.000000e+00> : vector<32xf32>
    %106 = vector.multi_reduction <add>, %105, %cst_77 [1] : vector<32x8xf32> to vector<32xf32>
    %107 = vector.shape_cast %106 : vector<32xf32> to vector<32x1xf32>
    %108 = tpu.reciprocal %107 {approx = true} : vector<32x1xf32> -> vector<32x1xf32>
    %109 = vector.broadcast %108 : vector<32x1xf32> to vector<32x8xf32>
    %110 = arith.mulf %105, %109 : vector<32x8xf32>
    %cst_78 = arith.constant dense<0.000000e+00> : vector<32x32xf32>
    %111 = tpu.matmul %110, %55, %cst_78 {dimension_numbers = #tpu.dot_dimension_numbers<[1], [0], [0], [1], [0, 0, 1, 1], [], []>} : vector<32x8xf32>, vector<8x32xf32>, vector<32x32xf32> -> vector<32x32xf32>
    %cst_79 = arith.constant dense<0.000000e+00> : vector<32xf32>
    %112 = vector.multi_reduction <add>, %111, %cst_79 [0] : vector<32x32xf32> to vector<32xf32>
    %113 = vector.shape_cast %112 : vector<32xf32> to vector<1x32xf32>
    %c0_80 = arith.constant 0 : index
    %c0_81 = arith.constant 0 : index
    %c0_82 = arith.constant 0 : index
    %114 = vector.load %arg6[%c0_80, %c0_81, %c0_82] : memref<1x1x1xf32, #tpu.memory_space<vmem>>, vector<1x1x1xf32>
    %115 = vector.shape_cast %114 : vector<1x1x1xf32> to vector<1x1xf32>
    %116 = tpu.reciprocal %115 {approx = true} : vector<1x1xf32> -> vector<1x1xf32>
    %c0_83 = arith.constant 0 : index
    %c0_84 = arith.constant 0 : index
    %117 = vector.load %arg23[%c0_83, %c0_84] : memref<64x32xf32, #tpu.memory_space<vmem>>, vector<64x32xf32>
    %118 = vector.extract_strided_slice %117 {offsets = [0, 0], sizes = [32, 32], strides = [1, 1]} : vector<64x32xf32> to vector<32x32xf32>
    %cst_85 = arith.constant dense<0.000000e+00> : vector<1x32xf32>
    %119 = tpu.matmul %97, %118, %cst_85 {dimension_numbers = #tpu.dot_dimension_numbers<[1], [0], [0], [1], [0, 0, 1, 1], [], []>} : vector<1x32xf32>, vector<32x32xf32>, vector<1x32xf32> -> vector<1x32xf32>
    %120 = vector.extract_strided_slice %117 {offsets = [32, 0], sizes = [32, 32], strides = [1, 1]} : vector<64x32xf32> to vector<32x32xf32>
    %cst_86 = arith.constant dense<0.000000e+00> : vector<1x32xf32>
    %121 = tpu.matmul %113, %120, %cst_86 {dimension_numbers = #tpu.dot_dimension_numbers<[1], [0], [0], [1], [0, 0, 1, 1], [], []>} : vector<1x32xf32>, vector<32x32xf32>, vector<1x32xf32> -> vector<1x32xf32>
    %122 = arith.addf %119, %121 : vector<1x32xf32>
    %123 = vector.broadcast %116 : vector<1x1xf32> to vector<1x32xf32>
    %124 = arith.mulf %122, %123 : vector<1x32xf32>
    %c0_87 = arith.constant 0 : index
    %c0_88 = arith.constant 0 : index
    %125 = vector.load %arg24[%c0_87, %c0_88] : memref<1x32xf32, #tpu.memory_space<vmem>>, vector<1x32xf32>
    %126 = arith.addf %124, %125 : vector<1x32xf32>
    %127 = vector.shape_cast %126 : vector<1x32xf32> to vector<1x1x32xf32>
    %c0_89 = arith.constant 0 : index
    %c0_90 = arith.constant 0 : index
    %c0_91 = arith.constant 0 : index
    %128 = vector.load %arg27[%c0_89, %c0_90, %c0_91] : memref<1x1x32xf32, #tpu.memory_space<vmem>>, vector<1x1x32xf32>
    tpu.vector_store %arg27[%c0_89, %c0_90, %c0_91], %127 {strides = array<i32>} : memref<1x1x32xf32, #tpu.memory_space<vmem>>, vector<1x1x32xf32>,
    return
  }
  func.func @transform_0(%arg0: i32) -> (i32, i32, i32) {
    %c0_i32 = arith.constant 0 : i32
    %c0_i32_0 = arith.constant 0 : i32
    %c0_i32_1 = arith.constant 0 : i32
    return %arg0, %c0_i32, %c0_i32_0 : i32, i32, i32
  }
  func.func @transform_1(%arg0: i32) -> (i32, i32, i32) {
    %c0_i32 = arith.constant 0 : i32
    %c0_i32_0 = arith.constant 0 : i32
    %c0_i32_1 = arith.constant 0 : i32
    return %arg0, %c0_i32, %c0_i32_0 : i32, i32, i32
  }
  func.func @transform_2(%arg0: i32) -> (i32, i32, i32) {
    %c0_i32 = arith.constant 0 : i32
    %c0_i32_0 = arith.constant 0 : i32
    %c0_i32_1 = arith.constant 0 : i32
    return %arg0, %c0_i32, %c0_i32_0 : i32, i32, i32
  }
  func.func @transform_3(%arg0: i32) -> (i32, i32, i32) {
    %c0_i32 = arith.constant 0 : i32
    %c0_i32_0 = arith.constant 0 : i32
    %c0_i32_1 = arith.constant 0 : i32
    return %arg0, %c0_i32, %c0_i32_0 : i32, i32, i32
  }
  func.func @transform_4(%arg0: i32) -> (i32, i32, i32) {
    %c0_i32 = arith.constant 0 : i32
    %c0_i32_0 = arith.constant 0 : i32
    %c0_i32_1 = arith.constant 0 : i32
    return %arg0, %c0_i32, %c0_i32_0 : i32, i32, i32
  }
  func.func @transform_5(%arg0: i32) -> (i32, i32, i32) {
    %c0_i32 = arith.constant 0 : i32
    %c0_i32_0 = arith.constant 0 : i32
    %c0_i32_1 = arith.constant 0 : i32
    return %arg0, %c0_i32, %c0_i32_0 : i32, i32, i32
  }
  func.func @transform_6(%arg0: i32) -> (i32, i32) {
    %c0_i32 = arith.constant 0 : i32
    %c0_i32_0 = arith.constant 0 : i32
    %c0_i32_1 = arith.constant 0 : i32
    return %c0_i32, %c0_i32_0 : i32, i32
  }
  func.func @transform_7(%arg0: i32) -> (i32, i32) {
    %c0_i32 = arith.constant 0 : i32
    %c0_i32_0 = arith.constant 0 : i32
    %c0_i32_1 = arith.constant 0 : i32
    return %c0_i32, %c0_i32_0 : i32, i32
  }
  func.func @transform_8(%arg0: i32) -> (i32, i32) {
    %c0_i32 = arith.constant 0 : i32
    %c0_i32_0 = arith.constant 0 : i32
    %c0_i32_1 = arith.constant 0 : i32
    return %c0_i32, %c0_i32_0 : i32, i32
  }
  func.func @transform_9(%arg0: i32) -> (i32, i32) {
    %c0_i32 = arith.constant 0 : i32
    %c0_i32_0 = arith.constant 0 : i32
    %c0_i32_1 = arith.constant 0 : i32
    return %c0_i32, %c0_i32_0 : i32, i32
  }
  func.func @transform_10(%arg0: i32) -> (i32, i32) {
    %c0_i32 = arith.constant 0 : i32
    %c0_i32_0 = arith.constant 0 : i32
    %c0_i32_1 = arith.constant 0 : i32
    return %c0_i32, %c0_i32_0 : i32, i32
  }
  func.func @transform_11(%arg0: i32) -> (i32, i32) {
    %c0_i32 = arith.constant 0 : i32
    %c0_i32_0 = arith.constant 0 : i32
    %c0_i32_1 = arith.constant 0 : i32
    return %c0_i32, %c0_i32_0 : i32, i32
  }
  func.func @transform_12(%arg0: i32) -> (i32, i32) {
    %c0_i32 = arith.constant 0 : i32
    %c0_i32_0 = arith.constant 0 : i32
    %c0_i32_1 = arith.constant 0 : i32
    return %c0_i32, %c0_i32_0 : i32, i32
  }
  func.func @transform_13(%arg0: i32) -> (i32, i32) {
    %c0_i32 = arith.constant 0 : i32
    %c0_i32_0 = arith.constant 0 : i32
    %c0_i32_1 = arith.constant 0 : i32
    return %c0_i32, %c0_i32_0 : i32, i32
  }
  func.func @transform_14(%arg0: i32) -> (i32, i32) {
    %c0_i32 = arith.constant 0 : i32
    %c0_i32_0 = arith.constant 0 : i32
    %c0_i32_1 = arith.constant 0 : i32
    return %c0_i32, %c0_i32_0 : i32, i32
  }
  func.func @transform_15(%arg0: i32) -> (i32, i32) {
    %c0_i32 = arith.constant 0 : i32
    %c0_i32_0 = arith.constant 0 : i32
    %c0_i32_1 = arith.constant 0 : i32
    return %c0_i32, %c0_i32_0 : i32, i32
  }
  func.func @transform_16(%arg0: i32) -> (i32, i32) {
    %c0_i32 = arith.constant 0 : i32
    %c0_i32_0 = arith.constant 0 : i32
    %c0_i32_1 = arith.constant 0 : i32
    return %c0_i32, %c0_i32_0 : i32, i32
  }
  func.func @transform_17(%arg0: i32) -> (i32, i32) {
    %c0_i32 = arith.constant 0 : i32
    %c0_i32_0 = arith.constant 0 : i32
    %c0_i32_1 = arith.constant 0 : i32
    return %c0_i32, %c0_i32_0 : i32, i32
  }
  func.func @transform_18(%arg0: i32) -> (i32, i32) {
    %c0_i32 = arith.constant 0 : i32
    %c0_i32_0 = arith.constant 0 : i32
    %c0_i32_1 = arith.constant 0 : i32
    return %c0_i32, %c0_i32_0 : i32, i32
  }
  func.func @transform_19(%arg0: i32) -> (i32, i32) {
    %c0_i32 = arith.constant 0 : i32
    %c0_i32_0 = arith.constant 0 : i32
    %c0_i32_1 = arith.constant 0 : i32
    return %c0_i32, %c0_i32_0 : i32, i32
  }
  func.func @transform_20(%arg0: i32) -> (i32, i32) {
    %c0_i32 = arith.constant 0 : i32
    %c0_i32_0 = arith.constant 0 : i32
    %c0_i32_1 = arith.constant 0 : i32
    return %c0_i32, %c0_i32_0 : i32, i32
  }
  func.func @transform_21(%arg0: i32) -> (i32, i32) {
    %c0_i32 = arith.constant 0 : i32
    %c0_i32_0 = arith.constant 0 : i32
    %c0_i32_1 = arith.constant 0 : i32
    return %c0_i32, %c0_i32_0 : i32, i32
  }
  func.func @transform_22(%arg0: i32) -> (i32, i32) {
    %c0_i32 = arith.constant 0 : i32
    %c0_i32_0 = arith.constant 0 : i32
    %c0_i32_1 = arith.constant 0 : i32
    return %c0_i32, %c0_i32_0 : i32, i32
  }
  func.func @transform_23(%arg0: i32) -> (i32, i32) {
    %c0_i32 = arith.constant 0 : i32
    %c0_i32_0 = arith.constant 0 : i32
    %c0_i32_1 = arith.constant 0 : i32
    return %c0_i32, %c0_i32_0 : i32, i32
  }
  func.func @transform_24(%arg0: i32) -> (i32, i32, i32) {
    %c0_i32 = arith.constant 0 : i32
    %c0_i32_0 = arith.constant 0 : i32
    %c0_i32_1 = arith.constant 0 : i32
    return %arg0, %c0_i32, %c0_i32_0 : i32, i32, i32
  }
  func.func @transform_25(%arg0: i32) -> (i32, i32, i32) {
    %c0_i32 = arith.constant 0 : i32
    %c0_i32_0 = arith.constant 0 : i32
    %c0_i32_1 = arith.constant 0 : i32
    return %arg0, %c0_i32, %c0_i32_0 : i32, i32, i32
  }
  func.func @transform_26(%arg0: i32) -> (i32, i32, i32) {
    %c0_i32 = arith.constant 0 : i32
    %c0_i32_0 = arith.constant 0 : i32
    %c0_i32_1 = arith.constant 0 : i32
    return %arg0, %c0_i32, %c0_i32_0 : i32, i32, i32
  }
}

</mosaic_0001>

<llo_original>
// kernel: tpu_custom_call.1
$region0: #{tpu_custom_call.1}
  #allocation0 [shape = 'u32[]', space=smem, size = 0x4, offset = 0x4, fixed_abs, tag = 'smem constant byte address 0x4 - core index']
  #allocation1 [shape = 'u32[144,128]{1,0:T(1,128)}', space=vmem, size = 0x12000, scoped, tag = 'internal scratch']
  %s0 = inlined_call_operand.vmem [shape: f32[2,32,32], index: 0, kind: input, shape index: {}]
  %s1 = inlined_call_operand.vmem [shape: f32[2,32,32], index: 1, kind: input, shape index: {}]
  %s2 = inlined_call_operand.vmem [shape: f32[2,32,64], index: 2, kind: input, shape index: {}]
  %s3 = inlined_call_operand.vmem [shape: f32[2,32,64], index: 3, kind: input, shape index: {}]
  %s4 = inlined_call_operand.hbm [shape: f32[2,8,64], index: 4, kind: input, shape index: {}]
  %s5 = inlined_call_operand.vmem [shape: f32[2,1,1], index: 5, kind: input, shape index: {}]
  %s6 = inlined_call_operand.vmem [shape: f32[1,64], index: 6, kind: input, shape index: {}]
  %s7 = inlined_call_operand.vmem [shape: f32[1,64], index: 7, kind: input, shape index: {}]
  %s8 = inlined_call_operand.hbm [shape: f32[64,64], index: 8, kind: input, shape index: {}]
  %s9 = inlined_call_operand.hbm [shape: f32[1,64], index: 9, kind: input, shape index: {}]
  %s10 = inlined_call_operand.vmem [shape: f32[64,32], index: 10, kind: input, shape index: {}]
  %s11 = inlined_call_operand.hbm [shape: f32[1,32], index: 11, kind: input, shape index: {}]
  %s12 = inlined_call_operand.vmem [shape: f32[64,32], index: 12, kind: input, shape index: {}]
  %s13 = inlined_call_operand.hbm [shape: f32[1,32], index: 13, kind: input, shape index: {}]
  %s14 = inlined_call_operand.vmem [shape: f32[32,32], index: 14, kind: input, shape index: {}]
  %s15 = inlined_call_operand.hbm [shape: f32[1,32], index: 15, kind: input, shape index: {}]
  %s16 = inlined_call_operand.hbm [shape: f32[32,32], index: 16, kind: input, shape index: {}]
  %s17 = inlined_call_operand.hbm [shape: f32[1,32], index: 17, kind: input, shape index: {}]
  %s18 = inlined_call_operand.vmem [shape: f32[32,32], index: 18, kind: input, shape index: {}]
  %s19 = inlined_call_operand.vmem [shape: f32[1,32], index: 19, kind: input, shape index: {}]
  %s20 = inlined_call_operand.hbm [shape: f32[32,32], index: 20, kind: input, shape index: {}]
  %s21 = inlined_call_operand.vmem [shape: f32[1,32], index: 21, kind: input, shape index: {}]
  %s22 = inlined_call_operand.vmem [shape: f32[64,32], index: 22, kind: input, shape index: {}]
  %s23 = inlined_call_operand.vmem [shape: f32[1,32], index: 23, kind: input, shape index: {}]
  %s24 = inlined_call_operand.hbm [shape: f32[2,32,64], index: 24, kind: output, shape index: {0}]
  %s25 = inlined_call_operand.hbm [shape: f32[2,1,64], index: 25, kind: output, shape index: {1}]
  %s26 = inlined_call_operand.hbm [shape: f32[2,1,32], index: 26, kind: output, shape index: {2}]
  %27 = xla_tuple %s24, %s25, %s26
  %s28 = sld [smem:[#allocation0]]
  $region181: #{tpu_custom_call.1} parent=0
    _
  %s30 = ssub.s32 1, %s28
  %s31 = scalar_select 0, %s30, %s28
  $region1: #{tpu_custom_call.1} parent=0
    #allocation2 [shape = 'u8[8192]{0}', space=vmem, size = 0x2000, scoped, tag = 'input window, operand 4']
    #allocation3 [shape = 's32[2]{0}', space=sflag, size = 0x8, scoped, tag = 'scoped memory for tpu_custom_call.1']
    #allocation4 [shape = 's32[2]{0}', space=sflag, size = 0x8, scoped, tag = 'scoped memory for tpu_custom_call.1']
    #allocation5 [shape = 'u8[32768]{0}', space=vmem, size = 0x8000, scoped, tag = 'input window, operand 8, single buffered']
    #allocation6 [shape = 's32[1]{0}', space=sflag, size = 0x4, scoped, tag = 'scoped memory for tpu_custom_call.1']
    #allocation7 [shape = 'u8[512]{0}', space=vmem, size = 0x400, scoped, tag = 'input window, operand 9, single buffered']
    #allocation8 [shape = 'u8[512]{0}', space=vmem, size = 0x400, scoped, tag = 'input window, operand 11, single buffered']
    #allocation9 [shape = 's32[1]{0}', space=sflag, size = 0x4, scoped, tag = 'scoped memory for tpu_custom_call.1']
    #allocation10 [shape = 'u8[512]{0}', space=vmem, size = 0x400, scoped, tag = 'input window, operand 13, single buffered']
    #allocation11 [shape = 'u8[512]{0}', space=vmem, size = 0x400, scoped, tag = 'input window, operand 15, single buffered']
    #allocation12 [shape = 's32[1]{0}', space=sflag, size = 0x4, scoped, tag = 'scoped memory for tpu_custom_call.1']
    #allocation13 [shape = 'u8[16384]{0}', space=vmem, size = 0x4000, scoped, tag = 'input window, operand 16, single buffered']
    #allocation14 [shape = 'u8[512]{0}', space=vmem, size = 0x400, scoped, tag = 'input window, operand 17, single buffered']
    #allocation15 [shape = 's32[1]{0}', space=sflag, size = 0x4, scoped, tag = 'scoped memory for tpu_custom_call.1']
    #allocation16 [shape = 'u8[16384]{0}', space=vmem, size = 0x4000, scoped, tag = 'input window, operand 20, single buffered']
    #allocation17 [shape = 'u8[32768]{0}', space=vmem, size = 0x8000, scoped, tag = 'output window, operand 0']
    #allocation18 [shape = 'u8[1024]{0}', space=vmem, size = 0x400, scoped, tag = 'output window, operand 1']
    #allocation19 [shape = 's32[2]{0}', space=sflag, size = 0x8, scoped, tag = 'scoped memory for tpu_custom_call.1']
    #allocation20 [shape = 'u8[1024]{0}', space=vmem, size = 0x400, scoped, tag = 'output window, operand 2']
    %32 = vsyncpa [#allocation3], 0
    %s33 = scalar_lea.sflag [#allocation3], 1
    %34 = vsyncpa %s33, 0
    %35 = vsyncpa [#allocation6], 0
    %36 = vsyncpa [#allocation9], 0
    %37 = vsyncpa [#allocation12], 0
    %38 = vsyncpa [#allocation15], 0
    %39 = vsyncpa [#allocation4], 0
    %s40 = scalar_lea.sflag [#allocation4], 1
    %41 = vsyncpa %s40, 0
    %42 = vsyncpa [#allocation19], 0
    %s43 = scalar_lea.sflag [#allocation19], 1
    %44 = vsyncpa %s43, 0
    loop: start=0, step=1, limit=4
    $region2: #{tpu_custom_call.1} parent=1 // loop_pre_header
      _
    $region3: #{tpu_custom_call.1} parent=1 // loop_header
      %s46 = sphi 0, %s50
      %p47 = scmp.ge.s32.totalorder %s46, 4
      %s56 = sphi 0, %s58
      %s59 = sphi 0, %s56
      %s60 = sphi 0, %s59
      %s76 = sphi 0, %s60
      %s82 = sphi 0, %s84
      %s85 = sphi 0, %s82
      %s86 = sphi 0, %s85
      %s102 = sphi 0, %s86
      %s108 = sphi 0, %s110
      %s111 = sphi 0, %s108
      %s112 = sphi 0, %s111
      %s128 = sphi 0, %s112
      %s134 = sphi 0, %s136
      %s137 = sphi 0, %s134
      %s138 = sphi 0, %s137
      %s154 = sphi 0, %s138
      %s160 = sphi 0, %s162
      %s163 = sphi 0, %s160
      %s164 = sphi 0, %s163
      %s180 = sphi 0, %s164
      %s186 = sphi 0, %s188
      %s189 = sphi 0, %s186
      %s190 = sphi 0, %s189
      %s206 = sphi 0, %s190
      %s210 = sphi 0, %s210
      %s212 = sphi 0, %s210
      %s213 = sphi 0, %s212
      %s227 = sphi 0, %s213
      %s231 = sphi 0, %s231
      %s233 = sphi 0, %s231
      %s234 = sphi 0, %s233
      %s248 = sphi 0, %s234
      %s252 = sphi 0, %s252
      %s254 = sphi 0, %s252
      %s255 = sphi 0, %s254
      %s269 = sphi 0, %s255
      %s273 = sphi 0, %s273
      %s275 = sphi 0, %s273
      %s276 = sphi 0, %s275
      %s290 = sphi 0, %s276
      %s294 = sphi 0, %s294
      %s296 = sphi 0, %s294
      %s297 = sphi 0, %s296
      %s311 = sphi 0, %s297
      %s315 = sphi 0, %s315
      %s317 = sphi 0, %s315
      %s318 = sphi 0, %s317
      %s332 = sphi 0, %s318
      %s336 = sphi 0, %s336
      %s338 = sphi 0, %s336
      %s339 = sphi 0, %s338
      %s353 = sphi 0, %s339
      %s357 = sphi 0, %s357
      %s359 = sphi 0, %s357
      %s360 = sphi 0, %s359
      %s374 = sphi 0, %s360
      %s378 = sphi 0, %s378
      %s380 = sphi 0, %s378
      %s381 = sphi 0, %s380
      %s395 = sphi 0, %s381
      %s399 = sphi 0, %s399
      %s401 = sphi 0, %s399
      %s402 = sphi 0, %s401
      %s416 = sphi 0, %s402
      %s420 = sphi 0, %s420
      %s422 = sphi 0, %s420
      %s423 = sphi 0, %s422
      %s437 = sphi 0, %s423
      %s441 = sphi 0, %s441
      %s443 = sphi 0, %s441
      %s444 = sphi 0, %s443
      %s458 = sphi 0, %s444
      %s462 = sphi 0, %s462
      %s464 = sphi 0, %s462
      %s465 = sphi 0, %s464
      %s479 = sphi 0, %s465
      %s483 = sphi 0, %s483
      %s485 = sphi 0, %s483
      %s486 = sphi 0, %s485
      %s500 = sphi 0, %s486
      %s504 = sphi 0, %s504
      %s506 = sphi 0, %s504
      %s507 = sphi 0, %s506
      %s521 = sphi 0, %s507
      %s525 = sphi 0, %s525
      %s527 = sphi 0, %s525
      %s528 = sphi 0, %s527
      %s542 = sphi 0, %s528
      %s546 = sphi 0, %s546
      %s548 = sphi 0, %s546
      %s549 = sphi 0, %s548
      %s563 = sphi 0, %s549
      %s567 = sphi 0, %s567
      %s569 = sphi 0, %s567
      %s570 = sphi 0, %s569
      %s584 = sphi 0, %s570
      %s590 = sphi 0, %s592
      %s593 = sphi 0, %s590
      %s594 = sphi 0, %s593
      %s610 = sphi 0, %s594
      %s616 = sphi 0, %s618
      %s619 = sphi 0, %s616
      %s620 = sphi 0, %s619
      %s636 = sphi 0, %s620
      %s642 = sphi 0, %s644
      %s645 = sphi 0, %s642
      %s646 = sphi 0, %s645
      %s662 = sphi 0, %s646
    $region4: #{tpu_custom_call.1} parent=1 // loop_header_branch
      %49 = sbr.rel (%p47) target = $region8
    $region5: #{tpu_custom_call.1} parent=1 // loop_body
      %s51 = ssub.s32 %s46, 1
      %s52 = ssub.s32 %s46, 2
      %s53 = sadd.s32 %s46, 1
      %s54 = ssub.s32 %s46, %s53
      %p55 = scmp.eq.s32.totalorder %s54, 0
      %s57 = sadd.s32 %s56, 1
      %s58 = scalar_select %p55, %s56, %s57
      %p61 = pneg %p55
      %p62 = scmp.eq.s32.totalorder %s46, 1
      %p63 = por %p61, %p62
      %p64 = scmp.ne.s32.totalorder %s56, %s59
      %p65 = scmp.eq.s32.totalorder %s46, 0
      %p66 = por %p64, %p65
      %p67 = scmp.ne.s32.totalorder %s56, %s59
      %p68 = scmp.eq.s32.totalorder %s51, 1
      %p69 = por %p67, %p68
      %p70 = scmp.ne.s32.totalorder %s59, %s60
      %p71 = scmp.eq.s32.totalorder %s51, 0
      %p72 = por %p70, %p71
      %p73 = scmp.ne.s32.totalorder %s59, %s60
      %p74 = scmp.eq.s32.totalorder %s52, 1
      %p75 = por %p73, %p74
      %p77 = scmp.ne.s32.totalorder %s60, %s76
      %p78 = scmp.eq.s32.totalorder %s52, 0
      %p79 = por %p77, %p78
      %s80 = ssub.s32 %s46, %s53
      %p81 = scmp.eq.s32.totalorder %s80, 0
      %s83 = sadd.s32 %s82, 1
      %s84 = scalar_select %p81, %s82, %s83
      %p87 = pneg %p81
      %p88 = scmp.eq.s32.totalorder %s46, 1
      %p89 = por %p87, %p88
      %p90 = scmp.ne.s32.totalorder %s82, %s85
      %p91 = scmp.eq.s32.totalorder %s46, 0
      %p92 = por %p90, %p91
      %p93 = scmp.ne.s32.totalorder %s82, %s85
      %p94 = scmp.eq.s32.totalorder %s51, 1
      %p95 = por %p93, %p94
      %p96 = scmp.ne.s32.totalorder %s85, %s86
      %p97 = scmp.eq.s32.totalorder %s51, 0
      %p98 = por %p96, %p97
      %p99 = scmp.ne.s32.totalorder %s85, %s86
      %p100 = scmp.eq.s32.totalorder %s52, 1
      %p101 = por %p99, %p100
      %p103 = scmp.ne.s32.totalorder %s86, %s102
      %p104 = scmp.eq.s32.totalorder %s52, 0
      %p105 = por %p103, %p104
      %s106 = ssub.s32 %s46, %s53
      %p107 = scmp.eq.s32.totalorder %s106, 0
      %s109 = sadd.s32 %s108, 1
      %s110 = scalar_select %p107, %s108, %s109
      %p113 = pneg %p107
      %p114 = scmp.eq.s32.totalorder %s46, 1
      %p115 = por %p113, %p114
      %p116 = scmp.ne.s32.totalorder %s108, %s111
      %p117 = scmp.eq.s32.totalorder %s46, 0
      %p118 = por %p116, %p117
      %p119 = scmp.ne.s32.totalorder %s108, %s111
      %p120 = scmp.eq.s32.totalorder %s51, 1
      %p121 = por %p119, %p120
      %p122 = scmp.ne.s32.totalorder %s111, %s112
      %p123 = scmp.eq.s32.totalorder %s51, 0
      %p124 = por %p122, %p123
      %p125 = scmp.ne.s32.totalorder %s111, %s112
      %p126 = scmp.eq.s32.totalorder %s52, 1
      %p127 = por %p125, %p126
      %p129 = scmp.ne.s32.totalorder %s112, %s128
      %p130 = scmp.eq.s32.totalorder %s52, 0
      %p131 = por %p129, %p130
      %s132 = ssub.s32 %s46, %s53
      %p133 = scmp.eq.s32.totalorder %s132, 0
      %s135 = sadd.s32 %s134, 1
      %s136 = scalar_select %p133, %s134, %s135
      %p139 = pneg %p133
      %p140 = scmp.eq.s32.totalorder %s46, 1
      %p141 = por %p139, %p140
      %p142 = scmp.ne.s32.totalorder %s134, %s137
      %p143 = scmp.eq.s32.totalorder %s46, 0
      %p144 = por %p142, %p143
      %p145 = scmp.ne.s32.totalorder %s134, %s137
      %p146 = scmp.eq.s32.totalorder %s51, 1
      %p147 = por %p145, %p146
      %p148 = scmp.ne.s32.totalorder %s137, %s138
      %p149 = scmp.eq.s32.totalorder %s51, 0
      %p150 = por %p148, %p149
      %p151 = scmp.ne.s32.totalorder %s137, %s138
      %p152 = scmp.eq.s32.totalorder %s52, 1
      %p153 = por %p151, %p152
      %p155 = scmp.ne.s32.totalorder %s138, %s154
      %p156 = scmp.eq.s32.totalorder %s52, 0
      %p157 = por %p155, %p156
      %s158 = ssub.s32 %s46, %s53
      %p159 = scmp.eq.s32.totalorder %s158, 0
      %s161 = sadd.s32 %s160, 1
      %s162 = scalar_select %p159, %s160, %s161
      %p165 = pneg %p159
      %p166 = scmp.eq.s32.totalorder %s46, 1
      %p167 = por %p165, %p166
      %p168 = scmp.ne.s32.totalorder %s160, %s163
      %p169 = scmp.eq.s32.totalorder %s46, 0
      %p170 = por %p168, %p169
      %p171 = scmp.ne.s32.totalorder %s160, %s163
      %p172 = scmp.eq.s32.totalorder %s51, 1
      %p173 = por %p171, %p172
      %p174 = scmp.ne.s32.totalorder %s163, %s164
      %p175 = scmp.eq.s32.totalorder %s51, 0
      %p176 = por %p174, %p175
      %p177 = scmp.ne.s32.totalorder %s163, %s164
      %p178 = scmp.eq.s32.totalorder %s52, 1
      %p179 = por %p177, %p178
      %p181 = scmp.ne.s32.totalorder %s164, %s180
      %p182 = scmp.eq.s32.totalorder %s52, 0
      %p183 = por %p181, %p182
      %s184 = ssub.s32 %s46, %s53
      %p185 = scmp.eq.s32.totalorder %s184, 0
      %s187 = sadd.s32 %s186, 1
      %s188 = scalar_select %p185, %s186, %s187
      %p191 = pneg %p185
      %p192 = scmp.eq.s32.totalorder %s46, 1
      %p193 = por %p191, %p192
      %p194 = scmp.ne.s32.totalorder %s186, %s189
      %p195 = scmp.eq.s32.totalorder %s46, 0
      %p196 = por %p194, %p195
      %p197 = scmp.ne.s32.totalorder %s186, %s189
      %p198 = scmp.eq.s32.totalorder %s51, 1
      %p199 = por %p197, %p198
      %p200 = scmp.ne.s32.totalorder %s189, %s190
      %p201 = scmp.eq.s32.totalorder %s51, 0
      %p202 = por %p200, %p201
      %p203 = scmp.ne.s32.totalorder %s189, %s190
      %p204 = scmp.eq.s32.totalorder %s52, 1
      %p205 = por %p203, %p204
      %p207 = scmp.ne.s32.totalorder %s190, %s206
      %p208 = scmp.eq.s32.totalorder %s52, 0
      %p209 = por %p207, %p208
      %s211 = sadd.s32 %s210, 1
      %p214 = scmp.eq.s32.totalorder %s46, 1
      %p215 = scmp.ne.s32.totalorder %s210, %s212
      %p216 = scmp.eq.s32.totalorder %s46, 0
      %p217 = por %p215, %p216
      %p218 = scmp.ne.s32.totalorder %s210, %s212
      %p219 = scmp.eq.s32.totalorder %s51, 1
      %p220 = por %p218, %p219
      %p221 = scmp.ne.s32.totalorder %s212, %s213
      %p222 = scmp.eq.s32.totalorder %s51, 0
      %p223 = por %p221, %p222
      %p224 = scmp.ne.s32.totalorder %s212, %s213
      %p225 = scmp.eq.s32.totalorder %s52, 1
      %p226 = por %p224, %p225
      %p228 = scmp.ne.s32.totalorder %s213, %s227
      %p229 = scmp.eq.s32.totalorder %s52, 0
      %p230 = por %p228, %p229
      %s232 = sadd.s32 %s231, 1
      %p235 = scmp.eq.s32.totalorder %s46, 1
      %p236 = scmp.ne.s32.totalorder %s231, %s233
      %p237 = scmp.eq.s32.totalorder %s46, 0
      %p238 = por %p236, %p237
      %p239 = scmp.ne.s32.totalorder %s231, %s233
      %p240 = scmp.eq.s32.totalorder %s51, 1
      %p241 = por %p239, %p240
      %p242 = scmp.ne.s32.totalorder %s233, %s234
      %p243 = scmp.eq.s32.totalorder %s51, 0
      %p244 = por %p242, %p243
      %p245 = scmp.ne.s32.totalorder %s233, %s234
      %p246 = scmp.eq.s32.totalorder %s52, 1
      %p247 = por %p245, %p246
      %p249 = scmp.ne.s32.totalorder %s234, %s248
      %p250 = scmp.eq.s32.totalorder %s52, 0
      %p251 = por %p249, %p250
      %s253 = sadd.s32 %s252, 1
      %p256 = scmp.eq.s32.totalorder %s46, 1
      %p257 = scmp.ne.s32.totalorder %s252, %s254
      %p258 = scmp.eq.s32.totalorder %s46, 0
      %p259 = por %p257, %p258
      %p260 = scmp.ne.s32.totalorder %s252, %s254
      %p261 = scmp.eq.s32.totalorder %s51, 1
      %p262 = por %p260, %p261
      %p263 = scmp.ne.s32.totalorder %s254, %s255
      %p264 = scmp.eq.s32.totalorder %s51, 0
      %p265 = por %p263, %p264
      %p266 = scmp.ne.s32.totalorder %s254, %s255
      %p267 = scmp.eq.s32.totalorder %s52, 1
      %p268 = por %p266, %p267
      %p270 = scmp.ne.s32.totalorder %s255, %s269
      %p271 = scmp.eq.s32.totalorder %s52, 0
      %p272 = por %p270, %p271
      %s274 = sadd.s32 %s273, 1
      %p277 = scmp.eq.s32.totalorder %s46, 1
      %p278 = scmp.ne.s32.totalorder %s273, %s275
      %p279 = scmp.eq.s32.totalorder %s46, 0
      %p280 = por %p278, %p279
      %p281 = scmp.ne.s32.totalorder %s273, %s275
      %p282 = scmp.eq.s32.totalorder %s51, 1
      %p283 = por %p281, %p282
      %p284 = scmp.ne.s32.totalorder %s275, %s276
      %p285 = scmp.eq.s32.totalorder %s51, 0
      %p286 = por %p284, %p285
      %p287 = scmp.ne.s32.totalorder %s275, %s276
      %p288 = scmp.eq.s32.totalorder %s52, 1
      %p289 = por %p287, %p288
      %p291 = scmp.ne.s32.totalorder %s276, %s290
      %p292 = scmp.eq.s32.totalorder %s52, 0
      %p293 = por %p291, %p292
      %s295 = sadd.s32 %s294, 1
      %p298 = scmp.eq.s32.totalorder %s46, 1
      %p299 = scmp.ne.s32.totalorder %s294, %s296
      %p300 = scmp.eq.s32.totalorder %s46, 0
      %p301 = por %p299, %p300
      %p302 = scmp.ne.s32.totalorder %s294, %s296
      %p303 = scmp.eq.s32.totalorder %s51, 1
      %p304 = por %p302, %p303
      %p305 = scmp.ne.s32.totalorder %s296, %s297
      %p306 = scmp.eq.s32.totalorder %s51, 0
      %p307 = por %p305, %p306
      %p308 = scmp.ne.s32.totalorder %s296, %s297
      %p309 = scmp.eq.s32.totalorder %s52, 1
      %p310 = por %p308, %p309
      %p312 = scmp.ne.s32.totalorder %s297, %s311
      %p313 = scmp.eq.s32.totalorder %s52, 0
      %p314 = por %p312, %p313
      %s316 = sadd.s32 %s315, 1
      %p319 = scmp.eq.s32.totalorder %s46, 1
      %p320 = scmp.ne.s32.totalorder %s315, %s317
      %p321 = scmp.eq.s32.totalorder %s46, 0
      %p322 = por %p320, %p321
      %p323 = scmp.ne.s32.totalorder %s315, %s317
      %p324 = scmp.eq.s32.totalorder %s51, 1
      %p325 = por %p323, %p324
      %p326 = scmp.ne.s32.totalorder %s317, %s318
      %p327 = scmp.eq.s32.totalorder %s51, 0
      %p328 = por %p326, %p327
      %p329 = scmp.ne.s32.totalorder %s317, %s318
      %p330 = scmp.eq.s32.totalorder %s52, 1
      %p331 = por %p329, %p330
      %p333 = scmp.ne.s32.totalorder %s318, %s332
      %p334 = scmp.eq.s32.totalorder %s52, 0
      %p335 = por %p333, %p334
      %s337 = sadd.s32 %s336, 1
      %p340 = scmp.eq.s32.totalorder %s46, 1
      %p341 = scmp.ne.s32.totalorder %s336, %s338
      %p342 = scmp.eq.s32.totalorder %s46, 0
      %p343 = por %p341, %p342
      %p344 = scmp.ne.s32.totalorder %s336, %s338
      %p345 = scmp.eq.s32.totalorder %s51, 1
      %p346 = por %p344, %p345
      %p347 = scmp.ne.s32.totalorder %s338, %s339
      %p348 = scmp.eq.s32.totalorder %s51, 0
      %p349 = por %p347, %p348
      %p350 = scmp.ne.s32.totalorder %s338, %s339
      %p351 = scmp.eq.s32.totalorder %s52, 1
      %p352 = por %p350, %p351
      %p354 = scmp.ne.s32.totalorder %s339, %s353
      %p355 = scmp.eq.s32.totalorder %s52, 0
      %p356 = por %p354, %p355
      %s358 = sadd.s32 %s357, 1
      %p361 = scmp.eq.s32.totalorder %s46, 1
      %p362 = scmp.ne.s32.totalorder %s357, %s359
      %p363 = scmp.eq.s32.totalorder %s46, 0
      %p364 = por %p362, %p363
      %p365 = scmp.ne.s32.totalorder %s357, %s359
      %p366 = scmp.eq.s32.totalorder %s51, 1
      %p367 = por %p365, %p366
      %p368 = scmp.ne.s32.totalorder %s359, %s360
      %p369 = scmp.eq.s32.totalorder %s51, 0
      %p370 = por %p368, %p369
      %p371 = scmp.ne.s32.totalorder %s359, %s360
      %p372 = scmp.eq.s32.totalorder %s52, 1
      %p373 = por %p371, %p372
      %p375 = scmp.ne.s32.totalorder %s360, %s374
      %p376 = scmp.eq.s32.totalorder %s52, 0
      %p377 = por %p375, %p376
      %s379 = sadd.s32 %s378, 1
      %p382 = scmp.eq.s32.totalorder %s46, 1
      %p383 = scmp.ne.s32.totalorder %s378, %s380
      %p384 = scmp.eq.s32.totalorder %s46, 0
      %p385 = por %p383, %p384
      %p386 = scmp.ne.s32.totalorder %s378, %s380
      %p387 = scmp.eq.s32.totalorder %s51, 1
      %p388 = por %p386, %p387
      %p389 = scmp.ne.s32.totalorder %s380, %s381
      %p390 = scmp.eq.s32.totalorder %s51, 0
      %p391 = por %p389, %p390
      %p392 = scmp.ne.s32.totalorder %s380, %s381
      %p393 = scmp.eq.s32.totalorder %s52, 1
      %p394 = por %p392, %p393
      %p396 = scmp.ne.s32.totalorder %s381, %s395
      %p397 = scmp.eq.s32.totalorder %s52, 0
      %p398 = por %p396, %p397
      %s400 = sadd.s32 %s399, 1
      %p403 = scmp.eq.s32.totalorder %s46, 1
      %p404 = scmp.ne.s32.totalorder %s399, %s401
      %p405 = scmp.eq.s32.totalorder %s46, 0
      %p406 = por %p404, %p405
      %p407 = scmp.ne.s32.totalorder %s399, %s401
      %p408 = scmp.eq.s32.totalorder %s51, 1
      %p409 = por %p407, %p408
      %p410 = scmp.ne.s32.totalorder %s401, %s402
      %p411 = scmp.eq.s32.totalorder %s51, 0
      %p412 = por %p410, %p411
      %p413 = scmp.ne.s32.totalorder %s401, %s402
      %p414 = scmp.eq.s32.totalorder %s52, 1
      %p415 = por %p413, %p414
      %p417 = scmp.ne.s32.totalorder %s402, %s416
      %p418 = scmp.eq.s32.totalorder %s52, 0
      %p419 = por %p417, %p418
      %s421 = sadd.s32 %s420, 1
      %p424 = scmp.eq.s32.totalorder %s46, 1
      %p425 = scmp.ne.s32.totalorder %s420, %s422
      %p426 = scmp.eq.s32.totalorder %s46, 0
      %p427 = por %p425, %p426
      %p428 = scmp.ne.s32.totalorder %s420, %s422
      %p429 = scmp.eq.s32.totalorder %s51, 1
      %p430 = por %p428, %p429
      %p431 = scmp.ne.s32.totalorder %s422, %s423
      %p432 = scmp.eq.s32.totalorder %s51, 0
      %p433 = por %p431, %p432
      %p434 = scmp.ne.s32.totalorder %s422, %s423
      %p435 = scmp.eq.s32.totalorder %s52, 1
      %p436 = por %p434, %p435
      %p438 = scmp.ne.s32.totalorder %s423, %s437
      %p439 = scmp.eq.s32.totalorder %s52, 0
      %p440 = por %p438, %p439
      %s442 = sadd.s32 %s441, 1
      %p445 = scmp.eq.s32.totalorder %s46, 1
      %p446 = scmp.ne.s32.totalorder %s441, %s443
      %p447 = scmp.eq.s32.totalorder %s46, 0
      %p448 = por %p446, %p447
      %p449 = scmp.ne.s32.totalorder %s441, %s443
      %p450 = scmp.eq.s32.totalorder %s51, 1
      %p451 = por %p449, %p450
      %p452 = scmp.ne.s32.totalorder %s443, %s444
      %p453 = scmp.eq.s32.totalorder %s51, 0
      %p454 = por %p452, %p453
      %p455 = scmp.ne.s32.totalorder %s443, %s444
      %p456 = scmp.eq.s32.totalorder %s52, 1
      %p457 = por %p455, %p456
      %p459 = scmp.ne.s32.totalorder %s444, %s458
      %p460 = scmp.eq.s32.totalorder %s52, 0
      %p461 = por %p459, %p460
      %s463 = sadd.s32 %s462, 1
      %p466 = scmp.eq.s32.totalorder %s46, 1
      %p467 = scmp.ne.s32.totalorder %s462, %s464
      %p468 = scmp.eq.s32.totalorder %s46, 0
      %p469 = por %p467, %p468
      %p470 = scmp.ne.s32.totalorder %s462, %s464
      %p471 = scmp.eq.s32.totalorder %s51, 1
      %p472 = por %p470, %p471
      %p473 = scmp.ne.s32.totalorder %s464, %s465
      %p474 = scmp.eq.s32.totalorder %s51, 0
      %p475 = por %p473, %p474
      %p476 = scmp.ne.s32.totalorder %s464, %s465
      %p477 = scmp.eq.s32.totalorder %s52, 1
      %p478 = por %p476, %p477
      %p480 = scmp.ne.s32.totalorder %s465, %s479
      %p481 = scmp.eq.s32.totalorder %s52, 0
      %p482 = por %p480, %p481
      %s484 = sadd.s32 %s483, 1
      %p487 = scmp.eq.s32.totalorder %s46, 1
      %p488 = scmp.ne.s32.totalorder %s483, %s485
      %p489 = scmp.eq.s32.totalorder %s46, 0
      %p490 = por %p488, %p489
      %p491 = scmp.ne.s32.totalorder %s483, %s485
      %p492 = scmp.eq.s32.totalorder %s51, 1
      %p493 = por %p491, %p492
      %p494 = scmp.ne.s32.totalorder %s485, %s486
      %p495 = scmp.eq.s32.totalorder %s51, 0
      %p496 = por %p494, %p495
      %p497 = scmp.ne.s32.totalorder %s485, %s486
      %p498 = scmp.eq.s32.totalorder %s52, 1
      %p499 = por %p497, %p498
      %p501 = scmp.ne.s32.totalorder %s486, %s500
      %p502 = scmp.eq.s32.totalorder %s52, 0
      %p503 = por %p501, %p502
      %s505 = sadd.s32 %s504, 1
      %p508 = scmp.eq.s32.totalorder %s46, 1
      %p509 = scmp.ne.s32.totalorder %s504, %s506
      %p510 = scmp.eq.s32.totalorder %s46, 0
      %p511 = por %p509, %p510
      %p512 = scmp.ne.s32.totalorder %s504, %s506
      %p513 = scmp.eq.s32.totalorder %s51, 1
      %p514 = por %p512, %p513
      %p515 = scmp.ne.s32.totalorder %s506, %s507
      %p516 = scmp.eq.s32.totalorder %s51, 0
      %p517 = por %p515, %p516
      %p518 = scmp.ne.s32.totalorder %s506, %s507
      %p519 = scmp.eq.s32.totalorder %s52, 1
      %p520 = por %p518, %p519
      %p522 = scmp.ne.s32.totalorder %s507, %s521
      %p523 = scmp.eq.s32.totalorder %s52, 0
      %p524 = por %p522, %p523
      %s526 = sadd.s32 %s525, 1
      %p529 = scmp.eq.s32.totalorder %s46, 1
      %p530 = scmp.ne.s32.totalorder %s525, %s527
      %p531 = scmp.eq.s32.totalorder %s46, 0
      %p532 = por %p530, %p531
      %p533 = scmp.ne.s32.totalorder %s525, %s527
      %p534 = scmp.eq.s32.totalorder %s51, 1
      %p535 = por %p533, %p534
      %p536 = scmp.ne.s32.totalorder %s527, %s528
      %p537 = scmp.eq.s32.totalorder %s51, 0
      %p538 = por %p536, %p537
      %p539 = scmp.ne.s32.totalorder %s527, %s528
      %p540 = scmp.eq.s32.totalorder %s52, 1
      %p541 = por %p539, %p540
      %p543 = scmp.ne.s32.totalorder %s528, %s542
      %p544 = scmp.eq.s32.totalorder %s52, 0
      %p545 = por %p543, %p544
      %s547 = sadd.s32 %s546, 1
      %p550 = scmp.eq.s32.totalorder %s46, 1
      %p551 = scmp.ne.s32.totalorder %s546, %s548
      %p552 = scmp.eq.s32.totalorder %s46, 0
      %p553 = por %p551, %p552
      %p554 = scmp.ne.s32.totalorder %s546, %s548
      %p555 = scmp.eq.s32.totalorder %s51, 1
      %p556 = por %p554, %p555
      %p557 = scmp.ne.s32.totalorder %s548, %s549
      %p558 = scmp.eq.s32.totalorder %s51, 0
      %p559 = por %p557, %p558
      %p560 = scmp.ne.s32.totalorder %s548, %s549
      %p561 = scmp.eq.s32.totalorder %s52, 1
      %p562 = por %p560, %p561
      %p564 = scmp.ne.s32.totalorder %s549, %s563
      %p565 = scmp.eq.s32.totalorder %s52, 0
      %p566 = por %p564, %p565
      %s568 = sadd.s32 %s567, 1
      %p571 = scmp.eq.s32.totalorder %s46, 1
      %p572 = scmp.ne.s32.totalorder %s567, %s569
      %p573 = scmp.eq.s32.totalorder %s46, 0
      %p574 = por %p572, %p573
      %p575 = scmp.ne.s32.totalorder %s567, %s569
      %p576 = scmp.eq.s32.totalorder %s51, 1
      %p577 = por %p575, %p576
      %p578 = scmp.ne.s32.totalorder %s569, %s570
      %p579 = scmp.eq.s32.totalorder %s51, 0
      %p580 = por %p578, %p579
      %p581 = scmp.ne.s32.totalorder %s569, %s570
      %p582 = scmp.eq.s32.totalorder %s52, 1
      %p583 = por %p581, %p582
      %p585 = scmp.ne.s32.totalorder %s570, %s584
      %p586 = scmp.eq.s32.totalorder %s52, 0
      %p587 = por %p585, %p586
      %s588 = ssub.s32 %s46, %s53
      %p589 = scmp.eq.s32.totalorder %s588, 0
      %s591 = sadd.s32 %s590, 1
      %s592 = scalar_select %p589, %s590, %s591
      %p595 = pneg %p589
      %p596 = scmp.eq.s32.totalorder %s46, 1
      %p597 = por %p595, %p596
      %p598 = scmp.ne.s32.totalorder %s590, %s593
      %p599 = scmp.eq.s32.totalorder %s46, 0
      %p600 = por %p598, %p599
      %p601 = scmp.ne.s32.totalorder %s590, %s593
      %p602 = scmp.eq.s32.totalorder %s51, 1
      %p603 = por %p601, %p602
      %p604 = scmp.ne.s32.totalorder %s593, %s594
      %p605 = scmp.eq.s32.totalorder %s51, 0
      %p606 = por %p604, %p605
      %p607 = scmp.ne.s32.totalorder %s593, %s594
      %p608 = scmp.eq.s32.totalorder %s52, 1
      %p609 = por %p607, %p608
      %p611 = scmp.ne.s32.totalorder %s594, %s610
      %p612 = scmp.eq.s32.totalorder %s52, 0
      %p613 = por %p611, %p612
      %s614 = ssub.s32 %s46, %s53
      %p615 = scmp.eq.s32.totalorder %s614, 0
      %s617 = sadd.s32 %s616, 1
      %s618 = scalar_select %p615, %s616, %s617
      %p621 = pneg %p615
      %p622 = scmp.eq.s32.totalorder %s46, 1
      %p623 = por %p621, %p622
      %p624 = scmp.ne.s32.totalorder %s616, %s619
      %p625 = scmp.eq.s32.totalorder %s46, 0
      %p626 = por %p624, %p625
      %p627 = scmp.ne.s32.totalorder %s616, %s619
      %p628 = scmp.eq.s32.totalorder %s51, 1
      %p629 = por %p627, %p628
      %p630 = scmp.ne.s32.totalorder %s619, %s620
      %p631 = scmp.eq.s32.totalorder %s51, 0
      %p632 = por %p630, %p631
      %p633 = scmp.ne.s32.totalorder %s619, %s620
      %p634 = scmp.eq.s32.totalorder %s52, 1
      %p635 = por %p633, %p634
      %p637 = scmp.ne.s32.totalorder %s620, %s636
      %p638 = scmp.eq.s32.totalorder %s52, 0
      %p639 = por %p637, %p638
      %s640 = ssub.s32 %s46, %s53
      %p641 = scmp.eq.s32.totalorder %s640, 0
      %s643 = sadd.s32 %s642, 1
      %s644 = scalar_select %p641, %s642, %s643
      %p647 = pneg %p641
      %p648 = scmp.eq.s32.totalorder %s46, 1
      %p649 = por %p647, %p648
      %p650 = scmp.ne.s32.totalorder %s642, %s645
      %p651 = scmp.eq.s32.totalorder %s46, 0
      %p652 = por %p650, %p651
      %p653 = scmp.ne.s32.totalorder %s642, %s645
      %p654 = scmp.eq.s32.totalorder %s51, 1
      %p655 = por %p653, %p654
      %p656 = scmp.ne.s32.totalorder %s645, %s646
      %p657 = scmp.eq.s32.totalorder %s51, 0
      %p658 = por %p656, %p657
      %p659 = scmp.ne.s32.totalorder %s645, %s646
      %p660 = scmp.eq.s32.totalorder %s52, 1
      %p661 = por %p659, %p660
      %p663 = scmp.ne.s32.totalorder %s646, %s662
      %p664 = scmp.eq.s32.totalorder %s52, 0
      %p665 = por %p663, %p664
      %p666 = scmp.le.s32.totalorder 1, %s46
      %p667 = scmp.lt.s32.totalorder %s46, 3
      %p668 = pnand %p666, %p667
      %p669 = pneg %p668
      // Predicated region
      $region9: #{tpu_custom_call.1} parent=5 // pred_check
        _
      $region10: #{tpu_custom_call.1} parent=5 // pred_check_branch
        %671 = sbr.rel (%p668) target = $region12
      $region11: #{tpu_custom_call.1} parent=5 // pred_region
        %s672 = ssub.s32 %s46, 1
        // Predicated region
        $region13: #{tpu_custom_call.1} parent=11 // pred_check
          %p673 = pneg %p223
        $region14: #{tpu_custom_call.1} parent=11 // pred_check_branch
          %675 = sbr.rel (%p673) target = $region16
        $region15: #{tpu_custom_call.1} parent=11 // pred_region
          _
        $region16: #{tpu_custom_call.1} parent=11 // pred_fallthru
          _
        // Predicated region
        $region17: #{tpu_custom_call.1} parent=11 // pred_check
          %p676 = pneg %p244
        $region18: #{tpu_custom_call.1} parent=11 // pred_check_branch
          %678 = sbr.rel (%p676) target = $region20
        $region19: #{tpu_custom_call.1} parent=11 // pred_region
          _
        $region20: #{tpu_custom_call.1} parent=11 // pred_fallthru
          _
        // Predicated region
        $region21: #{tpu_custom_call.1} parent=11 // pred_check
          %p679 = pneg %p265
        $region22: #{tpu_custom_call.1} parent=11 // pred_check_branch
          %681 = sbr.rel (%p679) target = $region24
        $region23: #{tpu_custom_call.1} parent=11 // pred_region
          %s683 = ssub.s32 1024, 1024
          %684 = vsyncadd [#allocation6], %s683
          %s685 = sshll.u32 [#allocation5], 4
          %s686 = int_to_ptr.vmem [resolvable:$true] %s685
          %691 = dma.hbm_to_vmem [thread:$0]  %s8, 1024, %s686, [#allocation6], 128, 128, 8
        $region24: #{tpu_custom_call.1} parent=11 // pred_fallthru
          _
        // Predicated region
        $region25: #{tpu_custom_call.1} parent=11 // pred_check
          %p692 = pneg %p286
        $region26: #{tpu_custom_call.1} parent=11 // pred_check_branch
          %694 = sbr.rel (%p692) target = $region28
        $region27: #{tpu_custom_call.1} parent=11 // pred_region
          %s696 = ssub.s32 16, 16
          %697 = vsyncadd [#allocation6], %s696
          %s699 = sshll.u32 [#allocation7], 4
          %s700 = int_to_ptr.vmem [resolvable:$true] %s699
          %702 = dma.hbm_to_vmem [thread:$0]  %s9, 16, %s700, [#allocation6]
        $region28: #{tpu_custom_call.1} parent=11 // pred_fallthru
          _
        // Predicated region
        $region29: #{tpu_custom_call.1} parent=11 // pred_check
          %p703 = pneg %p307
        $region30: #{tpu_custom_call.1} parent=11 // pred_check_branch
          %705 = sbr.rel (%p703) target = $region32
        $region31: #{tpu_custom_call.1} parent=11 // pred_region
          _
        $region32: #{tpu_custom_call.1} parent=11 // pred_fallthru
          _
        // Predicated region
        $region33: #{tpu_custom_call.1} parent=11 // pred_check
          %p706 = pneg %p328
        $region34: #{tpu_custom_call.1} parent=11 // pred_check_branch
          %708 = sbr.rel (%p706) target = $region36
        $region35: #{tpu_custom_call.1} parent=11 // pred_region
          %s710 = ssub.s32 16, 16
          %711 = vsyncadd [#allocation9], %s710
          %s713 = sshll.u32 [#allocation8], 4
          %s714 = int_to_ptr.vmem [resolvable:$true] %s713
          %716 = dma.hbm_to_vmem [thread:$0]  %s11, 16, %s714, [#allocation9]
        $region36: #{tpu_custom_call.1} parent=11 // pred_fallthru
          _
        // Predicated region
        $region37: #{tpu_custom_call.1} parent=11 // pred_check
          %p717 = pneg %p349
        $region38: #{tpu_custom_call.1} parent=11 // pred_check_branch
          %719 = sbr.rel (%p717) target = $region40
        $region39: #{tpu_custom_call.1} parent=11 // pred_region
          _
        $region40: #{tpu_custom_call.1} parent=11 // pred_fallthru
          _
        // Predicated region
        $region41: #{tpu_custom_call.1} parent=11 // pred_check
          %p720 = pneg %p370
        $region42: #{tpu_custom_call.1} parent=11 // pred_check_branch
          %722 = sbr.rel (%p720) target = $region44
        $region43: #{tpu_custom_call.1} parent=11 // pred_region
          %s724 = ssub.s32 16, 16
          %725 = vsyncadd [#allocation9], %s724
          %s727 = sshll.u32 [#allocation10], 4
          %s728 = int_to_ptr.vmem [resolvable:$true] %s727
          %730 = dma.hbm_to_vmem [thread:$0]  %s13, 16, %s728, [#allocation9]
        $region44: #{tpu_custom_call.1} parent=11 // pred_fallthru
          _
        // Predicated region
        $region45: #{tpu_custom_call.1} parent=11 // pred_check
          %p731 = pneg %p391
        $region46: #{tpu_custom_call.1} parent=11 // pred_check_branch
          %733 = sbr.rel (%p731) target = $region48
        $region47: #{tpu_custom_call.1} parent=11 // pred_region
          _
        $region48: #{tpu_custom_call.1} parent=11 // pred_fallthru
          _
        // Predicated region
        $region49: #{tpu_custom_call.1} parent=11 // pred_check
          %p734 = pneg %p412
        $region50: #{tpu_custom_call.1} parent=11 // pred_check_branch
          %736 = sbr.rel (%p734) target = $region52
        $region51: #{tpu_custom_call.1} parent=11 // pred_region
          %s738 = ssub.s32 16, 16
          %739 = vsyncadd [#allocation12], %s738
          %s741 = sshll.u32 [#allocation11], 4
          %s742 = int_to_ptr.vmem [resolvable:$true] %s741
          %744 = dma.hbm_to_vmem [thread:$0]  %s15, 16, %s742, [#allocation12]
        $region52: #{tpu_custom_call.1} parent=11 // pred_fallthru
          _
        // Predicated region
        $region53: #{tpu_custom_call.1} parent=11 // pred_check
          %p745 = pneg %p433
        $region54: #{tpu_custom_call.1} parent=11 // pred_check_branch
          %747 = sbr.rel (%p745) target = $region56
        $region55: #{tpu_custom_call.1} parent=11 // pred_region
          %s749 = ssub.s32 512, 512
          %750 = vsyncadd [#allocation12], %s749
          %s751 = sshll.u32 [#allocation13], 4
          %s752 = int_to_ptr.vmem [resolvable:$true] %s751
          %757 = dma.hbm_to_vmem [thread:$0]  %s16, 512, %s752, [#allocation12], 128, 128, 8
        $region56: #{tpu_custom_call.1} parent=11 // pred_fallthru
          _
        // Predicated region
        $region57: #{tpu_custom_call.1} parent=11 // pred_check
          %p758 = pneg %p454
        $region58: #{tpu_custom_call.1} parent=11 // pred_check_branch
          %760 = sbr.rel (%p758) target = $region60
        $region59: #{tpu_custom_call.1} parent=11 // pred_region
          %s762 = ssub.s32 16, 16
          %763 = vsyncadd [#allocation15], %s762
          %s765 = sshll.u32 [#allocation14], 4
          %s766 = int_to_ptr.vmem [resolvable:$true] %s765
          %768 = dma.hbm_to_vmem [thread:$0]  %s17, 16, %s766, [#allocation15]
        $region60: #{tpu_custom_call.1} parent=11 // pred_fallthru
          _
        // Predicated region
        $region61: #{tpu_custom_call.1} parent=11 // pred_check
          %p769 = pneg %p475
        $region62: #{tpu_custom_call.1} parent=11 // pred_check_branch
          %771 = sbr.rel (%p769) target = $region64
        $region63: #{tpu_custom_call.1} parent=11 // pred_region
          _
        $region64: #{tpu_custom_call.1} parent=11 // pred_fallthru
          _
        // Predicated region
        $region65: #{tpu_custom_call.1} parent=11 // pred_check
          %p772 = pneg %p496
        $region66: #{tpu_custom_call.1} parent=11 // pred_check_branch
          %774 = sbr.rel (%p772) target = $region68
        $region67: #{tpu_custom_call.1} parent=11 // pred_region
          _
        $region68: #{tpu_custom_call.1} parent=11 // pred_fallthru
          _
        // Predicated region
        $region69: #{tpu_custom_call.1} parent=11 // pred_check
          %p775 = pneg %p517
        $region70: #{tpu_custom_call.1} parent=11 // pred_check_branch
          %777 = sbr.rel (%p775) target = $region72
        $region71: #{tpu_custom_call.1} parent=11 // pred_region
          %s779 = ssub.s32 512, 512
          %780 = vsyncadd [#allocation15], %s779
          %s781 = sshll.u32 [#allocation16], 4
          %s782 = int_to_ptr.vmem [resolvable:$true] %s781
          %787 = dma.hbm_to_vmem [thread:$0]  %s20, 512, %s782, [#allocation15], 128, 128, 8
        $region72: #{tpu_custom_call.1} parent=11 // pred_fallthru
          _
        // Predicated region
        $region73: #{tpu_custom_call.1} parent=11 // pred_check
          %p788 = pneg %p538
        $region74: #{tpu_custom_call.1} parent=11 // pred_check_branch
          %790 = sbr.rel (%p788) target = $region76
        $region75: #{tpu_custom_call.1} parent=11 // pred_region
          _
        $region76: #{tpu_custom_call.1} parent=11 // pred_fallthru
          _
        // Predicated region
        $region77: #{tpu_custom_call.1} parent=11 // pred_check
          %p791 = pneg %p559
        $region78: #{tpu_custom_call.1} parent=11 // pred_check_branch
          %793 = sbr.rel (%p791) target = $region80
        $region79: #{tpu_custom_call.1} parent=11 // pred_region
          _
        $region80: #{tpu_custom_call.1} parent=11 // pred_fallthru
          _
        // Predicated region
        $region81: #{tpu_custom_call.1} parent=11 // pred_check
          %p794 = pneg %p580
        $region82: #{tpu_custom_call.1} parent=11 // pred_check_branch
          %796 = sbr.rel (%p794) target = $region84
        $region83: #{tpu_custom_call.1} parent=11 // pred_region
          _
        $region84: #{tpu_custom_call.1} parent=11 // pred_fallthru
          _
      $region12: #{tpu_custom_call.1} parent=5 // pred_fallthru
        _
      %p797 = scmp.lt.s32.totalorder %s46, 2
      // Predicated region
      $region85: #{tpu_custom_call.1} parent=5 // pred_check
        %p798 = pneg %p797
      $region86: #{tpu_custom_call.1} parent=5 // pred_check_branch
        %800 = sbr.rel (%p798) target = $region88
      $region87: #{tpu_custom_call.1} parent=5 // pred_region
        // Predicated region
        $region89: #{tpu_custom_call.1} parent=87 // pred_check
          %p801 = pneg %p66
        $region90: #{tpu_custom_call.1} parent=87 // pred_check_branch
          %803 = sbr.rel (%p801) target = $region92
        $region91: #{tpu_custom_call.1} parent=87 // pred_region
          %p804 = scmp.lt.s32.totalorder %s46, 1
          %s805 = scalar_select %p804, %s46, 1
          %s806 = smul.addr %s805, 4
          %s807 = smul.addr %s806, 8
          %s808 = scalar_lea.vmem %s0, %s807
        $region92: #{tpu_custom_call.1} parent=87 // pred_fallthru
          _
        // Predicated region
        $region93: #{tpu_custom_call.1} parent=87 // pred_check
          %p809 = pneg %p92
        $region94: #{tpu_custom_call.1} parent=87 // pred_check_branch
          %811 = sbr.rel (%p809) target = $region96
        $region95: #{tpu_custom_call.1} parent=87 // pred_region
          %p812 = scmp.lt.s32.totalorder %s46, 1
          %s813 = scalar_select %p812, %s46, 1
          %s814 = smul.addr %s813, 4
          %s815 = smul.addr %s814, 8
          %s816 = scalar_lea.vmem %s1, %s815
        $region96: #{tpu_custom_call.1} parent=87 // pred_fallthru
          _
        // Predicated region
        $region97: #{tpu_custom_call.1} parent=87 // pred_check
          %p817 = pneg %p118
        $region98: #{tpu_custom_call.1} parent=87 // pred_check_branch
          %819 = sbr.rel (%p817) target = $region100
        $region99: #{tpu_custom_call.1} parent=87 // pred_region
          %p820 = scmp.lt.s32.totalorder %s46, 1
          %s821 = scalar_select %p820, %s46, 1
          %s822 = smul.addr %s821, 4
          %s823 = smul.addr %s822, 8
          %s824 = scalar_lea.vmem %s2, %s823
        $region100: #{tpu_custom_call.1} parent=87 // pred_fallthru
          _
        // Predicated region
        $region101: #{tpu_custom_call.1} parent=87 // pred_check
          %p825 = pneg %p144
        $region102: #{tpu_custom_call.1} parent=87 // pred_check_branch
          %827 = sbr.rel (%p825) target = $region104
        $region103: #{tpu_custom_call.1} parent=87 // pred_region
          %p828 = scmp.lt.s32.totalorder %s46, 1
          %s829 = scalar_select %p828, %s46, 1
          %s830 = smul.addr %s829, 4
          %s831 = smul.addr %s830, 8
          %s832 = scalar_lea.vmem %s3, %s831
        $region104: #{tpu_custom_call.1} parent=87 // pred_fallthru
          _
        // Predicated region
        $region105: #{tpu_custom_call.1} parent=87 // pred_check
          %p833 = pneg %p170
        $region106: #{tpu_custom_call.1} parent=87 // pred_check_branch
          %835 = sbr.rel (%p833) target = $region108
        $region107: #{tpu_custom_call.1} parent=87 // pred_region
          %s836 = sand.u32 %s160, 1
          %s837 = scalar_lea.sflag [#allocation3], %s836
          %s838 = sand.u32 %s160, 1
          %s839 = smul.addr %s838, 8
          %s840 = scalar_lea.vmem [#allocation2], %s839
          %s842 = ssub.s32 128, 128
          %843 = vsyncadd %s837, %s842
          %s844 = smul.addr %s46, 128
          %s845 = scalar_lea.hbm %s4, %s844
          %s847 = sshll.u32 %s840, 4
          %s848 = int_to_ptr.vmem [resolvable:$true] %s847
          %850 = dma.hbm_to_vmem [thread:$0]  %s845, 128, %s848, %s837
        $region108: #{tpu_custom_call.1} parent=87 // pred_fallthru
          _
        // Predicated region
        $region109: #{tpu_custom_call.1} parent=87 // pred_check
          %p851 = pneg %p196
        $region110: #{tpu_custom_call.1} parent=87 // pred_check_branch
          %853 = sbr.rel (%p851) target = $region112
        $region111: #{tpu_custom_call.1} parent=87 // pred_region
          %p854 = scmp.lt.s32.totalorder %s46, 1
          %s855 = scalar_select %p854, %s46, 1
          %s856 = scalar_lea.vmem %s5, %s855
        $region112: #{tpu_custom_call.1} parent=87 // pred_fallthru
          _
      $region88: #{tpu_custom_call.1} parent=5 // pred_fallthru
        _
      %p857 = scmp.le.s32.totalorder 1, %s46
      %p858 = scmp.lt.s32.totalorder %s46, 3
      %p859 = pnand %p857, %p858
      %p860 = pneg %p859
      // Predicated region
      $region113: #{tpu_custom_call.1} parent=5 // pred_check
        _
      $region114: #{tpu_custom_call.1} parent=5 // pred_check_branch
        %862 = sbr.rel (%p859) target = $region116
      $region115: #{tpu_custom_call.1} parent=5 // pred_region
        %s863 = ssub.s32 %s46, 1
        %s864 = sand.u32 %s163, 1
        %s865 = scalar_lea.sflag [#allocation3], %s864
        %s866 = sand.u32 %s163, 1
        %s867 = smul.addr %s866, 8
        %s868 = scalar_lea.vmem [#allocation2], %s867
        // Predicated region
        $region117: #{tpu_custom_call.1} parent=115 // pred_check
          %p869 = pneg %p176
        $region118: #{tpu_custom_call.1} parent=115 // pred_check_branch
          %871 = sbr.rel (%p869) target = $region120
        $region119: #{tpu_custom_call.1} parent=115 // pred_region
          %872 = dma.done %s865, 128
        $region120: #{tpu_custom_call.1} parent=115 // pred_fallthru
          _
        // Predicated region
        $region121: #{tpu_custom_call.1} parent=115 // pred_check
          %p873 = pneg %p265
        $region122: #{tpu_custom_call.1} parent=115 // pred_check_branch
          %875 = sbr.rel (%p873) target = $region124
        $region123: #{tpu_custom_call.1} parent=115 // pred_region
          %876 = dma.done [#allocation6], 1024
        $region124: #{tpu_custom_call.1} parent=115 // pred_fallthru
          _
        // Predicated region
        $region125: #{tpu_custom_call.1} parent=115 // pred_check
          %p877 = pneg %p286
        $region126: #{tpu_custom_call.1} parent=115 // pred_check_branch
          %879 = sbr.rel (%p877) target = $region128
        $region127: #{tpu_custom_call.1} parent=115 // pred_region
          %880 = dma.done [#allocation6], 16
        $region128: #{tpu_custom_call.1} parent=115 // pred_fallthru
          _
        // Predicated region
        $region129: #{tpu_custom_call.1} parent=115 // pred_check
          %p881 = pneg %p328
        $region130: #{tpu_custom_call.1} parent=115 // pred_check_branch
          %883 = sbr.rel (%p881) target = $region132
        $region131: #{tpu_custom_call.1} parent=115 // pred_region
          %884 = dma.done [#allocation9], 16
        $region132: #{tpu_custom_call.1} parent=115 // pred_fallthru
          _
        // Predicated region
        $region133: #{tpu_custom_call.1} parent=115 // pred_check
          %p885 = pneg %p370
        $region134: #{tpu_custom_call.1} parent=115 // pred_check_branch
          %887 = sbr.rel (%p885) target = $region136
        $region135: #{tpu_custom_call.1} parent=115 // pred_region
          %888 = dma.done [#allocation9], 16
        $region136: #{tpu_custom_call.1} parent=115 // pred_fallthru
          _
        // Predicated region
        $region137: #{tpu_custom_call.1} parent=115 // pred_check
          %p889 = pneg %p412
        $region138: #{tpu_custom_call.1} parent=115 // pred_check_branch
          %891 = sbr.rel (%p889) target = $region140
        $region139: #{tpu_custom_call.1} parent=115 // pred_region
          %892 = dma.done [#allocation12], 16
        $region140: #{tpu_custom_call.1} parent=115 // pred_fallthru
          _
        // Predicated region
        $region141: #{tpu_custom_call.1} parent=115 // pred_check
          %p893 = pneg %p433
        $region142: #{tpu_custom_call.1} parent=115 // pred_check_branch
          %895 = sbr.rel (%p893) target = $region144
        $region143: #{tpu_custom_call.1} parent=115 // pred_region
          %896 = dma.done [#allocation12], 512
        $region144: #{tpu_custom_call.1} parent=115 // pred_fallthru
          _
        // Predicated region
        $region145: #{tpu_custom_call.1} parent=115 // pred_check
          %p897 = pneg %p454
        $region146: #{tpu_custom_call.1} parent=115 // pred_check_branch
          %899 = sbr.rel (%p897) target = $region148
        $region147: #{tpu_custom_call.1} parent=115 // pred_region
          %900 = dma.done [#allocation15], 16
        $region148: #{tpu_custom_call.1} parent=115 // pred_fallthru
          _
        // Predicated region
        $region149: #{tpu_custom_call.1} parent=115 // pred_check
          %p901 = pneg %p517
        $region150: #{tpu_custom_call.1} parent=115 // pred_check_branch
          %903 = sbr.rel (%p901) target = $region152
        $region151: #{tpu_custom_call.1} parent=115 // pred_region
          %904 = dma.done [#allocation15], 512
        $region152: #{tpu_custom_call.1} parent=115 // pred_fallthru
          _
        %p905 = scmp.lt.s32.totalorder %s51, 1
        %s906 = scalar_select %p905, %s51, 1
        %s907 = smul.addr %s906, 4
        %s908 = smul.addr %s907, 8
        %s909 = scalar_lea.vmem %s0, %s908
        %p910 = pneg %p72
        %p911 = pneg %p69
        %p912 = scmp.lt.s32.totalorder %s51, 1
        %s913 = scalar_select %p912, %s51, 1
        %s914 = smul.addr %s913, 4
        %s915 = smul.addr %s914, 8
        %s916 = scalar_lea.vmem %s1, %s915
        %p917 = pneg %p98
        %p918 = pneg %p95
        %p919 = scmp.lt.s32.totalorder %s51, 1
        %s920 = scalar_select %p919, %s51, 1
        %s921 = smul.addr %s920, 4
        %s922 = smul.addr %s921, 8
        %s923 = scalar_lea.vmem %s2, %s922
        %p924 = pneg %p124
        %p925 = pneg %p121
        %p926 = scmp.lt.s32.totalorder %s51, 1
        %s927 = scalar_select %p926, %s51, 1
        %s928 = smul.addr %s927, 4
        %s929 = smul.addr %s928, 8
        %s930 = scalar_lea.vmem %s3, %s929
        %p931 = pneg %p150
        %p932 = pneg %p147
        %s933 = sand.u32 %s163, 1
        %s934 = scalar_lea.sflag [#allocation3], %s933
        %s935 = sand.u32 %s163, 1
        %s936 = smul.addr %s935, 8
        %s937 = scalar_lea.vmem [#allocation2], %s936
        %p938 = pneg %p176
        %p939 = pneg %p173
        %p940 = scmp.lt.s32.totalorder %s51, 1
        %s941 = scalar_select %p940, %s51, 1
        %s942 = scalar_lea.vmem %s5, %s941
        %p943 = pneg %p202
        %p944 = pneg %p199
        %p945 = pneg %p223
        %p946 = pneg %p220
        %p947 = pneg %p244
        %p948 = pneg %p241
        %p949 = pneg %p265
        %p950 = pneg %p262
        %p951 = pneg %p286
        %p952 = pneg %p283
        %p953 = pneg %p307
        %p954 = pneg %p304
        %p955 = pneg %p328
        %p956 = pneg %p325
        %p957 = pneg %p349
        %p958 = pneg %p346
        %p959 = pneg %p370
        %p960 = pneg %p367
        %p961 = pneg %p391
        %p962 = pneg %p388
        %p963 = pneg %p412
        %p964 = pneg %p409
        %p965 = pneg %p433
        %p966 = pneg %p430
        %p967 = pneg %p454
        %p968 = pneg %p451
        %p969 = pneg %p475
        %p970 = pneg %p472
        %p971 = pneg %p496
        %p972 = pneg %p493
        %p973 = pneg %p517
        %p974 = pneg %p514
        %p975 = pneg %p538
        %p976 = pneg %p535
        %p977 = pneg %p559
        %p978 = pneg %p556
        %p979 = pneg %p580
        %p980 = pneg %p577
        %p981 = pneg %p606
        %p982 = pneg %p603
        %s983 = sand.u32 %s593, 1
        %s984 = scalar_lea.sflag [#allocation4], %s983
        %s985 = sand.u32 %s593, 1
        %s986 = smul.addr %s985, 32
        %s987 = scalar_lea.vmem [#allocation17], %s986
        %p988 = pneg %p632
        %p989 = pneg %p629
        %s990 = sand.u32 %s51, 1
        %s991 = scalar_lea.sflag [#allocation19], %s990
        %s992 = sand.u32 %s619, 1
        %s993 = scalar_lea.vmem [#allocation18], %s992
        %p994 = pneg %p658
        %p995 = pneg %p655
        %s996 = sand.u32 %s51, 1
        %s997 = scalar_lea.sflag [#allocation19], %s996
        %s998 = sand.u32 %s645, 1
        %s999 = scalar_lea.vmem [#allocation20], %s998
        %p1000 = scmp.lt.s32.totalorder %s51, 1
        %s1001 = scalar_select %p1000, %s51, 1
        %s1002 = smul.addr %s1001, 4
        %s1003 = smul.addr %s1002, 8
        %s1004 = scalar_lea.vmem %s0, %s1003
        %p1005 = scmp.lt.s32.totalorder %s51, 1
        %s1006 = scalar_select %p1005, %s51, 1
        %s1007 = smul.addr %s1006, 4
        %s1008 = smul.addr %s1007, 8
        %s1009 = scalar_lea.vmem %s1, %s1008
        %p1010 = scmp.lt.s32.totalorder %s51, 1
        %s1011 = scalar_select %p1010, %s51, 1
        %s1012 = smul.addr %s1011, 4
        %s1013 = smul.addr %s1012, 8
        %s1014 = scalar_lea.vmem %s2, %s1013
        %p1015 = scmp.lt.s32.totalorder %s51, 1
        %s1016 = scalar_select %p1015, %s51, 1
        %s1017 = smul.addr %s1016, 4
        %s1018 = smul.addr %s1017, 8
        %s1019 = scalar_lea.vmem %s3, %s1018
        %p1020 = scmp.lt.s32.totalorder %s51, 1
        %s1021 = scalar_select %p1020, %s51, 1
        %s1022 = scalar_lea.vmem %s5, %s1021
        %v1023 = vld [vmem:[%s1004] sm:$0xff]
        %v1024 = vld [vmem:[%s1004 + $0x8] sm:$0xff]
        %v1025 = vld [vmem:[%s1004 + $0x10] sm:$0xff]
        %v1026 = vld [vmem:[%s1004 + $0x18] sm:$0xff]
        %v1027 = vld [vmem:[%s1009] sm:$0xff]
        %v1028 = vld [vmem:[%s1009 + $0x8] sm:$0xff]
        %v1029 = vld [vmem:[%s1009 + $0x10] sm:$0xff]
        %v1030 = vld [vmem:[%s1009 + $0x18] sm:$0xff]
        %vm1031 = vcmask 261120
        %v1033 = vsel %vm1031, %v1023, 0
        %v1036 = vsel %vm1031, %v1024, 0
        %v1039 = vsel %vm1031, %v1025, 0
        %v1042 = vsel %vm1031, %v1026, 0
        %1044 = vmatprep.subr.mxu0 0.0
        %1045 = vmatpush1.msra.mxu0 0.0
        %1046 = vmatprep.subr.mxu0 0.0
        %1047 = vmatpush1.msra.mxu0 0.0
        %1048 = vmatprep.subr.mxu0 0.0
        %1049 = vmatpush1.msra.mxu0 0.0
        %1050 = vmatprep.subr.mxu0 0.0
        %1051 = vmatpush1.msra.mxu0 0.0
        %1052 = vmatprep.subr.mxu0 0.0
        %1053 = vmatpush1.msra.mxu0 0.0
        %1054 = vmatprep.subr.mxu0 0.0
        %1055 = vmatpush1.msra.mxu0 0.0
        %1056 = vmatprep.subr.mxu0 0.0
        %1057 = vmatpush1.msra.mxu0 0.0
        %1058 = vmatprep.subr.mxu0 0.0
        %1059 = vmatpush1.msra.mxu0 0.0
        %1060 = vmatprep.subr.mxu0 0.0
        %1061 = vmatpush1.msra.mxu0 0.0
        %1062 = vmatprep.subr.mxu0 0.0
        %1063 = vmatpush1.msra.mxu0 0.0
        %1064 = vmatprep.subr.mxu0 0.0
        %1065 = vmatpush1.msra.mxu0 0.0
        %1066 = vmatprep.subr.mxu0 0.0
        %1067 = vmatpush1.msra.mxu0 0.0
        %1068 = vmatprep.subr.mxu0 0.0
        %1069 = vmatpush1.msra.mxu0 %v1030
        %1070 = vmatprep.subr.mxu0 0.0
        %1071 = vmatpush1.msra.mxu0 %v1029
        %1072 = vmatprep.subr.mxu0 0.0
        %1073 = vmatpush1.msra.mxu0 %v1028
        %1074 = vmatprep.subr.mxu0 0.0
        %1075 = vmatpush1.msra.mxu0 %v1027
        %1076 = vmatprep.subr.mxu0 0.0
        %1077 = vmatpush2.msra.mxu0 0.0
        %1078 = vmatprep.subr.mxu0 0.0
        %1079 = vmatpush2.msra.mxu0 0.0
        %1080 = vmatprep.subr.mxu0 0.0
        %1081 = vmatpush2.msra.mxu0 0.0
        %1082 = vmatprep.subr.mxu0 0.0
        %1083 = vmatpush2.msra.mxu0 0.0
        %1084 = vmatprep.subr.mxu0 0.0
        %1085 = vmatpush2.msra.mxu0 0.0
        %1086 = vmatprep.subr.mxu0 0.0
        %1087 = vmatpush2.msra.mxu0 0.0
        %1088 = vmatprep.subr.mxu0 0.0
        %1089 = vmatpush2.msra.mxu0 0.0
        %1090 = vmatprep.subr.mxu0 0.0
        %1091 = vmatpush2.msra.mxu0 0.0
        %1092 = vmatprep.subr.mxu0 0.0
        %1093 = vmatpush2.msra.mxu0 0.0
        %1094 = vmatprep.subr.mxu0 0.0
        %1095 = vmatpush2.msra.mxu0 0.0
        %1096 = vmatprep.subr.mxu0 0.0
        %1097 = vmatpush2.msra.mxu0 0.0
        %1098 = vmatprep.subr.mxu0 0.0
        %1099 = vmatpush2.msra.mxu0 0.0
        %1100 = vmatprep.subr.mxu0 0.0
        %1101 = vmatpush2.msra.mxu0 0.0
        %1102 = vmatprep.subr.mxu0 0.0
        %1103 = vmatpush2.msra.mxu0 0.0
        %1104 = vmatprep.subr.mxu0 0.0
        %1105 = vmatpush2.msra.mxu0 0.0
        %1106 = vmatprep.subr.mxu0 0.0
        %1107 = vmatpush2.msra.mxu0 0.0
        %1108 = vmatprep.mubr.f32.mxu0 0.0
        %1109 = vmatmul.mubr.f32.gmra.mxu0 %v1033
        %v1110 = vpop.f32.mrf.mxu0
        %v1111 = vadd.f32 0.0, %v1110
        %v1112 = vpop.f32.mrf.mxu0
        %1113 = vmatprep.mubr.f32.mxu0 0.0
        %1114 = vmatmul.mubr.f32.gmra.mxu0 %v1036
        %v1115 = vpop.f32.mrf.mxu0
        %v1116 = vadd.f32 0.0, %v1115
        %v1117 = vpop.f32.mrf.mxu0
        %1118 = vmatprep.mubr.f32.mxu0 0.0
        %1119 = vmatmul.mubr.f32.gmra.mxu0 %v1039
        %v1120 = vpop.f32.mrf.mxu0
        %v1121 = vadd.f32 0.0, %v1120
        %v1122 = vpop.f32.mrf.mxu0
        %1123 = vmatprep.mubr.f32.mxu0 0.0
        %1124 = vmatmul.mubr.f32.gmra.mxu0 %v1042
        %v1125 = vpop.f32.mrf.mxu0
        %v1126 = vadd.f32 0.0, %v1125
        %v1127 = vpop.f32.mrf.mxu0
        %1128 = vdwg.mxu0
        %v1129 = vld [vmem:[%s1014] sm:$0xff]
        %v1130 = vld [vmem:[%s1014 + $0x8] sm:$0xff]
        %v1131 = vld [vmem:[%s1014 + $0x10] sm:$0xff]
        %v1132 = vld [vmem:[%s1014 + $0x18] sm:$0xff]
        %v1133 = vld [vmem:[%s10] sm:$0xff]
        %v1134 = vld [vmem:[%s10 + $0x8] sm:$0xff]
        %v1135 = vld [vmem:[%s10 + $0x10] sm:$0xff]
        %v1136 = vld [vmem:[%s10 + $0x18] sm:$0xff]
        %v1137 = vld [vmem:[%s10 + $0x20] sm:$0xff]
        %v1138 = vld [vmem:[%s10 + $0x28] sm:$0xff]
        %v1139 = vld [vmem:[%s10 + $0x30] sm:$0xff]
        %v1140 = vld [vmem:[%s10 + $0x38] sm:$0xff]
        %v1141 = vld [vmem:[#allocation8] sm:$0x1]
        %v1143 = vlaneseq
        %v1144 = vshrl.u32 %v1143, 7
        %v1145 = vsub.s32 0, %v1144
        %v1146 = vrot.slane %v1141, %v1145
        %vm1148 = vcmask 523264
        %v1150 = vsel %vm1148, %v1129, 0
        %v1153 = vsel %vm1148, %v1130, 0
        %v1156 = vsel %vm1148, %v1131, 0
        %v1159 = vsel %vm1148, %v1132, 0
        %1161 = vmatprep.subr.mxu0 0.0
        %1162 = vmatpush1.msra.mxu0 0.0
        %1163 = vmatprep.subr.mxu0 0.0
        %1164 = vmatpush1.msra.mxu0 0.0
        %1165 = vmatprep.subr.mxu0 0.0
        %1166 = vmatpush1.msra.mxu0 0.0
        %1167 = vmatprep.subr.mxu0 0.0
        %1168 = vmatpush1.msra.mxu0 0.0
        %1169 = vmatprep.subr.mxu0 0.0
        %1170 = vmatpush1.msra.mxu0 0.0
        %1171 = vmatprep.subr.mxu0 0.0
        %1172 = vmatpush1.msra.mxu0 0.0
        %1173 = vmatprep.subr.mxu0 0.0
        %1174 = vmatpush1.msra.mxu0 0.0
        %1175 = vmatprep.subr.mxu0 0.0
        %1176 = vmatpush1.msra.mxu0 0.0
        %1177 = vmatprep.subr.mxu0 0.0
        %1178 = vmatpush1.msra.mxu0 %v1140
        %1179 = vmatprep.subr.mxu0 0.0
        %1180 = vmatpush1.msra.mxu0 %v1139
        %1181 = vmatprep.subr.mxu0 0.0
        %1182 = vmatpush1.msra.mxu0 %v1138
        %1183 = vmatprep.subr.mxu0 0.0
        %1184 = vmatpush1.msra.mxu0 %v1137
        %1185 = vmatprep.subr.mxu0 0.0
        %1186 = vmatpush1.msra.mxu0 %v1136
        %1187 = vmatprep.subr.mxu0 0.0
        %1188 = vmatpush1.msra.mxu0 %v1135
        %1189 = vmatprep.subr.mxu0 0.0
        %1190 = vmatpush1.msra.mxu0 %v1134
        %1191 = vmatprep.subr.mxu0 0.0
        %1192 = vmatpush1.msra.mxu0 %v1133
        %1193 = vmatprep.subr.mxu0 0.0
        %1194 = vmatpush2.msra.mxu0 0.0
        %1195 = vmatprep.subr.mxu0 0.0
        %1196 = vmatpush2.msra.mxu0 0.0
        %1197 = vmatprep.subr.mxu0 0.0
        %1198 = vmatpush2.msra.mxu0 0.0
        %1199 = vmatprep.subr.mxu0 0.0
        %1200 = vmatpush2.msra.mxu0 0.0
        %1201 = vmatprep.subr.mxu0 0.0
        %1202 = vmatpush2.msra.mxu0 0.0
        %1203 = vmatprep.subr.mxu0 0.0
        %1204 = vmatpush2.msra.mxu0 0.0
        %1205 = vmatprep.subr.mxu0 0.0
        %1206 = vmatpush2.msra.mxu0 0.0
        %1207 = vmatprep.subr.mxu0 0.0
        %1208 = vmatpush2.msra.mxu0 0.0
        %1209 = vmatprep.subr.mxu0 0.0
        %1210 = vmatpush2.msra.mxu0 0.0
        %1211 = vmatprep.subr.mxu0 0.0
        %1212 = vmatpush2.msra.mxu0 0.0
        %1213 = vmatprep.subr.mxu0 0.0
        %1214 = vmatpush2.msra.mxu0 0.0
        %1215 = vmatprep.subr.mxu0 0.0
        %1216 = vmatpush2.msra.mxu0 0.0
        %1217 = vmatprep.subr.mxu0 0.0
        %1218 = vmatpush2.msra.mxu0 0.0
        %1219 = vmatprep.subr.mxu0 0.0
        %1220 = vmatpush2.msra.mxu0 0.0
        %1221 = vmatprep.subr.mxu0 0.0
        %1222 = vmatpush2.msra.mxu0 0.0
        %1223 = vmatprep.subr.mxu0 0.0
        %1224 = vmatpush2.msra.mxu0 0.0
        %1225 = vmatprep.mubr.f32.mxu0 0.0
        %1226 = vmatmul.mubr.f32.gmra.mxu0 %v1150
        %v1227 = vpop.f32.mrf.mxu0
        %v1228 = vadd.f32 %v1146, %v1227
        %v1229 = vpop.f32.mrf.mxu0
        %1230 = vmatprep.mubr.f32.mxu0 0.0
        %1231 = vmatmul.mubr.f32.gmra.mxu0 %v1153
        %v1232 = vpop.f32.mrf.mxu0
        %v1233 = vadd.f32 %v1146, %v1232
        %v1234 = vpop.f32.mrf.mxu0
        %1235 = vmatprep.mubr.f32.mxu0 0.0
        %1236 = vmatmul.mubr.f32.gmra.mxu0 %v1156
        %v1237 = vpop.f32.mrf.mxu0
        %v1238 = vadd.f32 %v1146, %v1237
        %v1239 = vpop.f32.mrf.mxu0
        %1240 = vmatprep.mubr.f32.mxu0 0.0
        %1241 = vmatmul.mubr.f32.gmra.mxu0 %v1159
        %v1242 = vpop.f32.mrf.mxu0
        %v1243 = vadd.f32 %v1146, %v1242
        %v1244 = vpop.f32.mrf.mxu0
        %1245 = vdwg.mxu0
        %v1246 = vld [vmem:[%s1019] sm:$0xff]
        %v1247 = vld [vmem:[%s1019 + $0x8] sm:$0xff]
        %v1248 = vld [vmem:[%s1019 + $0x10] sm:$0xff]
        %v1249 = vld [vmem:[%s1019 + $0x18] sm:$0xff]
        %v1250 = vsel %vm1148, %v1246, 0.0
        %1251 = vadd.xlane.f32.xlu0 %v1250
        %v1252 = vpop.xlane.xlu0 %1251
        %v1253 = vsel %vm1148, %v1247, 0.0
        %1254 = vadd.xlane.f32.xlu0 %v1253
        %v1255 = vpop.xlane.xlu0 %1254
        %v1256 = vsel %vm1148, %v1248, 0.0
        %1257 = vadd.xlane.f32.xlu0 %v1256
        %v1258 = vpop.xlane.xlu0 %1257
        %v1259 = vsel %vm1148, %v1249, 0.0
        %1260 = vadd.xlane.f32.xlu0 %v1259
        %v1261 = vpop.xlane.xlu0 %1260
        %v1262 = vrcp.pop 64.0
        %v1263 = vmul.f32 %v1252, %v1262
        %v1264 = vmul.f32 %v1255, %v1262
        %v1265 = vmul.f32 %v1258, %v1262
        %v1266 = vmul.f32 %v1261, %v1262
        %v1267 = vsub.f32 %v1246, %v1263
        %v1268 = vsub.f32 %v1247, %v1264
        %v1269 = vsub.f32 %v1248, %v1265
        %v1270 = vsub.f32 %v1249, %v1266
        %v1271 = vmul.f32 %v1267, %v1267
        %v1272 = vmul.f32 %v1268, %v1268
        %v1273 = vmul.f32 %v1269, %v1269
        %v1274 = vmul.f32 %v1270, %v1270
        %v1275 = vsel %vm1148, %v1271, 0.0
        %1276 = vadd.xlane.f32.xlu0 %v1275
        %v1277 = vpop.xlane.xlu0 %1276
        %v1278 = vsel %vm1148, %v1272, 0.0
        %1279 = vadd.xlane.f32.xlu0 %v1278
        %v1280 = vpop.xlane.xlu0 %1279
        %v1281 = vsel %vm1148, %v1273, 0.0
        %1282 = vadd.xlane.f32.xlu0 %v1281
        %v1283 = vpop.xlane.xlu0 %1282
        %v1284 = vsel %vm1148, %v1274, 0.0
        %1285 = vadd.xlane.f32.xlu0 %v1284
        %v1286 = vpop.xlane.xlu0 %1285
        %v1287 = vrcp.pop 63.0
        %v1288 = vmul.f32 %v1277, %v1287
        %v1289 = vmul.f32 %v1280, %v1287
        %v1290 = vmul.f32 %v1283, %v1287
        %v1291 = vmul.f32 %v1286, %v1287
        %v1292 = vrsqrt.pop %v1288
        %v1293 = vmul.f32 %v1288, %v1292
        %vm1294 = vcmp.eq.f32.partialorder %v1288, inf
        %v1295 = vsel %vm1294, %v1288, %v1293
        %vm1296 = vcmp.eq.f32.partialorder %v1288, 0.0
        %v1297 = vand.u32 %v1288, 2147483648
        %v1298 = vsel %vm1296, %v1297, %v1295
        %v1299 = vrsqrt.pop %v1289
        %v1300 = vmul.f32 %v1289, %v1299
        %vm1301 = vcmp.eq.f32.partialorder %v1289, inf
        %v1302 = vsel %vm1301, %v1289, %v1300
        %vm1303 = vcmp.eq.f32.partialorder %v1289, 0.0
        %v1304 = vand.u32 %v1289, 2147483648
        %v1305 = vsel %vm1303, %v1304, %v1302
        %v1306 = vrsqrt.pop %v1290
        %v1307 = vmul.f32 %v1290, %v1306
        %vm1308 = vcmp.eq.f32.partialorder %v1290, inf
        %v1309 = vsel %vm1308, %v1290, %v1307
        %vm1310 = vcmp.eq.f32.partialorder %v1290, 0.0
        %v1311 = vand.u32 %v1290, 2147483648
        %v1312 = vsel %vm1310, %v1311, %v1309
        %v1313 = vrsqrt.pop %v1291
        %v1314 = vmul.f32 %v1291, %v1313
        %vm1315 = vcmp.eq.f32.partialorder %v1291, inf
        %v1316 = vsel %vm1315, %v1291, %v1314
        %vm1317 = vcmp.eq.f32.partialorder %v1291, 0.0
        %v1318 = vand.u32 %v1291, 2147483648
        %v1319 = vsel %vm1317, %v1318, %v1316
        %v1320 = vadd.f32 %v1298, 1e-06
        %v1321 = vadd.f32 %v1305, 1e-06
        %v1322 = vadd.f32 %v1312, 1e-06
        %v1323 = vadd.f32 %v1319, 1e-06
        %v1324 = vrcp.pop %v1320
        %v1325 = vrcp.pop %v1321
        %v1326 = vrcp.pop %v1322
        %v1327 = vrcp.pop %v1323
        %v1328 = vld [vmem:[%s6] sm:$0x1]
        %v1330 = vlaneseq
        %v1331 = vshrl.u32 %v1330, 7
        %v1332 = vsub.s32 0, %v1331
        %v1333 = vrot.slane %v1328, %v1332
        %v1335 = vmul.f32 %v1333, %v1267
        %v1336 = vmul.f32 %v1333, %v1268
        %v1337 = vmul.f32 %v1333, %v1269
        %v1338 = vmul.f32 %v1333, %v1270
        %v1339 = vmul.f32 %v1335, %v1324
        %v1340 = vmul.f32 %v1336, %v1325
        %v1341 = vmul.f32 %v1337, %v1326
        %v1342 = vmul.f32 %v1338, %v1327
        %v1343 = vld [vmem:[%s7] sm:$0x1]
        %v1345 = vlaneseq
        %v1346 = vshrl.u32 %v1345, 7
        %v1347 = vsub.s32 0, %v1346
        %v1348 = vrot.slane %v1343, %v1347
        %v1350 = vadd.f32 %v1339, %v1348
        %v1351 = vadd.f32 %v1340, %v1348
        %v1352 = vadd.f32 %v1341, %v1348
        %v1353 = vadd.f32 %v1342, %v1348
        %1354 = vst.msk [vmem:[%s987] sm:$0xff] %vm1148, %v1350
        %1355 = vst.msk [vmem:[%s987 + $0x8] sm:$0xff] %vm1148, %v1351
        %1356 = vst.msk [vmem:[%s987 + $0x10] sm:$0xff] %vm1148, %v1352
        %1357 = vst.msk [vmem:[%s987 + $0x18] sm:$0xff] %vm1148, %v1353
        %v1358 = vld [vmem:[#allocation5] sm:$0xff]
        %v1359 = vld [vmem:[#allocation5 + $0x8] sm:$0xff]
        %v1360 = vld [vmem:[#allocation5 + $0x10] sm:$0xff]
        %v1361 = vld [vmem:[#allocation5 + $0x18] sm:$0xff]
        %v1362 = vld [vmem:[#allocation5 + $0x20] sm:$0xff]
        %v1363 = vld [vmem:[#allocation5 + $0x28] sm:$0xff]
        %v1364 = vld [vmem:[#allocation5 + $0x30] sm:$0xff]
        %v1365 = vld [vmem:[#allocation5 + $0x38] sm:$0xff]
        %v1366 = vld [vmem:[#allocation7] sm:$0x1]
        %v1368 = vsel %vm1148, %v1246, 0
        %1370 = vmatprep.subr.mxu0 0.0
        %1371 = vmatpush1.msra.mxu0 0.0
        %1372 = vmatprep.subr.mxu0 0.0
        %1373 = vmatpush1.msra.mxu0 0.0
        %1374 = vmatprep.subr.mxu0 0.0
        %1375 = vmatpush1.msra.mxu0 0.0
        %1376 = vmatprep.subr.mxu0 0.0
        %1377 = vmatpush1.msra.mxu0 0.0
        %1378 = vmatprep.subr.mxu0 0.0
        %1379 = vmatpush1.msra.mxu0 0.0
        %1380 = vmatprep.subr.mxu0 0.0
        %1381 = vmatpush1.msra.mxu0 0.0
        %1382 = vmatprep.subr.mxu0 0.0
        %1383 = vmatpush1.msra.mxu0 0.0
        %1384 = vmatprep.subr.mxu0 0.0
        %1385 = vmatpush1.msra.mxu0 0.0
        %1386 = vmatprep.subr.mxu0 0.0
        %1387 = vmatpush1.msra.mxu0 %v1365
        %1388 = vmatprep.subr.mxu0 0.0
        %1389 = vmatpush1.msra.mxu0 %v1364
        %1390 = vmatprep.subr.mxu0 0.0
        %1391 = vmatpush1.msra.mxu0 %v1363
        %1392 = vmatprep.subr.mxu0 0.0
        %1393 = vmatpush1.msra.mxu0 %v1362
        %1394 = vmatprep.subr.mxu0 0.0
        %1395 = vmatpush1.msra.mxu0 %v1361
        %1396 = vmatprep.subr.mxu0 0.0
        %1397 = vmatpush1.msra.mxu0 %v1360
        %1398 = vmatprep.subr.mxu0 0.0
        %1399 = vmatpush1.msra.mxu0 %v1359
        %1400 = vmatprep.subr.mxu0 0.0
        %1401 = vmatpush1.msra.mxu0 %v1358
        %1402 = vmatprep.subr.mxu0 0.0
        %1403 = vmatpush2.msra.mxu0 0.0
        %1404 = vmatprep.subr.mxu0 0.0
        %1405 = vmatpush2.msra.mxu0 0.0
        %1406 = vmatprep.subr.mxu0 0.0
        %1407 = vmatpush2.msra.mxu0 0.0
        %1408 = vmatprep.subr.mxu0 0.0
        %1409 = vmatpush2.msra.mxu0 0.0
        %1410 = vmatprep.subr.mxu0 0.0
        %1411 = vmatpush2.msra.mxu0 0.0
        %1412 = vmatprep.subr.mxu0 0.0
        %1413 = vmatpush2.msra.mxu0 0.0
        %1414 = vmatprep.subr.mxu0 0.0
        %1415 = vmatpush2.msra.mxu0 0.0
        %1416 = vmatprep.subr.mxu0 0.0
        %1417 = vmatpush2.msra.mxu0 0.0
        %1418 = vmatprep.subr.mxu0 0.0
        %1419 = vmatpush2.msra.mxu0 0.0
        %1420 = vmatprep.subr.mxu0 0.0
        %1421 = vmatpush2.msra.mxu0 0.0
        %1422 = vmatprep.subr.mxu0 0.0
        %1423 = vmatpush2.msra.mxu0 0.0
        %1424 = vmatprep.subr.mxu0 0.0
        %1425 = vmatpush2.msra.mxu0 0.0
        %1426 = vmatprep.subr.mxu0 0.0
        %1427 = vmatpush2.msra.mxu0 0.0
        %1428 = vmatprep.subr.mxu0 0.0
        %1429 = vmatpush2.msra.mxu0 0.0
        %1430 = vmatprep.subr.mxu0 0.0
        %1431 = vmatpush2.msra.mxu0 0.0
        %1432 = vmatprep.subr.mxu0 0.0
        %1433 = vmatpush2.msra.mxu0 0.0
        %1434 = vmatprep.mubr.f32.mxu0 0.0
        %1435 = vmatmul.mubr.f32.gmra.mxu0 %v1368
        %v1436 = vpop.f32.mrf.mxu0
        %v1437 = vadd.f32 %v1366, %v1436
        %v1438 = vpop.f32.mrf.mxu0
        %1439 = vdwg.mxu0
        %v1440 = vtanh.pop %v1437
        %vm1441 = vcmask 516096
        %1442 = vst.msk [vmem:[%s993] sm:$0x1] %vm1441, %v1440
        %v1443 = vld [vmem:[%s868] sm:$0xff]
        %v1444 = vld [vmem:[%s12] sm:$0xff]
        %v1445 = vld [vmem:[%s12 + $0x8] sm:$0xff]
        %v1446 = vld [vmem:[%s12 + $0x10] sm:$0xff]
        %v1447 = vld [vmem:[%s12 + $0x18] sm:$0xff]
        %v1448 = vld [vmem:[%s12 + $0x20] sm:$0xff]
        %v1449 = vld [vmem:[%s12 + $0x28] sm:$0xff]
        %v1450 = vld [vmem:[%s12 + $0x30] sm:$0xff]
        %v1451 = vld [vmem:[%s12 + $0x38] sm:$0xff]
        %v1452 = vld [vmem:[#allocation10] sm:$0x1]
        %v1454 = vlaneseq
        %v1455 = vshrl.u32 %v1454, 7
        %v1456 = vsub.s32 0, %v1455
        %v1457 = vrot.slane %v1452, %v1456
        %v1460 = vsel %vm1148, %v1443, 0
        %1462 = vmatprep.subr.mxu0 0.0
        %1463 = vmatpush1.msra.mxu0 0.0
        %1464 = vmatprep.subr.mxu0 0.0
        %1465 = vmatpush1.msra.mxu0 0.0
        %1466 = vmatprep.subr.mxu0 0.0
        %1467 = vmatpush1.msra.mxu0 0.0
        %1468 = vmatprep.subr.mxu0 0.0
        %1469 = vmatpush1.msra.mxu0 0.0
        %1470 = vmatprep.subr.mxu0 0.0
        %1471 = vmatpush1.msra.mxu0 0.0
        %1472 = vmatprep.subr.mxu0 0.0
        %1473 = vmatpush1.msra.mxu0 0.0
        %1474 = vmatprep.subr.mxu0 0.0
        %1475 = vmatpush1.msra.mxu0 0.0
        %1476 = vmatprep.subr.mxu0 0.0
        %1477 = vmatpush1.msra.mxu0 0.0
        %1478 = vmatprep.subr.mxu0 0.0
        %1479 = vmatpush1.msra.mxu0 %v1451
        %1480 = vmatprep.subr.mxu0 0.0
        %1481 = vmatpush1.msra.mxu0 %v1450
        %1482 = vmatprep.subr.mxu0 0.0
        %1483 = vmatpush1.msra.mxu0 %v1449
        %1484 = vmatprep.subr.mxu0 0.0
        %1485 = vmatpush1.msra.mxu0 %v1448
        %1486 = vmatprep.subr.mxu0 0.0
        %1487 = vmatpush1.msra.mxu0 %v1447
        %1488 = vmatprep.subr.mxu0 0.0
        %1489 = vmatpush1.msra.mxu0 %v1446
        %1490 = vmatprep.subr.mxu0 0.0
        %1491 = vmatpush1.msra.mxu0 %v1445
        %1492 = vmatprep.subr.mxu0 0.0
        %1493 = vmatpush1.msra.mxu0 %v1444
        %1494 = vmatprep.subr.mxu0 0.0
        %1495 = vmatpush2.msra.mxu0 0.0
        %1496 = vmatprep.subr.mxu0 0.0
        %1497 = vmatpush2.msra.mxu0 0.0
        %1498 = vmatprep.subr.mxu0 0.0
        %1499 = vmatpush2.msra.mxu0 0.0
        %1500 = vmatprep.subr.mxu0 0.0
        %1501 = vmatpush2.msra.mxu0 0.0
        %1502 = vmatprep.subr.mxu0 0.0
        %1503 = vmatpush2.msra.mxu0 0.0
        %1504 = vmatprep.subr.mxu0 0.0
        %1505 = vmatpush2.msra.mxu0 0.0
        %1506 = vmatprep.subr.mxu0 0.0
        %1507 = vmatpush2.msra.mxu0 0.0
        %1508 = vmatprep.subr.mxu0 0.0
        %1509 = vmatpush2.msra.mxu0 0.0
        %1510 = vmatprep.subr.mxu0 0.0
        %1511 = vmatpush2.msra.mxu0 0.0
        %1512 = vmatprep.subr.mxu0 0.0
        %1513 = vmatpush2.msra.mxu0 0.0
        %1514 = vmatprep.subr.mxu0 0.0
        %1515 = vmatpush2.msra.mxu0 0.0
        %1516 = vmatprep.subr.mxu0 0.0
        %1517 = vmatpush2.msra.mxu0 0.0
        %1518 = vmatprep.subr.mxu0 0.0
        %1519 = vmatpush2.msra.mxu0 0.0
        %1520 = vmatprep.subr.mxu0 0.0
        %1521 = vmatpush2.msra.mxu0 0.0
        %1522 = vmatprep.subr.mxu0 0.0
        %1523 = vmatpush2.msra.mxu0 0.0
        %1524 = vmatprep.subr.mxu0 0.0
        %1525 = vmatpush2.msra.mxu0 0.0
        %1526 = vmatprep.mubr.f32.mxu0 0.0
        %1527 = vmatmul.mubr.f32.gmra.mxu0 %v1460
        %v1528 = vpop.f32.mrf.mxu0
        %v1529 = vadd.f32 %v1457, %v1528
        %v1530 = vpop.f32.mrf.mxu0
        %1531 = vdwg.mxu0
        %v1533 = vsel %vm1031, %v1111, 0
        %v1536 = vsel %vm1031, %v1116, 0
        %v1539 = vsel %vm1031, %v1121, 0
        %v1542 = vsel %vm1031, %v1126, 0
        %1544 = vmatprep.subr.mxu0 0.0
        %1545 = vmatpush1.msra.mxu0 0.0
        %1546 = vmatprep.subr.mxu0 0.0
        %1547 = vmatpush1.msra.mxu0 0.0
        %1548 = vmatprep.subr.mxu0 0.0
        %1549 = vmatpush1.msra.mxu0 0.0
        %1550 = vmatprep.subr.mxu0 0.0
        %1551 = vmatpush1.msra.mxu0 0.0
        %1552 = vmatprep.subr.mxu0 0.0
        %1553 = vmatpush1.msra.mxu0 0.0
        %1554 = vmatprep.subr.mxu0 0.0
        %1555 = vmatpush1.msra.mxu0 0.0
        %1556 = vmatprep.subr.mxu0 0.0
        %1557 = vmatpush1.msra.mxu0 0.0
        %1558 = vmatprep.subr.mxu0 0.0
        %1559 = vmatpush1.msra.mxu0 0.0
        %1560 = vmatprep.subr.mxu0 0.0
        %1561 = vmatpush1.msra.mxu0 0.0
        %1562 = vmatprep.subr.mxu0 0.0
        %1563 = vmatpush1.msra.mxu0 0.0
        %1564 = vmatprep.subr.mxu0 0.0
        %1565 = vmatpush1.msra.mxu0 0.0
        %1566 = vmatprep.subr.mxu0 0.0
        %1567 = vmatpush1.msra.mxu0 0.0
        %1568 = vmatprep.subr.mxu0 0.0
        %1569 = vmatpush1.msra.mxu0 %v1243
        %1570 = vmatprep.subr.mxu0 0.0
        %1571 = vmatpush1.msra.mxu0 %v1238
        %1572 = vmatprep.subr.mxu0 0.0
        %1573 = vmatpush1.msra.mxu0 %v1233
        %1574 = vmatprep.subr.mxu0 0.0
        %1575 = vmatpush1.msra.mxu0 %v1228
        %1576 = vmatprep.subr.mxu0 0.0
        %1577 = vmatpush2.msra.mxu0 0.0
        %1578 = vmatprep.subr.mxu0 0.0
        %1579 = vmatpush2.msra.mxu0 0.0
        %1580 = vmatprep.subr.mxu0 0.0
        %1581 = vmatpush2.msra.mxu0 0.0
        %1582 = vmatprep.subr.mxu0 0.0
        %1583 = vmatpush2.msra.mxu0 0.0
        %1584 = vmatprep.subr.mxu0 0.0
        %1585 = vmatpush2.msra.mxu0 0.0
        %1586 = vmatprep.subr.mxu0 0.0
        %1587 = vmatpush2.msra.mxu0 0.0
        %1588 = vmatprep.subr.mxu0 0.0
        %1589 = vmatpush2.msra.mxu0 0.0
        %1590 = vmatprep.subr.mxu0 0.0
        %1591 = vmatpush2.msra.mxu0 0.0
        %1592 = vmatprep.subr.mxu0 0.0
        %1593 = vmatpush2.msra.mxu0 0.0
        %1594 = vmatprep.subr.mxu0 0.0
        %1595 = vmatpush2.msra.mxu0 0.0
        %1596 = vmatprep.subr.mxu0 0.0
        %1597 = vmatpush2.msra.mxu0 0.0
        %1598 = vmatprep.subr.mxu0 0.0
        %1599 = vmatpush2.msra.mxu0 0.0
        %1600 = vmatprep.subr.mxu0 0.0
        %1601 = vmatpush2.msra.mxu0 0.0
        %1602 = vmatprep.subr.mxu0 0.0
        %1603 = vmatpush2.msra.mxu0 0.0
        %1604 = vmatprep.subr.mxu0 0.0
        %1605 = vmatpush2.msra.mxu0 0.0
        %1606 = vmatprep.subr.mxu0 0.0
        %1607 = vmatpush2.msra.mxu0 0.0
        %1608 = vmatprep.mubr.f32.mxu0 0.0
        %1609 = vmatmul.mubr.f32.gmra.mxu0 %v1533
        %v1610 = vpop.f32.mrf.mxu0
        %v1611 = vadd.f32 0.0, %v1610
        %v1612 = vpop.f32.mrf.mxu0
        %1613 = vmatprep.mubr.f32.mxu0 0.0
        %1614 = vmatmul.mubr.f32.gmra.mxu0 %v1536
        %v1615 = vpop.f32.mrf.mxu0
        %v1616 = vadd.f32 0.0, %v1615
        %v1617 = vpop.f32.mrf.mxu0
        %1618 = vmatprep.mubr.f32.mxu0 0.0
        %1619 = vmatmul.mubr.f32.gmra.mxu0 %v1539
        %v1620 = vpop.f32.mrf.mxu0
        %v1621 = vadd.f32 0.0, %v1620
        %v1622 = vpop.f32.mrf.mxu0
        %1623 = vmatprep.mubr.f32.mxu0 0.0
        %1624 = vmatmul.mubr.f32.gmra.mxu0 %v1542
        %v1625 = vpop.f32.mrf.mxu0
        %v1626 = vadd.f32 0.0, %v1625
        %v1627 = vpop.f32.mrf.mxu0
        %1628 = vdwg.mxu0
        %v1629 = vld [vmem:[%s14] sm:$0xff]
        %v1630 = vld [vmem:[%s14 + $0x8] sm:$0xff]
        %v1631 = vld [vmem:[%s14 + $0x10] sm:$0xff]
        %v1632 = vld [vmem:[%s14 + $0x18] sm:$0xff]
        %v1633 = vld [vmem:[#allocation11] sm:$0x1]
        %v1635 = vlaneseq
        %v1636 = vshrl.u32 %v1635, 7
        %v1637 = vsub.s32 0, %v1636
        %v1638 = vrot.slane %v1633, %v1637
        %v1641 = vsel %vm1031, %v1611, 0
        %v1644 = vsel %vm1031, %v1616, 0
        %v1647 = vsel %vm1031, %v1621, 0
        %v1650 = vsel %vm1031, %v1626, 0
        %1652 = vmatprep.subr.mxu0 0.0
        %1653 = vmatpush1.msra.mxu0 0.0
        %1654 = vmatprep.subr.mxu0 0.0
        %1655 = vmatpush1.msra.mxu0 0.0
        %1656 = vmatprep.subr.mxu0 0.0
        %1657 = vmatpush1.msra.mxu0 0.0
        %1658 = vmatprep.subr.mxu0 0.0
        %1659 = vmatpush1.msra.mxu0 0.0
        %1660 = vmatprep.subr.mxu0 0.0
        %1661 = vmatpush1.msra.mxu0 0.0
        %1662 = vmatprep.subr.mxu0 0.0
        %1663 = vmatpush1.msra.mxu0 0.0
        %1664 = vmatprep.subr.mxu0 0.0
        %1665 = vmatpush1.msra.mxu0 0.0
        %1666 = vmatprep.subr.mxu0 0.0
        %1667 = vmatpush1.msra.mxu0 0.0
        %1668 = vmatprep.subr.mxu0 0.0
        %1669 = vmatpush1.msra.mxu0 0.0
        %1670 = vmatprep.subr.mxu0 0.0
        %1671 = vmatpush1.msra.mxu0 0.0
        %1672 = vmatprep.subr.mxu0 0.0
        %1673 = vmatpush1.msra.mxu0 0.0
        %1674 = vmatprep.subr.mxu0 0.0
        %1675 = vmatpush1.msra.mxu0 0.0
        %1676 = vmatprep.subr.mxu0 0.0
        %1677 = vmatpush1.msra.mxu0 %v1632
        %1678 = vmatprep.subr.mxu0 0.0
        %1679 = vmatpush1.msra.mxu0 %v1631
        %1680 = vmatprep.subr.mxu0 0.0
        %1681 = vmatpush1.msra.mxu0 %v1630
        %1682 = vmatprep.subr.mxu0 0.0
        %1683 = vmatpush1.msra.mxu0 %v1629
        %1684 = vmatprep.subr.mxu0 0.0
        %1685 = vmatpush2.msra.mxu0 0.0
        %1686 = vmatprep.subr.mxu0 0.0
        %1687 = vmatpush2.msra.mxu0 0.0
        %1688 = vmatprep.subr.mxu0 0.0
        %1689 = vmatpush2.msra.mxu0 0.0
        %1690 = vmatprep.subr.mxu0 0.0
        %1691 = vmatpush2.msra.mxu0 0.0
        %1692 = vmatprep.subr.mxu0 0.0
        %1693 = vmatpush2.msra.mxu0 0.0
        %1694 = vmatprep.subr.mxu0 0.0
        %1695 = vmatpush2.msra.mxu0 0.0
        %1696 = vmatprep.subr.mxu0 0.0
        %1697 = vmatpush2.msra.mxu0 0.0
        %1698 = vmatprep.subr.mxu0 0.0
        %1699 = vmatpush2.msra.mxu0 0.0
        %1700 = vmatprep.subr.mxu0 0.0
        %1701 = vmatpush2.msra.mxu0 0.0
        %1702 = vmatprep.subr.mxu0 0.0
        %1703 = vmatpush2.msra.mxu0 0.0
        %1704 = vmatprep.subr.mxu0 0.0
        %1705 = vmatpush2.msra.mxu0 0.0
        %1706 = vmatprep.subr.mxu0 0.0
        %1707 = vmatpush2.msra.mxu0 0.0
        %1708 = vmatprep.subr.mxu0 0.0
        %1709 = vmatpush2.msra.mxu0 0.0
        %1710 = vmatprep.subr.mxu0 0.0
        %1711 = vmatpush2.msra.mxu0 0.0
        %1712 = vmatprep.subr.mxu0 0.0
        %1713 = vmatpush2.msra.mxu0 0.0
        %1714 = vmatprep.subr.mxu0 0.0
        %1715 = vmatpush2.msra.mxu0 0.0
        %1716 = vmatprep.mubr.f32.mxu0 0.0
        %1717 = vmatmul.mubr.f32.gmra.mxu0 %v1641
        %v1718 = vpop.f32.mrf.mxu0
        %v1719 = vadd.f32 %v1638, %v1718
        %v1720 = vpop.f32.mrf.mxu0
        %1721 = vmatprep.mubr.f32.mxu0 0.0
        %1722 = vmatmul.mubr.f32.gmra.mxu0 %v1644
        %v1723 = vpop.f32.mrf.mxu0
        %v1724 = vadd.f32 %v1638, %v1723
        %v1725 = vpop.f32.mrf.mxu0
        %1726 = vmatprep.mubr.f32.mxu0 0.0
        %1727 = vmatmul.mubr.f32.gmra.mxu0 %v1647
        %v1728 = vpop.f32.mrf.mxu0
        %v1729 = vadd.f32 %v1638, %v1728
        %v1730 = vpop.f32.mrf.mxu0
        %1731 = vmatprep.mubr.f32.mxu0 0.0
        %1732 = vmatmul.mubr.f32.gmra.mxu0 %v1650
        %v1733 = vpop.f32.mrf.mxu0
        %v1734 = vadd.f32 %v1638, %v1733
        %v1735 = vpop.f32.mrf.mxu0
        %1736 = vdwg.mxu0
        %v1737 = vmax.f32 %v1719, 0.0
        %v1738 = vmax.f32 %v1724, 0.0
        %v1739 = vmax.f32 %v1729, 0.0
        %v1740 = vmax.f32 %v1734, 0.0
        %1741 = vmatprep.subr.mxu0 0.0
        %1742 = vmatpush1.msra.mxu0 0.0
        %1743 = vmatprep.subr.mxu0 0.0
        %1744 = vmatpush1.msra.mxu0 0.0
        %1745 = vmatprep.subr.mxu0 0.0
        %1746 = vmatpush1.msra.mxu0 0.0
        %1747 = vmatprep.subr.mxu0 0.0
        %1748 = vmatpush1.msra.mxu0 0.0
        %1749 = vmatprep.subr.mxu0 0.0
        %1750 = vmatpush1.msra.mxu0 0.0
        %1751 = vmatprep.subr.mxu0 0.0
        %1752 = vmatpush1.msra.mxu0 0.0
        %1753 = vmatprep.subr.mxu0 0.0
        %1754 = vmatpush1.msra.mxu0 0.0
        %1755 = vmatprep.subr.mxu0 0.0
        %1756 = vmatpush1.msra.mxu0 0.0
        %1757 = vmatprep.subr.mxu0 0.0
        %1758 = vmatpush1.msra.mxu0 0.0
        %1759 = vmatprep.subr.mxu0 0.0
        %1760 = vmatpush1.msra.mxu0 0.0
        %1761 = vmatprep.subr.mxu0 0.0
        %1762 = vmatpush1.msra.mxu0 0.0
        %1763 = vmatprep.subr.mxu0 0.0
        %1764 = vmatpush1.msra.mxu0 0.0
        %1765 = vmatprep.subr.mxu0 0.0
        %1766 = vmatpush1.msra.mxu0 %v1740
        %1767 = vmatprep.subr.mxu0 0.0
        %1768 = vmatpush1.msra.mxu0 %v1739
        %1769 = vmatprep.subr.mxu0 0.0
        %1770 = vmatpush1.msra.mxu0 %v1738
        %1771 = vmatprep.subr.mxu0 0.0
        %1772 = vmatpush1.msra.mxu0 %v1737
        %1773 = vmatprep.subr.mxu0 0.0
        %1774 = vmatpush2.msra.mxu0 0.0
        %1775 = vmatprep.subr.mxu0 0.0
        %1776 = vmatpush2.msra.mxu0 0.0
        %1777 = vmatprep.subr.mxu0 0.0
        %1778 = vmatpush2.msra.mxu0 0.0
        %1779 = vmatprep.subr.mxu0 0.0
        %1780 = vmatpush2.msra.mxu0 0.0
        %1781 = vmatprep.subr.mxu0 0.0
        %1782 = vmatpush2.msra.mxu0 0.0
        %1783 = vmatprep.subr.mxu0 0.0
        %1784 = vmatpush2.msra.mxu0 0.0
        %1785 = vmatprep.subr.mxu0 0.0
        %1786 = vmatpush2.msra.mxu0 0.0
        %1787 = vmatprep.subr.mxu0 0.0
        %1788 = vmatpush2.msra.mxu0 0.0
        %1789 = vmatprep.subr.mxu0 0.0
        %1790 = vmatpush2.msra.mxu0 0.0
        %1791 = vmatprep.subr.mxu0 0.0
        %1792 = vmatpush2.msra.mxu0 0.0
        %1793 = vmatprep.subr.mxu0 0.0
        %1794 = vmatpush2.msra.mxu0 0.0
        %1795 = vmatprep.subr.mxu0 0.0
        %1796 = vmatpush2.msra.mxu0 0.0
        %1797 = vmatprep.subr.mxu0 0.0
        %1798 = vmatpush2.msra.mxu0 0.0
        %1799 = vmatprep.subr.mxu0 0.0
        %1800 = vmatpush2.msra.mxu0 0.0
        %1801 = vmatprep.subr.mxu0 0.0
        %1802 = vmatpush2.msra.mxu0 0.0
        %1803 = vmatprep.subr.mxu0 0.0
        %1804 = vmatpush2.msra.mxu0 0.0
        %1805 = vmatprep.mubr.f32.mxu0 0.0
        %1806 = vmatmul.mubr.f32.gmra.mxu0 %v1533
        %v1807 = vpop.f32.mrf.mxu0
        %v1808 = vadd.f32 0.0, %v1807
        %v1809 = vpop.f32.mrf.mxu0
        %1810 = vmatprep.mubr.f32.mxu0 0.0
        %1811 = vmatmul.mubr.f32.gmra.mxu0 %v1536
        %v1812 = vpop.f32.mrf.mxu0
        %v1813 = vadd.f32 0.0, %v1812
        %v1814 = vpop.f32.mrf.mxu0
        %1815 = vmatprep.mubr.f32.mxu0 0.0
        %1816 = vmatmul.mubr.f32.gmra.mxu0 %v1539
        %v1817 = vpop.f32.mrf.mxu0
        %v1818 = vadd.f32 0.0, %v1817
        %v1819 = vpop.f32.mrf.mxu0
        %1820 = vmatprep.mubr.f32.mxu0 0.0
        %1821 = vmatmul.mubr.f32.gmra.mxu0 %v1542
        %v1822 = vpop.f32.mrf.mxu0
        %v1823 = vadd.f32 0.0, %v1822
        %v1824 = vpop.f32.mrf.mxu0
        %1825 = vdwg.mxu0
        %v1826 = vld [vmem:[#allocation13] sm:$0xff]
        %v1827 = vld [vmem:[#allocation13 + $0x8] sm:$0xff]
        %v1828 = vld [vmem:[#allocation13 + $0x10] sm:$0xff]
        %v1829 = vld [vmem:[#allocation13 + $0x18] sm:$0xff]
        %v1830 = vld [vmem:[#allocation14] sm:$0x1]
        %v1832 = vlaneseq
        %v1833 = vshrl.u32 %v1832, 7
        %v1834 = vsub.s32 0, %v1833
        %v1835 = vrot.slane %v1830, %v1834
        %v1838 = vsel %vm1031, %v1808, 0
        %v1841 = vsel %vm1031, %v1813, 0
        %v1844 = vsel %vm1031, %v1818, 0
        %v1847 = vsel %vm1031, %v1823, 0
        %1849 = vmatprep.subr.mxu0 0.0
        %1850 = vmatpush1.msra.mxu0 0.0
        %1851 = vmatprep.subr.mxu0 0.0
        %1852 = vmatpush1.msra.mxu0 0.0
        %1853 = vmatprep.subr.mxu0 0.0
        %1854 = vmatpush1.msra.mxu0 0.0
        %1855 = vmatprep.subr.mxu0 0.0
        %1856 = vmatpush1.msra.mxu0 0.0
        %1857 = vmatprep.subr.mxu0 0.0
        %1858 = vmatpush1.msra.mxu0 0.0
        %1859 = vmatprep.subr.mxu0 0.0
        %1860 = vmatpush1.msra.mxu0 0.0
        %1861 = vmatprep.subr.mxu0 0.0
        %1862 = vmatpush1.msra.mxu0 0.0
        %1863 = vmatprep.subr.mxu0 0.0
        %1864 = vmatpush1.msra.mxu0 0.0
        %1865 = vmatprep.subr.mxu0 0.0
        %1866 = vmatpush1.msra.mxu0 0.0
        %1867 = vmatprep.subr.mxu0 0.0
        %1868 = vmatpush1.msra.mxu0 0.0
        %1869 = vmatprep.subr.mxu0 0.0
        %1870 = vmatpush1.msra.mxu0 0.0
        %1871 = vmatprep.subr.mxu0 0.0
        %1872 = vmatpush1.msra.mxu0 0.0
        %1873 = vmatprep.subr.mxu0 0.0
        %1874 = vmatpush1.msra.mxu0 %v1829
        %1875 = vmatprep.subr.mxu0 0.0
        %1876 = vmatpush1.msra.mxu0 %v1828
        %1877 = vmatprep.subr.mxu0 0.0
        %1878 = vmatpush1.msra.mxu0 %v1827
        %1879 = vmatprep.subr.mxu0 0.0
        %1880 = vmatpush1.msra.mxu0 %v1826
        %1881 = vmatprep.subr.mxu0 0.0
        %1882 = vmatpush2.msra.mxu0 0.0
        %1883 = vmatprep.subr.mxu0 0.0
        %1884 = vmatpush2.msra.mxu0 0.0
        %1885 = vmatprep.subr.mxu0 0.0
        %1886 = vmatpush2.msra.mxu0 0.0
        %1887 = vmatprep.subr.mxu0 0.0
        %1888 = vmatpush2.msra.mxu0 0.0
        %1889 = vmatprep.subr.mxu0 0.0
        %1890 = vmatpush2.msra.mxu0 0.0
        %1891 = vmatprep.subr.mxu0 0.0
        %1892 = vmatpush2.msra.mxu0 0.0
        %1893 = vmatprep.subr.mxu0 0.0
        %1894 = vmatpush2.msra.mxu0 0.0
        %1895 = vmatprep.subr.mxu0 0.0
        %1896 = vmatpush2.msra.mxu0 0.0
        %1897 = vmatprep.subr.mxu0 0.0
        %1898 = vmatpush2.msra.mxu0 0.0
        %1899 = vmatprep.subr.mxu0 0.0
        %1900 = vmatpush2.msra.mxu0 0.0
        %1901 = vmatprep.subr.mxu0 0.0
        %1902 = vmatpush2.msra.mxu0 0.0
        %1903 = vmatprep.subr.mxu0 0.0
        %1904 = vmatpush2.msra.mxu0 0.0
        %1905 = vmatprep.subr.mxu0 0.0
        %1906 = vmatpush2.msra.mxu0 0.0
        %1907 = vmatprep.subr.mxu0 0.0
        %1908 = vmatpush2.msra.mxu0 0.0
        %1909 = vmatprep.subr.mxu0 0.0
        %1910 = vmatpush2.msra.mxu0 0.0
        %1911 = vmatprep.subr.mxu0 0.0
        %1912 = vmatpush2.msra.mxu0 0.0
        %1913 = vmatprep.mubr.f32.mxu0 0.0
        %1914 = vmatmul.mubr.f32.gmra.mxu0 %v1838
        %v1915 = vpop.f32.mrf.mxu0
        %v1916 = vadd.f32 %v1835, %v1915
        %v1917 = vpop.f32.mrf.mxu0
        %1918 = vmatprep.mubr.f32.mxu0 0.0
        %1919 = vmatmul.mubr.f32.gmra.mxu0 %v1841
        %v1920 = vpop.f32.mrf.mxu0
        %v1921 = vadd.f32 %v1835, %v1920
        %v1922 = vpop.f32.mrf.mxu0
        %1923 = vmatprep.mubr.f32.mxu0 0.0
        %1924 = vmatmul.mubr.f32.gmra.mxu0 %v1844
        %v1925 = vpop.f32.mrf.mxu0
        %v1926 = vadd.f32 %v1835, %v1925
        %v1927 = vpop.f32.mrf.mxu0
        %1928 = vmatprep.mubr.f32.mxu0 0.0
        %1929 = vmatmul.mubr.f32.gmra.mxu0 %v1847
        %v1930 = vpop.f32.mrf.mxu0
        %v1931 = vadd.f32 %v1835, %v1930
        %v1932 = vpop.f32.mrf.mxu0
        %1933 = vdwg.mxu0
        %v1934 = vmax.f32 %v1916, 0.0
        %v1935 = vmax.f32 %v1921, 0.0
        %v1936 = vmax.f32 %v1926, 0.0
        %v1937 = vmax.f32 %v1931, 0.0
        %v1938 = vld [vmem:[%s18] sm:$0xff]
        %v1939 = vld [vmem:[%s18 + $0x8] sm:$0xff]
        %v1940 = vld [vmem:[%s18 + $0x10] sm:$0xff]
        %v1941 = vld [vmem:[%s18 + $0x18] sm:$0xff]
        %v1942 = vld [vmem:[%s19] sm:$0x1]
        %v1944 = vlaneseq
        %v1945 = vshrl.u32 %v1944, 7
        %v1946 = vsub.s32 0, %v1945
        %v1947 = vrot.slane %v1942, %v1946
        %v1950 = vsel %vm1031, %v1934, 0
        %v1953 = vsel %vm1031, %v1935, 0
        %v1956 = vsel %vm1031, %v1936, 0
        %v1959 = vsel %vm1031, %v1937, 0
        %1961 = vmatprep.subr.mxu0 0.0
        %1962 = vmatpush1.msra.mxu0 0.0
        %1963 = vmatprep.subr.mxu0 0.0
        %1964 = vmatpush1.msra.mxu0 0.0
        %1965 = vmatprep.subr.mxu0 0.0
        %1966 = vmatpush1.msra.mxu0 0.0
        %1967 = vmatprep.subr.mxu0 0.0
        %1968 = vmatpush1.msra.mxu0 0.0
        %1969 = vmatprep.subr.mxu0 0.0
        %1970 = vmatpush1.msra.mxu0 0.0
        %1971 = vmatprep.subr.mxu0 0.0
        %1972 = vmatpush1.msra.mxu0 0.0
        %1973 = vmatprep.subr.mxu0 0.0
        %1974 = vmatpush1.msra.mxu0 0.0
        %1975 = vmatprep.subr.mxu0 0.0
        %1976 = vmatpush1.msra.mxu0 0.0
        %1977 = vmatprep.subr.mxu0 0.0
        %1978 = vmatpush1.msra.mxu0 0.0
        %1979 = vmatprep.subr.mxu0 0.0
        %1980 = vmatpush1.msra.mxu0 0.0
        %1981 = vmatprep.subr.mxu0 0.0
        %1982 = vmatpush1.msra.mxu0 0.0
        %1983 = vmatprep.subr.mxu0 0.0
        %1984 = vmatpush1.msra.mxu0 0.0
        %1985 = vmatprep.subr.mxu0 0.0
        %1986 = vmatpush1.msra.mxu0 %v1941
        %1987 = vmatprep.subr.mxu0 0.0
        %1988 = vmatpush1.msra.mxu0 %v1940
        %1989 = vmatprep.subr.mxu0 0.0
        %1990 = vmatpush1.msra.mxu0 %v1939
        %1991 = vmatprep.subr.mxu0 0.0
        %1992 = vmatpush1.msra.mxu0 %v1938
        %1993 = vmatprep.subr.mxu0 0.0
        %1994 = vmatpush2.msra.mxu0 0.0
        %1995 = vmatprep.subr.mxu0 0.0
        %1996 = vmatpush2.msra.mxu0 0.0
        %1997 = vmatprep.subr.mxu0 0.0
        %1998 = vmatpush2.msra.mxu0 0.0
        %1999 = vmatprep.subr.mxu0 0.0
        %2000 = vmatpush2.msra.mxu0 0.0
        %2001 = vmatprep.subr.mxu0 0.0
        %2002 = vmatpush2.msra.mxu0 0.0
        %2003 = vmatprep.subr.mxu0 0.0
        %2004 = vmatpush2.msra.mxu0 0.0
        %2005 = vmatprep.subr.mxu0 0.0
        %2006 = vmatpush2.msra.mxu0 0.0
        %2007 = vmatprep.subr.mxu0 0.0
        %2008 = vmatpush2.msra.mxu0 0.0
        %2009 = vmatprep.subr.mxu0 0.0
        %2010 = vmatpush2.msra.mxu0 0.0
        %2011 = vmatprep.subr.mxu0 0.0
        %2012 = vmatpush2.msra.mxu0 0.0
        %2013 = vmatprep.subr.mxu0 0.0
        %2014 = vmatpush2.msra.mxu0 0.0
        %2015 = vmatprep.subr.mxu0 0.0
        %2016 = vmatpush2.msra.mxu0 0.0
        %2017 = vmatprep.subr.mxu0 0.0
        %2018 = vmatpush2.msra.mxu0 0.0
        %2019 = vmatprep.subr.mxu0 0.0
        %2020 = vmatpush2.msra.mxu0 0.0
        %2021 = vmatprep.subr.mxu0 0.0
        %2022 = vmatpush2.msra.mxu0 0.0
        %2023 = vmatprep.subr.mxu0 0.0
        %2024 = vmatpush2.msra.mxu0 0.0
        %2025 = vmatprep.mubr.f32.mxu0 0.0
        %2026 = vmatmul.mubr.f32.gmra.mxu0 %v1950
        %v2027 = vpop.f32.mrf.mxu0
        %v2028 = vadd.f32 %v1947, %v2027
        %v2029 = vpop.f32.mrf.mxu0
        %2030 = vmatprep.mubr.f32.mxu0 0.0
        %2031 = vmatmul.mubr.f32.gmra.mxu0 %v1953
        %v2032 = vpop.f32.mrf.mxu0
        %v2033 = vadd.f32 %v1947, %v2032
        %v2034 = vpop.f32.mrf.mxu0
        %2035 = vmatprep.mubr.f32.mxu0 0.0
        %2036 = vmatmul.mubr.f32.gmra.mxu0 %v1956
        %v2037 = vpop.f32.mrf.mxu0
        %v2038 = vadd.f32 %v1947, %v2037
        %v2039 = vpop.f32.mrf.mxu0
        %2040 = vmatprep.mubr.f32.mxu0 0.0
        %2041 = vmatmul.mubr.f32.gmra.mxu0 %v1959
        %v2042 = vpop.f32.mrf.mxu0
        %v2043 = vadd.f32 %v1947, %v2042
        %v2044 = vpop.f32.mrf.mxu0
        %2045 = vdwg.mxu0
        %v2046 = vld [vmem:[#allocation16] sm:$0xff]
        %v2047 = vld [vmem:[#allocation16 + $0x8] sm:$0xff]
        %v2048 = vld [vmem:[#allocation16 + $0x10] sm:$0xff]
        %v2049 = vld [vmem:[#allocation16 + $0x18] sm:$0xff]
        %v2050 = vld [vmem:[%s21] sm:$0x1]
        %v2052 = vlaneseq
        %v2053 = vshrl.u32 %v2052, 7
        %v2054 = vsub.s32 0, %v2053
        %v2055 = vrot.slane %v2050, %v2054
        %v2058 = vsel %vm1031, %v1228, 0
        %v2061 = vsel %vm1031, %v1233, 0
        %v2064 = vsel %vm1031, %v1238, 0
        %v2067 = vsel %vm1031, %v1243, 0
        %2069 = vmatprep.subr.mxu0 0.0
        %2070 = vmatpush1.msra.mxu0 0.0
        %2071 = vmatprep.subr.mxu0 0.0
        %2072 = vmatpush1.msra.mxu0 0.0
        %2073 = vmatprep.subr.mxu0 0.0
        %2074 = vmatpush1.msra.mxu0 0.0
        %2075 = vmatprep.subr.mxu0 0.0
        %2076 = vmatpush1.msra.mxu0 0.0
        %2077 = vmatprep.subr.mxu0 0.0
        %2078 = vmatpush1.msra.mxu0 0.0
        %2079 = vmatprep.subr.mxu0 0.0
        %2080 = vmatpush1.msra.mxu0 0.0
        %2081 = vmatprep.subr.mxu0 0.0
        %2082 = vmatpush1.msra.mxu0 0.0
        %2083 = vmatprep.subr.mxu0 0.0
        %2084 = vmatpush1.msra.mxu0 0.0
        %2085 = vmatprep.subr.mxu0 0.0
        %2086 = vmatpush1.msra.mxu0 0.0
        %2087 = vmatprep.subr.mxu0 0.0
        %2088 = vmatpush1.msra.mxu0 0.0
        %2089 = vmatprep.subr.mxu0 0.0
        %2090 = vmatpush1.msra.mxu0 0.0
        %2091 = vmatprep.subr.mxu0 0.0
        %2092 = vmatpush1.msra.mxu0 0.0
        %2093 = vmatprep.subr.mxu0 0.0
        %2094 = vmatpush1.msra.mxu0 %v2049
        %2095 = vmatprep.subr.mxu0 0.0
        %2096 = vmatpush1.msra.mxu0 %v2048
        %2097 = vmatprep.subr.mxu0 0.0
        %2098 = vmatpush1.msra.mxu0 %v2047
        %2099 = vmatprep.subr.mxu0 0.0
        %2100 = vmatpush1.msra.mxu0 %v2046
        %2101 = vmatprep.subr.mxu0 0.0
        %2102 = vmatpush2.msra.mxu0 0.0
        %2103 = vmatprep.subr.mxu0 0.0
        %2104 = vmatpush2.msra.mxu0 0.0
        %2105 = vmatprep.subr.mxu0 0.0
        %2106 = vmatpush2.msra.mxu0 0.0
        %2107 = vmatprep.subr.mxu0 0.0
        %2108 = vmatpush2.msra.mxu0 0.0
        %2109 = vmatprep.subr.mxu0 0.0
        %2110 = vmatpush2.msra.mxu0 0.0
        %2111 = vmatprep.subr.mxu0 0.0
        %2112 = vmatpush2.msra.mxu0 0.0
        %2113 = vmatprep.subr.mxu0 0.0
        %2114 = vmatpush2.msra.mxu0 0.0
        %2115 = vmatprep.subr.mxu0 0.0
        %2116 = vmatpush2.msra.mxu0 0.0
        %2117 = vmatprep.subr.mxu0 0.0
        %2118 = vmatpush2.msra.mxu0 0.0
        %2119 = vmatprep.subr.mxu0 0.0
        %2120 = vmatpush2.msra.mxu0 0.0
        %2121 = vmatprep.subr.mxu0 0.0
        %2122 = vmatpush2.msra.mxu0 0.0
        %2123 = vmatprep.subr.mxu0 0.0
        %2124 = vmatpush2.msra.mxu0 0.0
        %2125 = vmatprep.subr.mxu0 0.0
        %2126 = vmatpush2.msra.mxu0 0.0
        %2127 = vmatprep.subr.mxu0 0.0
        %2128 = vmatpush2.msra.mxu0 0.0
        %2129 = vmatprep.subr.mxu0 0.0
        %2130 = vmatpush2.msra.mxu0 0.0
        %2131 = vmatprep.subr.mxu0 0.0
        %2132 = vmatpush2.msra.mxu0 0.0
        %2133 = vmatprep.mubr.f32.mxu0 0.0
        %2134 = vmatmul.mubr.f32.gmra.mxu0 %v2058
        %v2135 = vpop.f32.mrf.mxu0
        %v2136 = vadd.f32 %v2055, %v2135
        %v2137 = vpop.f32.mrf.mxu0
        %2138 = vmatprep.mubr.f32.mxu0 0.0
        %2139 = vmatmul.mubr.f32.gmra.mxu0 %v2061
        %v2140 = vpop.f32.mrf.mxu0
        %v2141 = vadd.f32 %v2055, %v2140
        %v2142 = vpop.f32.mrf.mxu0
        %2143 = vmatprep.mubr.f32.mxu0 0.0
        %2144 = vmatmul.mubr.f32.gmra.mxu0 %v2064
        %v2145 = vpop.f32.mrf.mxu0
        %v2146 = vadd.f32 %v2055, %v2145
        %v2147 = vpop.f32.mrf.mxu0
        %2148 = vmatprep.mubr.f32.mxu0 0.0
        %2149 = vmatmul.mubr.f32.gmra.mxu0 %v2067
        %v2150 = vpop.f32.mrf.mxu0
        %v2151 = vadd.f32 %v2055, %v2150
        %v2152 = vpop.f32.mrf.mxu0
        %2153 = vdwg.mxu0
        %v2155 = vsel %vm1031, %v2028, 0
        %v2158 = vsel %vm1031, %v2033, 0
        %v2161 = vsel %vm1031, %v2038, 0
        %v2164 = vsel %vm1031, %v2043, 0
        %v2167 = vsel %vm1031, %v1529, 0
        %2169 = vmatprep.subr.mxu0 0.0
        %2170 = vmatpush1.xpose.msra.mxu0 0.0
        %2171 = vmatprep.subr.mxu0 0.0
        %2172 = vmatpush1.xpose.msra.mxu0 0.0
        %2173 = vmatprep.subr.mxu0 0.0
        %2174 = vmatpush1.xpose.msra.mxu0 0.0
        %2175 = vmatprep.subr.mxu0 0.0
        %2176 = vmatpush1.xpose.msra.mxu0 0.0
        %2177 = vmatprep.subr.mxu0 0.0
        %2178 = vmatpush1.xpose.msra.mxu0 0.0
        %2179 = vmatprep.subr.mxu0 0.0
        %2180 = vmatpush1.xpose.msra.mxu0 0.0
        %2181 = vmatprep.subr.mxu0 0.0
        %2182 = vmatpush1.xpose.msra.mxu0 0.0
        %2183 = vmatprep.subr.mxu0 0.0
        %2184 = vmatpush1.xpose.msra.mxu0 0.0
        %2185 = vmatprep.subr.mxu0 0.0
        %2186 = vmatpush1.xpose.msra.mxu0 0.0
        %2187 = vmatprep.subr.mxu0 0.0
        %2188 = vmatpush1.xpose.msra.mxu0 0.0
        %2189 = vmatprep.subr.mxu0 0.0
        %2190 = vmatpush1.xpose.msra.mxu0 0.0
        %2191 = vmatprep.subr.mxu0 0.0
        %2192 = vmatpush1.xpose.msra.mxu0 0.0
        %2193 = vmatprep.subr.mxu0 0.0
        %2194 = vmatpush1.xpose.msra.mxu0 0.0
        %2195 = vmatprep.subr.mxu0 0.0
        %2196 = vmatpush1.xpose.msra.mxu0 0.0
        %2197 = vmatprep.subr.mxu0 0.0
        %2198 = vmatpush1.xpose.msra.mxu0 0.0
        %2199 = vmatprep.subr.mxu0 0.0
        %2200 = vmatpush1.xpose.msra.mxu0 %v2167
        %2201 = vmatprep.subr.mxu0 0.0
        %2202 = vmatpush2.xpose.msra.mxu0 0.0
        %2203 = vmatprep.subr.mxu0 0.0
        %2204 = vmatpush2.xpose.msra.mxu0 0.0
        %2205 = vmatprep.subr.mxu0 0.0
        %2206 = vmatpush2.xpose.msra.mxu0 0.0
        %2207 = vmatprep.subr.mxu0 0.0
        %2208 = vmatpush2.xpose.msra.mxu0 0.0
        %2209 = vmatprep.subr.mxu0 0.0
        %2210 = vmatpush2.xpose.msra.mxu0 0.0
        %2211 = vmatprep.subr.mxu0 0.0
        %2212 = vmatpush2.xpose.msra.mxu0 0.0
        %2213 = vmatprep.subr.mxu0 0.0
        %2214 = vmatpush2.xpose.msra.mxu0 0.0
        %2215 = vmatprep.subr.mxu0 0.0
        %2216 = vmatpush2.xpose.msra.mxu0 0.0
        %2217 = vmatprep.subr.mxu0 0.0
        %2218 = vmatpush2.xpose.msra.mxu0 0.0
        %2219 = vmatprep.subr.mxu0 0.0
        %2220 = vmatpush2.xpose.msra.mxu0 0.0
        %2221 = vmatprep.subr.mxu0 0.0
        %2222 = vmatpush2.xpose.msra.mxu0 0.0
        %2223 = vmatprep.subr.mxu0 0.0
        %2224 = vmatpush2.xpose.msra.mxu0 0.0
        %2225 = vmatprep.subr.mxu0 0.0
        %2226 = vmatpush2.xpose.msra.mxu0 0.0
        %2227 = vmatprep.subr.mxu0 0.0
        %2228 = vmatpush2.xpose.msra.mxu0 0.0
        %2229 = vmatprep.subr.mxu0 0.0
        %2230 = vmatpush2.xpose.msra.mxu0 0.0
        %2231 = vmatprep.subr.mxu0 0.0
        %2232 = vmatpush2.xpose.msra.mxu0 0.0
        %2233 = vmatprep.mubr.f32.mxu0 0.0
        %2234 = vmatmul.mubr.f32.gmra.mxu0 %v2155
        %v2235 = vpop.f32.mrf.mxu0
        %v2236 = vadd.f32 0.0, %v2235
        %v2237 = vpop.f32.mrf.mxu0
        %2238 = vmatprep.mubr.f32.mxu0 0.0
        %2239 = vmatmul.mubr.f32.gmra.mxu0 %v2158
        %v2240 = vpop.f32.mrf.mxu0
        %v2241 = vadd.f32 0.0, %v2240
        %v2242 = vpop.f32.mrf.mxu0
        %2243 = vmatprep.mubr.f32.mxu0 0.0
        %2244 = vmatmul.mubr.f32.gmra.mxu0 %v2161
        %v2245 = vpop.f32.mrf.mxu0
        %v2246 = vadd.f32 0.0, %v2245
        %v2247 = vpop.f32.mrf.mxu0
        %2248 = vmatprep.mubr.f32.mxu0 0.0
        %2249 = vmatmul.mubr.f32.gmra.mxu0 %v2164
        %v2250 = vpop.f32.mrf.mxu0
        %v2251 = vadd.f32 0.0, %v2250
        %v2252 = vpop.f32.mrf.mxu0
        %2253 = vdwg.mxu0
        %v2254 = vmul.f32 %v2236, 0.17677669
        %v2255 = vmul.f32 %v2241, 0.17677669
        %v2256 = vmul.f32 %v2246, 0.17677669
        %v2257 = vmul.f32 %v2251, 0.17677669
        %vm2258 = vcmask 64512
        %v2259 = vsel %vm2258, %v2254, -inf
        %2260 = vmax.xlane.f32.xlu0 %v2259
        %v2261 = vpop.xlane.xlu0 %2260
        %v2262 = vsel %vm2258, %v2255, -inf
        %2263 = vmax.xlane.f32.xlu0 %v2262
        %v2264 = vpop.xlane.xlu0 %2263
        %v2265 = vsel %vm2258, %v2256, -inf
        %2266 = vmax.xlane.f32.xlu0 %v2265
        %v2267 = vpop.xlane.xlu0 %2266
        %v2268 = vsel %vm2258, %v2257, -inf
        %2269 = vmax.xlane.f32.xlu0 %v2268
        %v2270 = vpop.xlane.xlu0 %2269
        %v2271 = vsub.f32 %v2254, %v2261
        %v2272 = vsub.f32 %v2255, %v2264
        %v2273 = vsub.f32 %v2256, %v2267
        %v2274 = vsub.f32 %v2257, %v2270
        %v2275 = vmul.f32 %v2271, 1.442695
        %v2276 = vpow.pop %v2275
        %v2277 = vmul.f32 %v2272, 1.442695
        %v2278 = vpow.pop %v2277
        %v2279 = vmul.f32 %v2273, 1.442695
        %v2280 = vpow.pop %v2279
        %v2281 = vmul.f32 %v2274, 1.442695
        %v2282 = vpow.pop %v2281
        %v2283 = vsel %vm2258, %v2276, 0.0
        %2284 = vadd.xlane.f32.xlu0 %v2283
        %v2285 = vpop.xlane.xlu0 %2284
        %v2286 = vsel %vm2258, %v2278, 0.0
        %2287 = vadd.xlane.f32.xlu0 %v2286
        %v2288 = vpop.xlane.xlu0 %2287
        %v2289 = vsel %vm2258, %v2280, 0.0
        %2290 = vadd.xlane.f32.xlu0 %v2289
        %v2291 = vpop.xlane.xlu0 %2290
        %v2292 = vsel %vm2258, %v2282, 0.0
        %2293 = vadd.xlane.f32.xlu0 %v2292
        %v2294 = vpop.xlane.xlu0 %2293
        %v2295 = vrcp.pop %v2285
        %v2296 = vrcp.pop %v2288
        %v2297 = vrcp.pop %v2291
        %v2298 = vrcp.pop %v2294
        %v2299 = vmul.f32 %v2276, %v2295
        %v2300 = vmul.f32 %v2278, %v2296
        %v2301 = vmul.f32 %v2280, %v2297
        %v2302 = vmul.f32 %v2282, %v2298
        %v2304 = vsel %vm2258, %v2299, 0
        %v2307 = vsel %vm2258, %v2300, 0
        %v2310 = vsel %vm2258, %v2301, 0
        %v2313 = vsel %vm2258, %v2302, 0
        %2315 = vmatprep.subr.mxu0 0.0
        %2316 = vmatpush1.msra.mxu0 0.0
        %2317 = vmatprep.subr.mxu0 0.0
        %2318 = vmatpush1.msra.mxu0 0.0
        %2319 = vmatprep.subr.mxu0 0.0
        %2320 = vmatpush1.msra.mxu0 0.0
        %2321 = vmatprep.subr.mxu0 0.0
        %2322 = vmatpush1.msra.mxu0 0.0
        %2323 = vmatprep.subr.mxu0 0.0
        %2324 = vmatpush1.msra.mxu0 0.0
        %2325 = vmatprep.subr.mxu0 0.0
        %2326 = vmatpush1.msra.mxu0 0.0
        %2327 = vmatprep.subr.mxu0 0.0
        %2328 = vmatpush1.msra.mxu0 0.0
        %2329 = vmatprep.subr.mxu0 0.0
        %2330 = vmatpush1.msra.mxu0 0.0
        %2331 = vmatprep.subr.mxu0 0.0
        %2332 = vmatpush1.msra.mxu0 0.0
        %2333 = vmatprep.subr.mxu0 0.0
        %2334 = vmatpush1.msra.mxu0 0.0
        %2335 = vmatprep.subr.mxu0 0.0
        %2336 = vmatpush1.msra.mxu0 0.0
        %2337 = vmatprep.subr.mxu0 0.0
        %2338 = vmatpush1.msra.mxu0 0.0
        %2339 = vmatprep.subr.mxu0 0.0
        %2340 = vmatpush1.msra.mxu0 0.0
        %2341 = vmatprep.subr.mxu0 0.0
        %2342 = vmatpush1.msra.mxu0 0.0
        %2343 = vmatprep.subr.mxu0 0.0
        %2344 = vmatpush1.msra.mxu0 0.0
        %2345 = vmatprep.subr.mxu0 0.0
        %2346 = vmatpush1.msra.mxu0 %v1529
        %2347 = vmatprep.subr.mxu0 0.0
        %2348 = vmatpush2.msra.mxu0 0.0
        %2349 = vmatprep.subr.mxu0 0.0
        %2350 = vmatpush2.msra.mxu0 0.0
        %2351 = vmatprep.subr.mxu0 0.0
        %2352 = vmatpush2.msra.mxu0 0.0
        %2353 = vmatprep.subr.mxu0 0.0
        %2354 = vmatpush2.msra.mxu0 0.0
        %2355 = vmatprep.subr.mxu0 0.0
        %2356 = vmatpush2.msra.mxu0 0.0
        %2357 = vmatprep.subr.mxu0 0.0
        %2358 = vmatpush2.msra.mxu0 0.0
        %2359 = vmatprep.subr.mxu0 0.0
        %2360 = vmatpush2.msra.mxu0 0.0
        %2361 = vmatprep.subr.mxu0 0.0
        %2362 = vmatpush2.msra.mxu0 0.0
        %2363 = vmatprep.subr.mxu0 0.0
        %2364 = vmatpush2.msra.mxu0 0.0
        %2365 = vmatprep.subr.mxu0 0.0
        %2366 = vmatpush2.msra.mxu0 0.0
        %2367 = vmatprep.subr.mxu0 0.0
        %2368 = vmatpush2.msra.mxu0 0.0
        %2369 = vmatprep.subr.mxu0 0.0
        %2370 = vmatpush2.msra.mxu0 0.0
        %2371 = vmatprep.subr.mxu0 0.0
        %2372 = vmatpush2.msra.mxu0 0.0
        %2373 = vmatprep.subr.mxu0 0.0
        %2374 = vmatpush2.msra.mxu0 0.0
        %2375 = vmatprep.subr.mxu0 0.0
        %2376 = vmatpush2.msra.mxu0 0.0
        %2377 = vmatprep.subr.mxu0 0.0
        %2378 = vmatpush2.msra.mxu0 0.0
        %2379 = vmatprep.mubr.f32.mxu0 0.0
        %2380 = vmatmul.mubr.f32.gmra.mxu0 %v2304
        %v2381 = vpop.f32.mrf.mxu0
        %v2382 = vadd.f32 0.0, %v2381
        %v2383 = vpop.f32.mrf.mxu0
        %2384 = vmatprep.mubr.f32.mxu0 0.0
        %2385 = vmatmul.mubr.f32.gmra.mxu0 %v2307
        %v2386 = vpop.f32.mrf.mxu0
        %v2387 = vadd.f32 0.0, %v2386
        %v2388 = vpop.f32.mrf.mxu0
        %2389 = vmatprep.mubr.f32.mxu0 0.0
        %2390 = vmatmul.mubr.f32.gmra.mxu0 %v2310
        %v2391 = vpop.f32.mrf.mxu0
        %v2392 = vadd.f32 0.0, %v2391
        %v2393 = vpop.f32.mrf.mxu0
        %2394 = vmatprep.mubr.f32.mxu0 0.0
        %2395 = vmatmul.mubr.f32.gmra.mxu0 %v2313
        %v2396 = vpop.f32.mrf.mxu0
        %v2397 = vadd.f32 0.0, %v2396
        %v2398 = vpop.f32.mrf.mxu0
        %2399 = vdwg.mxu0
        %v2400 = vsel %vm1031, %v2382, 0.0
        %v2401 = vsel %vm1031, %v2387, 0.0
        %v2402 = vadd.f32 %v2400, %v2401
        %v2403 = vsel %vm1031, %v2392, 0.0
        %v2404 = vadd.f32 %v2402, %v2403
        %v2405 = vsel %vm1031, %v2397, 0.0
        %v2406 = vadd.f32 %v2404, %v2405
        %v2407 = vrot.slane %v2406, 4
        %v2408 = vadd.f32 %v2406, %v2407
        %v2409 = vrot.slane %v2408, 2
        %v2410 = vadd.f32 %v2408, %v2409
        %v2411 = vrot.slane %v2410, 1
        %v2412 = vadd.f32 %v2410, %v2411
        %v2414 = vsel %vm1031, %v2136, 0
        %v2417 = vsel %vm1031, %v2141, 0
        %v2420 = vsel %vm1031, %v2146, 0
        %v2423 = vsel %vm1031, %v2151, 0
        %2425 = vmatprep.subr.mxu0 0.0
        %2426 = vmatpush1.xpose.msra.mxu0 0.0
        %2427 = vmatprep.subr.mxu0 0.0
        %2428 = vmatpush1.xpose.msra.mxu0 0.0
        %2429 = vmatprep.subr.mxu0 0.0
        %2430 = vmatpush1.xpose.msra.mxu0 0.0
        %2431 = vmatprep.subr.mxu0 0.0
        %2432 = vmatpush1.xpose.msra.mxu0 0.0
        %2433 = vmatprep.subr.mxu0 0.0
        %2434 = vmatpush1.xpose.msra.mxu0 0.0
        %2435 = vmatprep.subr.mxu0 0.0
        %2436 = vmatpush1.xpose.msra.mxu0 0.0
        %2437 = vmatprep.subr.mxu0 0.0
        %2438 = vmatpush1.xpose.msra.mxu0 0.0
        %2439 = vmatprep.subr.mxu0 0.0
        %2440 = vmatpush1.xpose.msra.mxu0 0.0
        %2441 = vmatprep.subr.mxu0 0.0
        %2442 = vmatpush1.xpose.msra.mxu0 0.0
        %2443 = vmatprep.subr.mxu0 0.0
        %2444 = vmatpush1.xpose.msra.mxu0 0.0
        %2445 = vmatprep.subr.mxu0 0.0
        %2446 = vmatpush1.xpose.msra.mxu0 0.0
        %2447 = vmatprep.subr.mxu0 0.0
        %2448 = vmatpush1.xpose.msra.mxu0 0.0
        %2449 = vmatprep.subr.mxu0 0.0
        %2450 = vmatpush1.xpose.msra.mxu0 0.0
        %2451 = vmatprep.subr.mxu0 0.0
        %2452 = vmatpush1.xpose.msra.mxu0 0.0
        %2453 = vmatprep.subr.mxu0 0.0
        %2454 = vmatpush1.xpose.msra.mxu0 0.0
        %2455 = vmatprep.subr.mxu0 0.0
        %2456 = vmatpush1.xpose.msra.mxu0 %v2167
        %2457 = vmatprep.subr.mxu0 0.0
        %2458 = vmatpush2.xpose.msra.mxu0 0.0
        %2459 = vmatprep.subr.mxu0 0.0
        %2460 = vmatpush2.xpose.msra.mxu0 0.0
        %2461 = vmatprep.subr.mxu0 0.0
        %2462 = vmatpush2.xpose.msra.mxu0 0.0
        %2463 = vmatprep.subr.mxu0 0.0
        %2464 = vmatpush2.xpose.msra.mxu0 0.0
        %2465 = vmatprep.subr.mxu0 0.0
        %2466 = vmatpush2.xpose.msra.mxu0 0.0
        %2467 = vmatprep.subr.mxu0 0.0
        %2468 = vmatpush2.xpose.msra.mxu0 0.0
        %2469 = vmatprep.subr.mxu0 0.0
        %2470 = vmatpush2.xpose.msra.mxu0 0.0
        %2471 = vmatprep.subr.mxu0 0.0
        %2472 = vmatpush2.xpose.msra.mxu0 0.0
        %2473 = vmatprep.subr.mxu0 0.0
        %2474 = vmatpush2.xpose.msra.mxu0 0.0
        %2475 = vmatprep.subr.mxu0 0.0
        %2476 = vmatpush2.xpose.msra.mxu0 0.0
        %2477 = vmatprep.subr.mxu0 0.0
        %2478 = vmatpush2.xpose.msra.mxu0 0.0
        %2479 = vmatprep.subr.mxu0 0.0
        %2480 = vmatpush2.xpose.msra.mxu0 0.0
        %2481 = vmatprep.subr.mxu0 0.0
        %2482 = vmatpush2.xpose.msra.mxu0 0.0
        %2483 = vmatprep.subr.mxu0 0.0
        %2484 = vmatpush2.xpose.msra.mxu0 0.0
        %2485 = vmatprep.subr.mxu0 0.0
        %2486 = vmatpush2.xpose.msra.mxu0 0.0
        %2487 = vmatprep.subr.mxu0 0.0
        %2488 = vmatpush2.xpose.msra.mxu0 0.0
        %2489 = vmatprep.mubr.f32.mxu0 0.0
        %2490 = vmatmul.mubr.f32.gmra.mxu0 %v2414
        %v2491 = vpop.f32.mrf.mxu0
        %v2492 = vadd.f32 0.0, %v2491
        %v2493 = vpop.f32.mrf.mxu0
        %2494 = vmatprep.mubr.f32.mxu0 0.0
        %2495 = vmatmul.mubr.f32.gmra.mxu0 %v2417
        %v2496 = vpop.f32.mrf.mxu0
        %v2497 = vadd.f32 0.0, %v2496
        %v2498 = vpop.f32.mrf.mxu0
        %2499 = vmatprep.mubr.f32.mxu0 0.0
        %2500 = vmatmul.mubr.f32.gmra.mxu0 %v2420
        %v2501 = vpop.f32.mrf.mxu0
        %v2502 = vadd.f32 0.0, %v2501
        %v2503 = vpop.f32.mrf.mxu0
        %2504 = vmatprep.mubr.f32.mxu0 0.0
        %2505 = vmatmul.mubr.f32.gmra.mxu0 %v2423
        %v2506 = vpop.f32.mrf.mxu0
        %v2507 = vadd.f32 0.0, %v2506
        %v2508 = vpop.f32.mrf.mxu0
        %2509 = vdwg.mxu0
        %v2510 = vmul.f32 %v2492, 0.17677669
        %v2511 = vmul.f32 %v2497, 0.17677669
        %v2512 = vmul.f32 %v2502, 0.17677669
        %v2513 = vmul.f32 %v2507, 0.17677669
        %v2514 = vsel %vm2258, %v2510, -inf
        %2515 = vmax.xlane.f32.xlu0 %v2514
        %v2516 = vpop.xlane.xlu0 %2515
        %v2517 = vsel %vm2258, %v2511, -inf
        %2518 = vmax.xlane.f32.xlu0 %v2517
        %v2519 = vpop.xlane.xlu0 %2518
        %v2520 = vsel %vm2258, %v2512, -inf
        %2521 = vmax.xlane.f32.xlu0 %v2520
        %v2522 = vpop.xlane.xlu0 %2521
        %v2523 = vsel %vm2258, %v2513, -inf
        %2524 = vmax.xlane.f32.xlu0 %v2523
        %v2525 = vpop.xlane.xlu0 %2524
        %v2526 = vsub.f32 %v2510, %v2516
        %v2527 = vsub.f32 %v2511, %v2519
        %v2528 = vsub.f32 %v2512, %v2522
        %v2529 = vsub.f32 %v2513, %v2525
        %v2530 = vmul.f32 %v2526, 1.442695
        %v2531 = vpow.pop %v2530
        %v2532 = vmul.f32 %v2527, 1.442695
        %v2533 = vpow.pop %v2532
        %v2534 = vmul.f32 %v2528, 1.442695
        %v2535 = vpow.pop %v2534
        %v2536 = vmul.f32 %v2529, 1.442695
        %v2537 = vpow.pop %v2536
        %v2538 = vsel %vm2258, %v2531, 0.0
        %2539 = vadd.xlane.f32.xlu0 %v2538
        %v2540 = vpop.xlane.xlu0 %2539
        %v2541 = vsel %vm2258, %v2533, 0.0
        %2542 = vadd.xlane.f32.xlu0 %v2541
        %v2543 = vpop.xlane.xlu0 %2542
        %v2544 = vsel %vm2258, %v2535, 0.0
        %2545 = vadd.xlane.f32.xlu0 %v2544
        %v2546 = vpop.xlane.xlu0 %2545
        %v2547 = vsel %vm2258, %v2537, 0.0
        %2548 = vadd.xlane.f32.xlu0 %v2547
        %v2549 = vpop.xlane.xlu0 %2548
        %v2550 = vrcp.pop %v2540
        %v2551 = vrcp.pop %v2543
        %v2552 = vrcp.pop %v2546
        %v2553 = vrcp.pop %v2549
        %v2554 = vmul.f32 %v2531, %v2550
        %v2555 = vmul.f32 %v2533, %v2551
        %v2556 = vmul.f32 %v2535, %v2552
        %v2557 = vmul.f32 %v2537, %v2553
        %v2559 = vsel %vm2258, %v2554, 0
        %v2562 = vsel %vm2258, %v2555, 0
        %v2565 = vsel %vm2258, %v2556, 0
        %v2568 = vsel %vm2258, %v2557, 0
        %2570 = vmatprep.subr.mxu0 0.0
        %2571 = vmatpush1.msra.mxu0 0.0
        %2572 = vmatprep.subr.mxu0 0.0
        %2573 = vmatpush1.msra.mxu0 0.0
        %2574 = vmatprep.subr.mxu0 0.0
        %2575 = vmatpush1.msra.mxu0 0.0
        %2576 = vmatprep.subr.mxu0 0.0
        %2577 = vmatpush1.msra.mxu0 0.0
        %2578 = vmatprep.subr.mxu0 0.0
        %2579 = vmatpush1.msra.mxu0 0.0
        %2580 = vmatprep.subr.mxu0 0.0
        %2581 = vmatpush1.msra.mxu0 0.0
        %2582 = vmatprep.subr.mxu0 0.0
        %2583 = vmatpush1.msra.mxu0 0.0
        %2584 = vmatprep.subr.mxu0 0.0
        %2585 = vmatpush1.msra.mxu0 0.0
        %2586 = vmatprep.subr.mxu0 0.0
        %2587 = vmatpush1.msra.mxu0 0.0
        %2588 = vmatprep.subr.mxu0 0.0
        %2589 = vmatpush1.msra.mxu0 0.0
        %2590 = vmatprep.subr.mxu0 0.0
        %2591 = vmatpush1.msra.mxu0 0.0
        %2592 = vmatprep.subr.mxu0 0.0
        %2593 = vmatpush1.msra.mxu0 0.0
        %2594 = vmatprep.subr.mxu0 0.0
        %2595 = vmatpush1.msra.mxu0 0.0
        %2596 = vmatprep.subr.mxu0 0.0
        %2597 = vmatpush1.msra.mxu0 0.0
        %2598 = vmatprep.subr.mxu0 0.0
        %2599 = vmatpush1.msra.mxu0 0.0
        %2600 = vmatprep.subr.mxu0 0.0
        %2601 = vmatpush1.msra.mxu0 %v1529
        %2602 = vmatprep.subr.mxu0 0.0
        %2603 = vmatpush2.msra.mxu0 0.0
        %2604 = vmatprep.subr.mxu0 0.0
        %2605 = vmatpush2.msra.mxu0 0.0
        %2606 = vmatprep.subr.mxu0 0.0
        %2607 = vmatpush2.msra.mxu0 0.0
        %2608 = vmatprep.subr.mxu0 0.0
        %2609 = vmatpush2.msra.mxu0 0.0
        %2610 = vmatprep.subr.mxu0 0.0
        %2611 = vmatpush2.msra.mxu0 0.0
        %2612 = vmatprep.subr.mxu0 0.0
        %2613 = vmatpush2.msra.mxu0 0.0
        %2614 = vmatprep.subr.mxu0 0.0
        %2615 = vmatpush2.msra.mxu0 0.0
        %2616 = vmatprep.subr.mxu0 0.0
        %2617 = vmatpush2.msra.mxu0 0.0
        %2618 = vmatprep.subr.mxu0 0.0
        %2619 = vmatpush2.msra.mxu0 0.0
        %2620 = vmatprep.subr.mxu0 0.0
        %2621 = vmatpush2.msra.mxu0 0.0
        %2622 = vmatprep.subr.mxu0 0.0
        %2623 = vmatpush2.msra.mxu0 0.0
        %2624 = vmatprep.subr.mxu0 0.0
        %2625 = vmatpush2.msra.mxu0 0.0
        %2626 = vmatprep.subr.mxu0 0.0
        %2627 = vmatpush2.msra.mxu0 0.0
        %2628 = vmatprep.subr.mxu0 0.0
        %2629 = vmatpush2.msra.mxu0 0.0
        %2630 = vmatprep.subr.mxu0 0.0
        %2631 = vmatpush2.msra.mxu0 0.0
        %2632 = vmatprep.subr.mxu0 0.0
        %2633 = vmatpush2.msra.mxu0 0.0
        %2634 = vmatprep.mubr.f32.mxu0 0.0
        %2635 = vmatmul.mubr.f32.gmra.mxu0 %v2559
        %v2636 = vpop.f32.mrf.mxu0
        %v2637 = vadd.f32 0.0, %v2636
        %v2638 = vpop.f32.mrf.mxu0
        %2639 = vmatprep.mubr.f32.mxu0 0.0
        %2640 = vmatmul.mubr.f32.gmra.mxu0 %v2562
        %v2641 = vpop.f32.mrf.mxu0
        %v2642 = vadd.f32 0.0, %v2641
        %v2643 = vpop.f32.mrf.mxu0
        %2644 = vmatprep.mubr.f32.mxu0 0.0
        %2645 = vmatmul.mubr.f32.gmra.mxu0 %v2565
        %v2646 = vpop.f32.mrf.mxu0
        %v2647 = vadd.f32 0.0, %v2646
        %v2648 = vpop.f32.mrf.mxu0
        %2649 = vmatprep.mubr.f32.mxu0 0.0
        %2650 = vmatmul.mubr.f32.gmra.mxu0 %v2568
        %v2651 = vpop.f32.mrf.mxu0
        %v2652 = vadd.f32 0.0, %v2651
        %v2653 = vpop.f32.mrf.mxu0
        %2654 = vdwg.mxu0
        %v2655 = vsel %vm1031, %v2637, 0.0
        %v2656 = vsel %vm1031, %v2642, 0.0
        %v2657 = vadd.f32 %v2655, %v2656
        %v2658 = vsel %vm1031, %v2647, 0.0
        %v2659 = vadd.f32 %v2657, %v2658
        %v2660 = vsel %vm1031, %v2652, 0.0
        %v2661 = vadd.f32 %v2659, %v2660
        %v2662 = vrot.slane %v2661, 4
        %v2663 = vadd.f32 %v2661, %v2662
        %v2664 = vrot.slane %v2663, 2
        %v2665 = vadd.f32 %v2663, %v2664
        %v2666 = vrot.slane %v2665, 1
        %v2667 = vadd.f32 %v2665, %v2666
        %v2668 = vld [vmem:[%s1022] sm:$0x1]
        %v2669 = vrcp.pop %v2668
        %v2670 = vld [vmem:[%s22] sm:$0xff]
        %v2671 = vld [vmem:[%s22 + $0x8] sm:$0xff]
        %v2672 = vld [vmem:[%s22 + $0x10] sm:$0xff]
        %v2673 = vld [vmem:[%s22 + $0x18] sm:$0xff]
        %v2674 = vld [vmem:[%s22 + $0x20] sm:$0xff]
        %v2675 = vld [vmem:[%s22 + $0x28] sm:$0xff]
        %v2676 = vld [vmem:[%s22 + $0x30] sm:$0xff]
        %v2677 = vld [vmem:[%s22 + $0x38] sm:$0xff]
        %v2679 = vsel %vm1031, %v2667, 0
        %2681 = vmatprep.subr.mxu0 0.0
        %2682 = vmatpush1.msra.mxu0 0.0
        %2683 = vmatprep.subr.mxu0 0.0
        %2684 = vmatpush1.msra.mxu0 0.0
        %2685 = vmatprep.subr.mxu0 0.0
        %2686 = vmatpush1.msra.mxu0 0.0
        %2687 = vmatprep.subr.mxu0 0.0
        %2688 = vmatpush1.msra.mxu0 0.0
        %2689 = vmatprep.subr.mxu0 0.0
        %2690 = vmatpush1.msra.mxu0 0.0
        %2691 = vmatprep.subr.mxu0 0.0
        %2692 = vmatpush1.msra.mxu0 0.0
        %2693 = vmatprep.subr.mxu0 0.0
        %2694 = vmatpush1.msra.mxu0 0.0
        %2695 = vmatprep.subr.mxu0 0.0
        %2696 = vmatpush1.msra.mxu0 0.0
        %2697 = vmatprep.subr.mxu0 0.0
        %2698 = vmatpush1.msra.mxu0 0.0
        %2699 = vmatprep.subr.mxu0 0.0
        %2700 = vmatpush1.msra.mxu0 0.0
        %2701 = vmatprep.subr.mxu0 0.0
        %2702 = vmatpush1.msra.mxu0 0.0
        %2703 = vmatprep.subr.mxu0 0.0
        %2704 = vmatpush1.msra.mxu0 0.0
        %2705 = vmatprep.subr.mxu0 0.0
        %2706 = vmatpush1.msra.mxu0 %v2677
        %2707 = vmatprep.subr.mxu0 0.0
        %2708 = vmatpush1.msra.mxu0 %v2676
        %2709 = vmatprep.subr.mxu0 0.0
        %2710 = vmatpush1.msra.mxu0 %v2675
        %2711 = vmatprep.subr.mxu0 0.0
        %2712 = vmatpush1.msra.mxu0 %v2674
        %2713 = vmatprep.subr.mxu0 0.0
        %2714 = vmatpush2.msra.mxu0 0.0
        %2715 = vmatprep.subr.mxu0 0.0
        %2716 = vmatpush2.msra.mxu0 0.0
        %2717 = vmatprep.subr.mxu0 0.0
        %2718 = vmatpush2.msra.mxu0 0.0
        %2719 = vmatprep.subr.mxu0 0.0
        %2720 = vmatpush2.msra.mxu0 0.0
        %2721 = vmatprep.subr.mxu0 0.0
        %2722 = vmatpush2.msra.mxu0 0.0
        %2723 = vmatprep.subr.mxu0 0.0
        %2724 = vmatpush2.msra.mxu0 0.0
        %2725 = vmatprep.subr.mxu0 0.0
        %2726 = vmatpush2.msra.mxu0 0.0
        %2727 = vmatprep.subr.mxu0 0.0
        %2728 = vmatpush2.msra.mxu0 0.0
        %2729 = vmatprep.subr.mxu0 0.0
        %2730 = vmatpush2.msra.mxu0 0.0
        %2731 = vmatprep.subr.mxu0 0.0
        %2732 = vmatpush2.msra.mxu0 0.0
        %2733 = vmatprep.subr.mxu0 0.0
        %2734 = vmatpush2.msra.mxu0 0.0
        %2735 = vmatprep.subr.mxu0 0.0
        %2736 = vmatpush2.msra.mxu0 0.0
        %2737 = vmatprep.subr.mxu0 0.0
        %2738 = vmatpush2.msra.mxu0 0.0
        %2739 = vmatprep.subr.mxu0 0.0
        %2740 = vmatpush2.msra.mxu0 0.0
        %2741 = vmatprep.subr.mxu0 0.0
        %2742 = vmatpush2.msra.mxu0 0.0
        %2743 = vmatprep.subr.mxu0 0.0
        %2744 = vmatpush2.msra.mxu0 0.0
        %2745 = vmatprep.mubr.f32.mxu0 0.0
        %2746 = vmatmul.mubr.f32.gmra.mxu0 %v2679
        %v2747 = vpop.f32.mrf.mxu0
        %v2748 = vadd.f32 0.0, %v2747
        %v2749 = vpop.f32.mrf.mxu0
        %2750 = vdwg.mxu0
        %v2752 = vsel %vm1031, %v2412, 0
        %2754 = vmatprep.subr.mxu0 0.0
        %2755 = vmatpush1.msra.mxu0 0.0
        %2756 = vmatprep.subr.mxu0 0.0
        %2757 = vmatpush1.msra.mxu0 0.0
        %2758 = vmatprep.subr.mxu0 0.0
        %2759 = vmatpush1.msra.mxu0 0.0
        %2760 = vmatprep.subr.mxu0 0.0
        %2761 = vmatpush1.msra.mxu0 0.0
        %2762 = vmatprep.subr.mxu0 0.0
        %2763 = vmatpush1.msra.mxu0 0.0
        %2764 = vmatprep.subr.mxu0 0.0
        %2765 = vmatpush1.msra.mxu0 0.0
        %2766 = vmatprep.subr.mxu0 0.0
        %2767 = vmatpush1.msra.mxu0 0.0
        %2768 = vmatprep.subr.mxu0 0.0
        %2769 = vmatpush1.msra.mxu0 0.0
        %2770 = vmatprep.subr.mxu0 0.0
        %2771 = vmatpush1.msra.mxu0 0.0
        %2772 = vmatprep.subr.mxu0 0.0
        %2773 = vmatpush1.msra.mxu0 0.0
        %2774 = vmatprep.subr.mxu0 0.0
        %2775 = vmatpush1.msra.mxu0 0.0
        %2776 = vmatprep.subr.mxu0 0.0
        %2777 = vmatpush1.msra.mxu0 0.0
        %2778 = vmatprep.subr.mxu0 0.0
        %2779 = vmatpush1.msra.mxu0 %v2673
        %2780 = vmatprep.subr.mxu0 0.0
        %2781 = vmatpush1.msra.mxu0 %v2672
        %2782 = vmatprep.subr.mxu0 0.0
        %2783 = vmatpush1.msra.mxu0 %v2671
        %2784 = vmatprep.subr.mxu0 0.0
        %2785 = vmatpush1.msra.mxu0 %v2670
        %2786 = vmatprep.subr.mxu0 0.0
        %2787 = vmatpush2.msra.mxu0 0.0
        %2788 = vmatprep.subr.mxu0 0.0
        %2789 = vmatpush2.msra.mxu0 0.0
        %2790 = vmatprep.subr.mxu0 0.0
        %2791 = vmatpush2.msra.mxu0 0.0
        %2792 = vmatprep.subr.mxu0 0.0
        %2793 = vmatpush2.msra.mxu0 0.0
        %2794 = vmatprep.subr.mxu0 0.0
        %2795 = vmatpush2.msra.mxu0 0.0
        %2796 = vmatprep.subr.mxu0 0.0
        %2797 = vmatpush2.msra.mxu0 0.0
        %2798 = vmatprep.subr.mxu0 0.0
        %2799 = vmatpush2.msra.mxu0 0.0
        %2800 = vmatprep.subr.mxu0 0.0
        %2801 = vmatpush2.msra.mxu0 0.0
        %2802 = vmatprep.subr.mxu0 0.0
        %2803 = vmatpush2.msra.mxu0 0.0
        %2804 = vmatprep.subr.mxu0 0.0
        %2805 = vmatpush2.msra.mxu0 0.0
        %2806 = vmatprep.subr.mxu0 0.0
        %2807 = vmatpush2.msra.mxu0 0.0
        %2808 = vmatprep.subr.mxu0 0.0
        %2809 = vmatpush2.msra.mxu0 0.0
        %2810 = vmatprep.subr.mxu0 0.0
        %2811 = vmatpush2.msra.mxu0 0.0
        %2812 = vmatprep.subr.mxu0 0.0
        %2813 = vmatpush2.msra.mxu0 0.0
        %2814 = vmatprep.subr.mxu0 0.0
        %2815 = vmatpush2.msra.mxu0 0.0
        %2816 = vmatprep.subr.mxu0 0.0
        %2817 = vmatpush2.msra.mxu0 0.0
        %2818 = vmatprep.mubr.f32.mxu0 0.0
        %2819 = vmatmul.mubr.f32.gmra.mxu0 %v2752
        %v2820 = vpop.f32.mrf.mxu0
        %v2821 = vadd.f32 %v2748, %v2820
        %v2822 = vpop.f32.mrf.mxu0
        %2823 = vdwg.mxu0
        %2825 = vset.pattern.permute.xlu0 0
        %2826 = vperm.xlu0 %2825, %v2669
        %v2827 = vpop.permute.xlu0 %2826
        %v2829 = vlaneseq
        %v2830 = vshrl.u32 %v2829, 7
        %v2831 = vsub.s32 0, %v2830
        %v2832 = vrot.slane %v2827, %v2831
        %v2833 = vmul.f32 %v2821, %v2832
        %v2834 = vld [vmem:[%s23] sm:$0x1]
        %v2835 = vadd.f32 %v2833, %v2834
        %vm2836 = vcmask 253952
        %2837 = vst.msk [vmem:[%s999] sm:$0x1] %vm2836, %v2835
        %s2838 = sand.u32 %s593, 1
        %s2839 = scalar_lea.sflag [#allocation4], %s2838
        %s2840 = sand.u32 %s593, 1
        %s2841 = smul.addr %s2840, 32
        %s2842 = scalar_lea.vmem [#allocation17], %s2841
        %s2843 = sand.u32 %s51, 1
        %s2844 = scalar_lea.sflag [#allocation19], %s2843
        %s2845 = sand.u32 %s619, 1
        %s2846 = scalar_lea.vmem [#allocation18], %s2845
        %s2847 = sand.u32 %s51, 1
        %s2848 = scalar_lea.sflag [#allocation19], %s2847
        %s2849 = sand.u32 %s645, 1
        %s2850 = scalar_lea.vmem [#allocation20], %s2849
        // Predicated region
        $region153: #{tpu_custom_call.1} parent=115 // pred_check
          %p2851 = pneg %p603
        $region154: #{tpu_custom_call.1} parent=115 // pred_check_branch
          %2853 = sbr.rel (%p2851) target = $region156
        $region155: #{tpu_custom_call.1} parent=115 // pred_region
          %s2855 = ssub.s32 512, 512
          %2856 = vsyncadd %s2839, %s2855
          %s2857 = smul.addr %s51, 4
          %s2858 = smul.addr %s2857, 128
          %s2859 = scalar_lea.hbm %s24, %s2858
          %s2860 = sshll.u32 %s2842, 4
          %s2861 = int_to_ptr.vmem [resolvable:$true] %s2860
          %2866 = dma.vmem_to_hbm [thread:$0]  %s2861, 512, %s2859, %s2839, 128, 128, 8
        $region156: #{tpu_custom_call.1} parent=115 // pred_fallthru
          _
        // Predicated region
        $region157: #{tpu_custom_call.1} parent=115 // pred_check
          %p2867 = pneg %p629
        $region158: #{tpu_custom_call.1} parent=115 // pred_check_branch
          %2869 = sbr.rel (%p2867) target = $region160
        $region159: #{tpu_custom_call.1} parent=115 // pred_region
          %s2871 = ssub.s32 16, 16
          %2872 = vsyncadd %s2844, %s2871
          %s2873 = smul.addr %s51, 16
          %s2874 = scalar_lea.hbm %s25, %s2873
          %s2876 = sshll.u32 %s2846, 4
          %s2877 = int_to_ptr.vmem [resolvable:$true] %s2876
          %2879 = dma.vmem_to_hbm [thread:$0]  %s2877, 16, %s2874, %s2844
        $region160: #{tpu_custom_call.1} parent=115 // pred_fallthru
          _
        // Predicated region
        $region161: #{tpu_custom_call.1} parent=115 // pred_check
          %p2880 = pneg %p655
        $region162: #{tpu_custom_call.1} parent=115 // pred_check_branch
          %2882 = sbr.rel (%p2880) target = $region164
        $region163: #{tpu_custom_call.1} parent=115 // pred_region
          %s2884 = ssub.s32 16, 16
          %2885 = vsyncadd %s2848, %s2884
          %s2886 = smul.addr %s51, 16
          %s2887 = scalar_lea.hbm %s26, %s2886
          %s2889 = sshll.u32 %s2850, 4
          %s2890 = int_to_ptr.vmem [resolvable:$true] %s2889
          %2892 = dma.vmem_to_hbm [thread:$0]  %s2890, 16, %s2887, %s2848
        $region164: #{tpu_custom_call.1} parent=115 // pred_fallthru
          _
      $region116: #{tpu_custom_call.1} parent=5 // pred_fallthru
        _
      %p2893 = scmp.le.s32.totalorder 2, %s46
      // Predicated region
      $region165: #{tpu_custom_call.1} parent=5 // pred_check
        %p2894 = pneg %p2893
      $region166: #{tpu_custom_call.1} parent=5 // pred_check_branch
        %2896 = sbr.rel (%p2894) target = $region168
      $region167: #{tpu_custom_call.1} parent=5 // pred_region
        %s2897 = ssub.s32 %s46, 2
        // Predicated region
        $region169: #{tpu_custom_call.1} parent=167 // pred_check
          %p2898 = pneg %p609
        $region170: #{tpu_custom_call.1} parent=167 // pred_check_branch
          %2900 = sbr.rel (%p2898) target = $region172
        $region171: #{tpu_custom_call.1} parent=167 // pred_region
          %s2901 = sand.u32 %s594, 1
          %s2902 = scalar_lea.sflag [#allocation4], %s2901
          %s2903 = sand.u32 %s594, 1
          %s2904 = smul.addr %s2903, 32
          %s2905 = scalar_lea.vmem [#allocation17], %s2904
          %2906 = dma.done %s2902, 512
        $region172: #{tpu_custom_call.1} parent=167 // pred_fallthru
          _
        // Predicated region
        $region173: #{tpu_custom_call.1} parent=167 // pred_check
          %p2907 = pneg %p635
        $region174: #{tpu_custom_call.1} parent=167 // pred_check_branch
          %2909 = sbr.rel (%p2907) target = $region176
        $region175: #{tpu_custom_call.1} parent=167 // pred_region
          %s2910 = sand.u32 %s52, 1
          %s2911 = scalar_lea.sflag [#allocation19], %s2910
          %s2912 = sand.u32 %s620, 1
          %s2913 = scalar_lea.vmem [#allocation18], %s2912
          %2914 = dma.done %s2911, 16
        $region176: #{tpu_custom_call.1} parent=167 // pred_fallthru
          _
        // Predicated region
        $region177: #{tpu_custom_call.1} parent=167 // pred_check
          %p2915 = pneg %p661
        $region178: #{tpu_custom_call.1} parent=167 // pred_check_branch
          %2917 = sbr.rel (%p2915) target = $region180
        $region179: #{tpu_custom_call.1} parent=167 // pred_region
          %s2918 = sand.u32 %s52, 1
          %s2919 = scalar_lea.sflag [#allocation19], %s2918
          %s2920 = sand.u32 %s646, 1
          %s2921 = scalar_lea.vmem [#allocation20], %s2920
          %2922 = dma.done %s2919, 16
        $region180: #{tpu_custom_call.1} parent=167 // pred_fallthru
          _
      $region168: #{tpu_custom_call.1} parent=5 // pred_fallthru
        _
    $region6: #{tpu_custom_call.1} parent=1 // loop_footer
      %s50 = sadd.s32 1, %s46
    $region7: #{tpu_custom_call.1} parent=1 // loop_footer_branch
      %45 = sbr.rel target = $region3
    $region8: #{tpu_custom_call.1} parent=1 // loop_exit
      _
    %2923 = vsyncpa [#allocation3], 1
    %s2924 = scalar_lea.sflag [#allocation3], 1
    %2925 = vsyncpa %s2924, 1
    %2926 = vsyncpa [#allocation6], 1
    %2927 = vsyncpa [#allocation9], 1
    %2928 = vsyncpa [#allocation12], 1
    %2929 = vsyncpa [#allocation15], 1
    %2930 = vsyncpa [#allocation4], 1
    %s2931 = scalar_lea.sflag [#allocation4], 1
    %2932 = vsyncpa %s2931, 1
    %2933 = vsyncpa [#allocation19], 1
    %s2934 = scalar_lea.sflag [#allocation19], 1
    %2935 = vsyncpa %s2934, 1

</llo_original>
